<compile_context>
chip_gen: v7x
topology: tpu7x:2x2x1
jax: 0.10.0
libtpu: 0.0.40
codegen_flags: <defaults>
</compile_context>

<pallas_src>
import functools
import math

import jax
import jax.numpy as jnp
from jax.experimental import pallas as pl
from jax.experimental.pallas import tpu as pltpu


# ---------------------------------------------------------------------------
# Tiling / compiler-param helpers
# ---------------------------------------------------------------------------
def _divisor_tile(dim, cap, mult):
    """Largest multiple-of-`mult` divisor of `dim` that is <= cap; else full dim."""
    if dim <= cap:
        return dim
    t = (cap // mult) * mult
    while t >= mult:
        if dim % t == 0:
            return t
        t -= mult
    return dim


def _compiler_params(semantics, block_bytes, scratch_bytes=0):
    """Explicit VMEM budget: 2x (double-buffered blocks) + scratch + margin."""
    limit = 2 * int(block_bytes) + int(scratch_bytes) + (4 << 20)
    limit = max(16 << 20, min(limit, 100 << 20))
    return pltpu.CompilerParams(dimension_semantics=tuple(semantics),
                                vmem_limit_bytes=int(limit))


# ---------------------------------------------------------------------------
# Tiled linear: out = x @ w + b          (bf16 in / bf16 weights / f32 acc)
# ---------------------------------------------------------------------------
def _linear_kernel(x_ref, w_ref, b_ref, o_ref, acc_ref):
    k = pl.program_id(2)

    @pl.when(k == 0)
    def _():
        acc_ref[...] = jnp.zeros_like(acc_ref)

    acc_ref[...] += jnp.dot(x_ref[...], w_ref[...],
                            preferred_element_type=jnp.float32)

    @pl.when(k == pl.num_programs(2) - 1)
    def _():
        o_ref[...] = (acc_ref[...] + b_ref[...]).astype(o_ref.dtype)


def linear(x, p, out_dtype=jnp.bfloat16, tm_cap=256, tn_cap=256, tk_cap=512):
    """x: (N, Din) bf16 -> (N, Dout) out_dtype."""
    n, din = x.shape
    dout = p["w"].shape[1]
    tm = _divisor_tile(n, tm_cap, 8)
    tn = _divisor_tile(dout, tn_cap, 128)
    tk = _divisor_tile(din, tk_cap, 128)
    grid = (n // tm, dout // tn, din // tk)
    out_bytes = jnp.dtype(out_dtype).itemsize
    block_bytes = tm * tk * 2 + tk * tn * 2 + tn * 4 + tm * tn * out_bytes
    return pl.pallas_call(
        _linear_kernel,
        out_shape=jax.ShapeDtypeStruct((n, dout), out_dtype),
        grid=grid,
        in_specs=[
            pl.BlockSpec((tm, tk), lambda i, j, k: (i, k)),
            pl.BlockSpec((tk, tn), lambda i, j, k: (k, j)),
            pl.BlockSpec((1, tn), lambda i, j, k: (0, j)),
        ],
        out_specs=pl.BlockSpec((tm, tn), lambda i, j, k: (i, j)),
        scratch_shapes=[pltpu.VMEM((tm, tn), jnp.float32)],
        compiler_params=_compiler_params(("parallel", "parallel", "arbitrary"),
                                         block_bytes, tm * tn * 4),
    )(x, p["w"], p["b"])


# ---------------------------------------------------------------------------
# Linear + residual add + LayerNorm fused epilogue (tn == d_model, full row in tile)
#   out = LayerNorm(residual + x @ w + b) * g + beta
# ---------------------------------------------------------------------------
def _linear_add_ln_kernel(x_ref, w_ref, b_ref, r_ref, g_ref, bln_ref, o_ref,
                          acc_ref, *, eps):
    k = pl.program_id(1)

    @pl.when(k == 0)
    def _():
        acc_ref[...] = jnp.zeros_like(acc_ref)

    acc_ref[...] += jnp.dot(x_ref[...], w_ref[...],
                            preferred_element_type=jnp.float32)

    @pl.when(k == pl.num_programs(1) - 1)
    def _():
        y = acc_ref[...] + b_ref[...] + r_ref[...].astype(jnp.float32)
        mu = jnp.mean(y, axis=-1, keepdims=True)
        var = jnp.mean((y - mu) ** 2, axis=-1, keepdims=True)
        o_ref[...] = ((y - mu) * jax.lax.rsqrt(var + eps) * g_ref[...]
                      + bln_ref[...]).astype(o_ref.dtype)


def linear_add_ln(x, p, residual, ln_p, eps=1e-5, tm_cap=256, tk_cap=512):
    n, din = x.shape
    dout = p["w"].shape[1]          # = d_model -> a full row fits in one tile
    tm = _divisor_tile(n, tm_cap, 8)
    tk = _divisor_tile(din, tk_cap, 128)
    grid = (n // tm, din // tk)
    kernel = functools.partial(_linear_add_ln_kernel, eps=eps)
    block_bytes = (tm * tk * 2 + tk * dout * 2 + dout * 4
                   + tm * dout * 2 + 2 * dout * 4 + tm * dout * 2)
    return pl.pallas_call(
        kernel,
        out_shape=jax.ShapeDtypeStruct((n, dout), jnp.bfloat16),
        grid=grid,
        in_specs=[
            pl.BlockSpec((tm, tk), lambda i, k: (i, k)),
            pl.BlockSpec((tk, dout), lambda i, k: (k, 0)),
            pl.BlockSpec((1, dout), lambda i, k: (0, 0)),
            pl.BlockSpec((tm, dout), lambda i, k: (i, 0)),
            pl.BlockSpec((1, dout), lambda i, k: (0, 0)),
            pl.BlockSpec((1, dout), lambda i, k: (0, 0)),
        ],
        out_specs=pl.BlockSpec((tm, dout), lambda i, k: (i, 0)),
        scratch_shapes=[pltpu.VMEM((tm, dout), jnp.float32)],
        compiler_params=_compiler_params(("parallel", "arbitrary"),
                                         block_bytes, tm * dout * 4),
    )(x, p["w"], p["b"], residual, ln_p["g"], ln_p["b"])


# ---------------------------------------------------------------------------
# Fused FFN + residual + LayerNorm, d_ff-blocked:
#   out = LayerNorm(residual + relu(x @ w1 + b1) @ w2 + b2) * g + beta
# ---------------------------------------------------------------------------
def _ffn_kernel(x_ref, w1_ref, b1_ref, w2_ref, b2_ref, r_ref, g_ref, bln_ref,
                o_ref, acc_ref, *, eps):
    k = pl.program_id(1)

    @pl.when(k == 0)
    def _():
        acc_ref[...] = jnp.zeros_like(acc_ref)

    h = jnp.dot(x_ref[...], w1_ref[...],
                preferred_element_type=jnp.float32) + b1_ref[...]
    h = jnp.maximum(h, 0.0)
    acc_ref[...] += jnp.dot(h.astype(jnp.bfloat16), w2_ref[...],
                            preferred_element_type=jnp.float32)

    @pl.when(k == pl.num_programs(1) - 1)
    def _():
        y = acc_ref[...] + b2_ref[...] + r_ref[...].astype(jnp.float32)
        mu = jnp.mean(y, axis=-1, keepdims=True)
        var = jnp.mean((y - mu) ** 2, axis=-1, keepdims=True)
        o_ref[...] = ((y - mu) * jax.lax.rsqrt(var + eps) * g_ref[...]
                      + bln_ref[...]).astype(o_ref.dtype)


def ffn_add_ln(x, p1, p2, residual, ln_p, eps=1e-5, tm_cap=256, tf_cap=512):
    n, d = x.shape
    dff = p1["w"].shape[1]
    tm = _divisor_tile(n, tm_cap, 8)
    tf = _divisor_tile(dff, tf_cap, 128)
    grid = (n // tm, dff // tf)
    kernel = functools.partial(_ffn_kernel, eps=eps)
    block_bytes = (tm * d * 2 + d * tf * 2 + tf * 4 + tf * d * 2 + d * 4
                   + tm * d * 2 + 2 * d * 4 + tm * d * 2)
    scratch_bytes = tm * d * 4 + tm * tf * 4   # f32 accumulator + live relu slab
    return pl.pallas_call(
        kernel,
        out_shape=jax.ShapeDtypeStruct((n, d), jnp.bfloat16),
        grid=grid,
        in_specs=[
            pl.BlockSpec((tm, d), lambda i, k: (i, 0)),
            pl.BlockSpec((d, tf), lambda i, k: (0, k)),
            pl.BlockSpec((1, tf), lambda i, k: (0, k)),
            pl.BlockSpec((tf, d), lambda i, k: (k, 0)),
            pl.BlockSpec((1, d), lambda i, k: (0, 0)),
            pl.BlockSpec((tm, d), lambda i, k: (i, 0)),
            pl.BlockSpec((1, d), lambda i, k: (0, 0)),
            pl.BlockSpec((1, d), lambda i, k: (0, 0)),
        ],
        out_specs=pl.BlockSpec((tm, d), lambda i, k: (i, 0)),
        scratch_shapes=[pltpu.VMEM((tm, d), jnp.float32)],
        compiler_params=_compiler_params(("parallel", "arbitrary"),
                                         block_bytes, scratch_bytes),
    )(x, p1["w"], p1["b"], p2["w"], p2["b"], residual, ln_p["g"], ln_p["b"])


# ---------------------------------------------------------------------------
# Flash-tiled multi-head attention: grid (B, Sq/tq, Sk/tk), online softmax
# ---------------------------------------------------------------------------
def _attn_kernel(q_ref, k_ref, v_ref, o_ref, m_sc, l_sc, acc_sc,
                 *, num_heads, scale, causal):
    ki = pl.program_id(2)

    @pl.when(ki == 0)
    def _():
        m_sc[...] = jnp.full_like(m_sc, -1e30)
        l_sc[...] = jnp.zeros_like(l_sc)
        acc_sc[...] = jnp.zeros_like(acc_sc)

    tq, d = q_ref.shape[1], q_ref.shape[2]
    tk = k_ref.shape[1]
    dh = d // num_heads

    q = q_ref[0] * scale                    # scale folded into the (tq, d) slab (bf16)
    k = k_ref[0]
    v = v_ref[0]

    if causal:
        row = pl.program_id(1) * tq + jax.lax.broadcasted_iota(jnp.int32, (tq, tk), 0)
        col = ki * tk + jax.lax.broadcasted_iota(jnp.int32, (tq, tk), 1)
        allow = col <= row                  # mask generated in-kernel, no mask DMA
    else:
        allow = None

    for h in range(num_heads):              # static unroll; per-head 2D MXU dots
        qh = q[:, h * dh:(h + 1) * dh]
        kh = k[:, h * dh:(h + 1) * dh]
        vh = v[:, h * dh:(h + 1) * dh]
        s = jnp.dot(qh, kh.T, preferred_element_type=jnp.float32)   # (tq, tk) f32
        if allow is not None:
            s = jnp.where(allow, s, -1e30)
        m_prev = m_sc[h]
        m_new = jnp.maximum(m_prev, jnp.max(s, axis=-1, keepdims=True))
        alpha = jnp.exp(m_prev - m_new)
        p = jnp.exp(s - m_new)
        l_sc[h] = alpha * l_sc[h] + jnp.sum(p, axis=-1, keepdims=True)
        acc_sc[h] = alpha * acc_sc[h] + jnp.dot(p.astype(jnp.bfloat16), vh,
                                                preferred_element_type=jnp.float32)
        m_sc[h] = m_new

    @pl.when(ki == pl.num_programs(2) - 1)
    def _():
        outs = [acc_sc[h] * pl.reciprocal(l_sc[h], approx=True)
                for h in range(num_heads)]
        # Single lane-dense (tq, d) store.
        o_ref[0] = jnp.concatenate(outs, axis=-1).astype(o_ref.dtype)


def sdpa(q, k, v, *, num_heads, causal, tq_cap=256, tk_cap=512):
    """q: (B, Sq, D) bf16; k, v: (B, Sk, D) bf16 -> (B, Sq, D) bf16."""
    b, sq, d = q.shape
    sk = k.shape[1]
    dh = d // num_heads
    scale = 1.0 / math.sqrt(dh)
    tq = _divisor_tile(sq, tq_cap, 8)
    tk = _divisor_tile(sk, tk_cap, 8)
    grid = (b, sq // tq, sk // tk)
    kernel = functools.partial(_attn_kernel, num_heads=num_heads, scale=scale,
                               causal=causal)
    block_bytes = tq * d * 2 + 2 * (tk * d * 2) + tq * d * 2
    scratch_bytes = num_heads * tq * (8 + 4 * dh) + num_heads * tq * tk * 4
    return pl.pallas_call(
        kernel,
        out_shape=jax.ShapeDtypeStruct((b, sq, d), jnp.bfloat16),
        grid=grid,
        in_specs=[
            pl.BlockSpec((1, tq, d), lambda bi, qi, ki: (bi, qi, 0)),
            pl.BlockSpec((1, tk, d), lambda bi, qi, ki: (bi, ki, 0)),
            pl.BlockSpec((1, tk, d), lambda bi, qi, ki: (bi, ki, 0)),
        ],
        out_specs=pl.BlockSpec((1, tq, d), lambda bi, qi, ki: (bi, qi, 0)),
        scratch_shapes=[
            pltpu.VMEM((num_heads, tq, 1), jnp.float32),    # running max  m
            pltpu.VMEM((num_heads, tq, 1), jnp.float32),    # running sum  l
            pltpu.VMEM((num_heads, tq, dh), jnp.float32),   # output accumulator
        ],
        compiler_params=_compiler_params(("parallel", "parallel", "arbitrary"),
                                         block_bytes, scratch_bytes),
    )(q, k, v)


# ---------------------------------------------------------------------------
# Model pieces (glue in plain JAX, compute in the kernels above)
# ---------------------------------------------------------------------------
def positional_encoding(max_len, d_model):
    pos = jnp.arange(max_len, dtype=jnp.float32)[:, None]
    i = jnp.arange(0, d_model, 2, dtype=jnp.float32)[None, :]
    div = jnp.exp(-math.log(10000.0) * i / d_model)
    pe = jnp.zeros((max_len, d_model), jnp.float32)
    pe = pe.at[:, 0::2].set(jnp.sin(pos * div))
    pe = pe.at[:, 1::2].set(jnp.cos(pos * div))
    return pe


def mha_self_block(x, p, num_heads, causal, ln_p):
    """LayerNorm(x + SelfAttention(x)) with QKV fused and LN fused into wo epilogue."""
    b, s, d = x.shape
    x2 = x.reshape(b * s, d)
    qkv = linear(x2, p["wqkv"]).reshape(b, s, 3 * d)
    q, k, v = qkv[..., :d], qkv[..., d:2 * d], qkv[..., 2 * d:]
    o = sdpa(q, k, v, num_heads=num_heads, causal=causal)
    return linear_add_ln(o.reshape(b * s, d), p["wo"], x2, ln_p).reshape(b, s, d)


def mha_cross_block(x_q, x_kv, p, num_heads, ln_p):
    """LayerNorm(x_q + CrossAttention(x_q, memory)) with K/V fused."""
    b, sq, d = x_q.shape
    sk = x_kv.shape[1]
    xq2 = x_q.reshape(b * sq, d)
    q = linear(xq2, p["wq"]).reshape(b, sq, d)
    kv = linear(x_kv.reshape(b * sk, d), p["wkv"]).reshape(b, sk, 2 * d)
    k, v = kv[..., :d], kv[..., d:]
    o = sdpa(q, k, v, num_heads=num_heads, causal=False)
    return linear_add_ln(o.reshape(b * sq, d), p["wo"], xq2, ln_p).reshape(b, sq, d)


def encoder_layer(x, p, num_heads):
    b, s, d = x.shape
    x = mha_self_block(x, p["attn"], num_heads, causal=False, ln_p=p["ln1"])
    x2 = x.reshape(b * s, d)
    return ffn_add_ln(x2, p["ff1"], p["ff2"], x2, p["ln2"]).reshape(b, s, d)


def decoder_layer(x, memory, p, num_heads):
    b, s, d = x.shape
    x = mha_self_block(x, p["self_attn"], num_heads, causal=True, ln_p=p["ln1"])
    x = mha_cross_block(x, memory, p["cross_attn"], num_heads, ln_p=p["ln2"])
    x2 = x.reshape(b * s, d)
    return ffn_add_ln(x2, p["ff1"], p["ff2"], x2, p["ln3"]).reshape(b, s, d)


@functools.partial(jax.jit, static_argnames=("num_heads", "max_len"))
def transformer_forward(params, src, tgt, *, num_heads, max_len):
    d_model = params["emb"].shape[1]
    pe = positional_encoding(max_len, d_model)

    # TODO(synk): embedding gather + positional encoding stay in plain JAX (no clean
    # tiled Pallas form for the row gather); activations are cast to bf16 here.
    src_x = (jnp.take(params["emb"], src, axis=0)
             + pe[None, : src.shape[1], :]).astype(jnp.bfloat16)
    tgt_x = (jnp.take(params["emb"], tgt, axis=0)
             + pe[None, : tgt.shape[1], :]).astype(jnp.bfloat16)

    enc = src_x
    for lp in params["enc"]:
        enc = encoder_layer(enc, lp, num_heads)

    dec = tgt_x
    for lp in params["dec"]:
        dec = decoder_layer(dec, enc, lp, num_heads)

    b, st, d = dec.shape
    vocab = params["out"]["w"].shape[1]
    # Final vocab projection: large row tile for maximal weight reuse; f32 logits.
    out = linear(dec.reshape(-1, d), params["out"], out_dtype=jnp.float32, tm_cap=512)
    return out.reshape(b, st, vocab)


# ---------------------------------------------------------------------------
# Deterministic parameter init (weights bf16 for MXU paths, biases/LN params f32)
# ---------------------------------------------------------------------------
def init_params(key, vocab_size, d_model, num_heads, d_ff, num_layers):
    keys = iter(jax.random.split(key, 512))

    def lin(din, dout):
        w = 0.02 * jax.random.normal(next(keys), (din, dout), jnp.float32)
        return {"w": w.astype(jnp.bfloat16), "b": jnp.zeros((1, dout), jnp.float32)}

    def ln(d):
        return {"g": jnp.ones((1, d), jnp.float32), "b": jnp.zeros((1, d), jnp.float32)}

    def enc_l():
        return {"attn": {"wqkv": lin(d_model, 3 * d_model), "wo": lin(d_model, d_model)},
                "ln1": ln(d_model),
                "ff1": lin(d_model, d_ff), "ff2": lin(d_ff, d_model),
                "ln2": ln(d_model)}

    def dec_l():
        return {"self_attn": {"wqkv": lin(d_model, 3 * d_model),
                              "wo": lin(d_model, d_model)},
                "ln1": ln(d_model),
                "cross_attn": {"wq": lin(d_model, d_model),
                               "wkv": lin(d_model, 2 * d_model),
                               "wo": lin(d_model, d_model)},
                "ln2": ln(d_model),
                "ff1": lin(d_model, d_ff), "ff2": lin(d_ff, d_model),
                "ln3": ln(d_model)}

    return {
        "emb": 0.02 * jax.random.normal(next(keys), (vocab_size, d_model), jnp.float32),
        "enc": [enc_l() for _ in range(num_layers)],
        "dec": [dec_l() for _ in range(num_layers)],
        "out": lin(d_model, vocab_size),
    }


# ---------------------------------------------------------------------------
# Main
# ---------------------------------------------------------------------------
if __name__ == "__main__":
    vocab_size = 64
    d_model = 32
    num_heads = 4
    d_ff = 64
    num_layers = 2
    max_len = 16
    B, S_src, S_tgt = 2, 8, 8

    key = jax.random.PRNGKey(0)
    k_par, k_src, k_tgt = jax.random.split(key, 3)

    params = init_params(k_par, vocab_size, d_model, num_heads, d_ff, num_layers)

    src = jax.random.randint(k_src, (B, S_src), 0, vocab_size, dtype=jnp.int32)
    tgt = jax.random.randint(k_tgt, (B, S_tgt), 0, vocab_size, dtype=jnp.int32)

    # TODO(synk): dropout is identity (inference semantics); only the causal decoder
    # self-attention mask is modeled (generated in-kernel) — per-batch padding / src /
    # memory masks are not supported.
    out = transformer_forward(params, src, tgt, num_heads=num_heads, max_len=max_len)
    out = jax.block_until_ready(out)

    assert out.shape == (B, S_tgt, vocab_size)
    assert bool(jnp.all(jnp.isfinite(out)))
    print("KERNEL_OK")
</pallas_src>

<mosaic_0001>
module attributes {stable_mosaic.version = 11 : i64} {
  func.func @_linear_kernel(%arg0: i32, %arg1: i32, %arg2: i32, %arg3: memref<16x32xbf16, #tpu.memory_space<vmem>>, %arg4: memref<32x96xbf16, #tpu.memory_space<vmem>>, %arg5: memref<1x96xf32, #tpu.memory_space<vmem>>, %arg6: memref<16x96xbf16, #tpu.memory_space<vmem>>, %arg7: memref<16x96xf32, #tpu.memory_space<vmem>>) attributes {dimension_semantics = [#tpu.dimension_semantics<parallel>, #tpu.dimension_semantics<parallel>, #tpu.dimension_semantics<arbitrary>], iteration_bounds = array<i64: 1, 1, 1>, scalar_prefetch = 0 : i64, scratch_operands = 1 : i64, tpu.core_type = #tpu.core_type<tc>, window_params = [{transform_indices = @transform_0, window_bounds = array<i64: 16, 32>}, {transform_indices = @transform_1, window_bounds = array<i64: 32, 96>}, {transform_indices = @transform_2, window_bounds = array<i64: 1, 96>}, {transform_indices = @transform_3, window_bounds = array<i64: 16, 96>}]} {
    %c0_i32 = arith.constant 0 : i32
    %0 = arith.cmpi eq, %arg2, %c0_i32 : i32
    %1 = arith.extui %0 : i1 to i32
    %c0_i32_0 = arith.constant 0 : i32
    %2 = arith.cmpi ne, %1, %c0_i32_0 : i32
    scf.if %2 {
      %cst_10 = arith.constant 0.000000e+00 : f32
      %12 = vector.broadcast %cst_10 : f32 to vector<16x96xf32>
      %c0_11 = arith.constant 0 : index
      %c0_12 = arith.constant 0 : index
      %13 = vector.load %arg7[%c0_11, %c0_12] : memref<16x96xf32, #tpu.memory_space<vmem>>, vector<16x96xf32>
      tpu.vector_store %arg7[%c0_11, %c0_12], %12 {strides = array<i32>} : memref<16x96xf32, #tpu.memory_space<vmem>>, vector<16x96xf32>,
    } else {
    }
    %c0 = arith.constant 0 : index
    %c0_1 = arith.constant 0 : index
    %3 = vector.load %arg7[%c0, %c0_1] : memref<16x96xf32, #tpu.memory_space<vmem>>, vector<16x96xf32>
    %c0_2 = arith.constant 0 : index
    %c0_3 = arith.constant 0 : index
    %4 = vector.load %arg3[%c0_2, %c0_3] : memref<16x32xbf16, #tpu.memory_space<vmem>>, vector<16x32xbf16>
    %c0_4 = arith.constant 0 : index
    %c0_5 = arith.constant 0 : index
    %5 = vector.load %arg4[%c0_4, %c0_5] : memref<32x96xbf16, #tpu.memory_space<vmem>>, vector<32x96xbf16>
    %cst = arith.constant dense<0.000000e+00> : vector<16x96xf32>
    %6 = tpu.matmul %4, %5, %cst {dimension_numbers = #tpu.dot_dimension_numbers<[1], [0], [0], [1], [0, 0, 1, 1], [], []>} : vector<16x32xbf16>, vector<32x96xbf16>, vector<16x96xf32> -> vector<16x96xf32>
    %7 = arith.addf %3, %6 : vector<16x96xf32>
    %c0_6 = arith.constant 0 : index
    %c0_7 = arith.constant 0 : index
    %8 = vector.load %arg7[%c0_6, %c0_7] : memref<16x96xf32, #tpu.memory_space<vmem>>, vector<16x96xf32>
    tpu.vector_store %arg7[%c0_6, %c0_7], %7 {strides = array<i32>} : memref<16x96xf32, #tpu.memory_space<vmem>>, vector<16x96xf32>,
    %c0_i32_8 = arith.constant 0 : i32
    %9 = arith.cmpi eq, %arg2, %c0_i32_8 : i32
    %10 = arith.extui %9 : i1 to i32
    %c0_i32_9 = arith.constant 0 : i32
    %11 = arith.cmpi ne, %10, %c0_i32_9 : i32
    scf.if %11 {
      %c0_10 = arith.constant 0 : index
      %c0_11 = arith.constant 0 : index
      %12 = vector.load %arg7[%c0_10, %c0_11] : memref<16x96xf32, #tpu.memory_space<vmem>>, vector<16x96xf32>
      %c0_12 = arith.constant 0 : index
      %c0_13 = arith.constant 0 : index
      %13 = vector.load %arg5[%c0_12, %c0_13] : memref<1x96xf32, #tpu.memory_space<vmem>>, vector<1x96xf32>
      %14 = vector.broadcast %13 : vector<1x96xf32> to vector<16x96xf32>
      %15 = arith.addf %12, %14 : vector<16x96xf32>
      %16 = arith.truncf %15 : vector<16x96xf32> to vector<16x96xbf16>
      %c0_14 = arith.constant 0 : index
      %c0_15 = arith.constant 0 : index
      %17 = vector.load %arg6[%c0_14, %c0_15] : memref<16x96xbf16, #tpu.memory_space<vmem>>, vector<16x96xbf16>
      tpu.vector_store %arg6[%c0_14, %c0_15], %16 {strides = array<i32>} : memref<16x96xbf16, #tpu.memory_space<vmem>>, vector<16x96xbf16>,
    } else {
    }
    return
  }
  func.func @transform_0(%arg0: i32, %arg1: i32, %arg2: i32) -> (i32, i32) {
    %c0_i32 = arith.constant 0 : i32
    return %arg0, %arg2 : i32, i32
  }
  func.func @transform_1(%arg0: i32, %arg1: i32, %arg2: i32) -> (i32, i32) {
    %c0_i32 = arith.constant 0 : i32
    return %arg2, %arg1 : i32, i32
  }
  func.func @transform_2(%arg0: i32, %arg1: i32, %arg2: i32) -> (i32, i32) {
    %c0_i32 = arith.constant 0 : i32
    %c0_i32_0 = arith.constant 0 : i32
    return %c0_i32, %arg1 : i32, i32
  }
  func.func @transform_3(%arg0: i32, %arg1: i32, %arg2: i32) -> (i32, i32) {
    %c0_i32 = arith.constant 0 : i32
    return %arg0, %arg1 : i32, i32
  }
}

module attributes {stable_mosaic.version = 11 : i64} {
  func.func @_linear_add_ln_kernel(%arg0: i32, %arg1: i32, %arg2: memref<16x32xbf16, #tpu.memory_space<vmem>>, %arg3: memref<32x32xbf16, #tpu.memory_space<vmem>>, %arg4: memref<1x32xf32, #tpu.memory_space<vmem>>, %arg5: memref<16x32xbf16, #tpu.memory_space<vmem>>, %arg6: memref<1x32xf32, #tpu.memory_space<vmem>>, %arg7: memref<1x32xf32, #tpu.memory_space<vmem>>, %arg8: memref<16x32xbf16, #tpu.memory_space<vmem>>, %arg9: memref<16x32xf32, #tpu.memory_space<vmem>>) attributes {dimension_semantics = [#tpu.dimension_semantics<parallel>, #tpu.dimension_semantics<arbitrary>], iteration_bounds = array<i64: 1, 1>, scalar_prefetch = 0 : i64, scratch_operands = 1 : i64, tpu.core_type = #tpu.core_type<tc>, window_params = [{transform_indices = @transform_0, window_bounds = array<i64: 16, 32>}, {transform_indices = @transform_1, window_bounds = array<i64: 32, 32>}, {pipeline_mode = #tpu.pipeline_mode<synchronous>, transform_indices = @transform_2, window_bounds = array<i64: 1, 32>}, {transform_indices = @transform_3, window_bounds = array<i64: 16, 32>}, {pipeline_mode = #tpu.pipeline_mode<synchronous>, transform_indices = @transform_4, window_bounds = array<i64: 1, 32>}, {pipeline_mode = #tpu.pipeline_mode<synchronous>, transform_indices = @transform_5, window_bounds = array<i64: 1, 32>}, {transform_indices = @transform_6, window_bounds = array<i64: 16, 32>}]} {
    %c0_i32 = arith.constant 0 : i32
    %0 = arith.cmpi eq, %arg1, %c0_i32 : i32
    %1 = arith.extui %0 : i1 to i32
    %c0_i32_0 = arith.constant 0 : i32
    %2 = arith.cmpi ne, %1, %c0_i32_0 : i32
    scf.if %2 {
      %cst_10 = arith.constant 0.000000e+00 : f32
      %12 = vector.broadcast %cst_10 : f32 to vector<16x32xf32>
      %c0_11 = arith.constant 0 : index
      %c0_12 = arith.constant 0 : index
      %13 = vector.load %arg9[%c0_11, %c0_12] : memref<16x32xf32, #tpu.memory_space<vmem>>, vector<16x32xf32>
      tpu.vector_store %arg9[%c0_11, %c0_12], %12 {strides = array<i32>} : memref<16x32xf32, #tpu.memory_space<vmem>>, vector<16x32xf32>,
    } else {
    }
    %c0 = arith.constant 0 : index
    %c0_1 = arith.constant 0 : index
    %3 = vector.load %arg9[%c0, %c0_1] : memref<16x32xf32, #tpu.memory_space<vmem>>, vector<16x32xf32>
    %c0_2 = arith.constant 0 : index
    %c0_3 = arith.constant 0 : index
    %4 = vector.load %arg2[%c0_2, %c0_3] : memref<16x32xbf16, #tpu.memory_space<vmem>>, vector<16x32xbf16>
    %c0_4 = arith.constant 0 : index
    %c0_5 = arith.constant 0 : index
    %5 = vector.load %arg3[%c0_4, %c0_5] : memref<32x32xbf16, #tpu.memory_space<vmem>>, vector<32x32xbf16>
    %cst = arith.constant dense<0.000000e+00> : vector<16x32xf32>
    %6 = tpu.matmul %4, %5, %cst {dimension_numbers = #tpu.dot_dimension_numbers<[1], [0], [0], [1], [0, 0, 1, 1], [], []>} : vector<16x32xbf16>, vector<32x32xbf16>, vector<16x32xf32> -> vector<16x32xf32>
    %7 = arith.addf %3, %6 : vector<16x32xf32>
    %c0_6 = arith.constant 0 : index
    %c0_7 = arith.constant 0 : index
    %8 = vector.load %arg9[%c0_6, %c0_7] : memref<16x32xf32, #tpu.memory_space<vmem>>, vector<16x32xf32>
    tpu.vector_store %arg9[%c0_6, %c0_7], %7 {strides = array<i32>} : memref<16x32xf32, #tpu.memory_space<vmem>>, vector<16x32xf32>,
    %c0_i32_8 = arith.constant 0 : i32
    %9 = arith.cmpi eq, %arg1, %c0_i32_8 : i32
    %10 = arith.extui %9 : i1 to i32
    %c0_i32_9 = arith.constant 0 : i32
    %11 = arith.cmpi ne, %10, %c0_i32_9 : i32
    scf.if %11 {
      %c0_10 = arith.constant 0 : index
      %c0_11 = arith.constant 0 : index
      %12 = vector.load %arg9[%c0_10, %c0_11] : memref<16x32xf32, #tpu.memory_space<vmem>>, vector<16x32xf32>
      %c0_12 = arith.constant 0 : index
      %c0_13 = arith.constant 0 : index
      %13 = vector.load %arg4[%c0_12, %c0_13] : memref<1x32xf32, #tpu.memory_space<vmem>>, vector<1x32xf32>
      %14 = vector.broadcast %13 : vector<1x32xf32> to vector<16x32xf32>
      %15 = arith.addf %12, %14 : vector<16x32xf32>
      %c0_14 = arith.constant 0 : index
      %c0_15 = arith.constant 0 : index
      %16 = vector.load %arg5[%c0_14, %c0_15] : memref<16x32xbf16, #tpu.memory_space<vmem>>, vector<16x32xbf16>
      %17 = arith.extf %16 : vector<16x32xbf16> to vector<16x32xf32>
      %18 = arith.addf %15, %17 : vector<16x32xf32>
      %cst_16 = arith.constant dense<0.000000e+00> : vector<16xf32>
      %19 = vector.multi_reduction <add>, %18, %cst_16 [1] : vector<16x32xf32> to vector<16xf32>
      %20 = vector.shape_cast %19 : vector<16xf32> to vector<16x1xf32>
      %cst_17 = arith.constant 3.200000e+01 : f32
      %21 = vector.broadcast %cst_17 : f32 to vector<16x1xf32>
      %22 = arith.divf %20, %21 : vector<16x1xf32>
      %23 = vector.broadcast %22 : vector<16x1xf32> to vector<16x32xf32>
      %24 = arith.subf %18, %23 : vector<16x32xf32>
      %25 = arith.mulf %24, %24 : vector<16x32xf32>
      %cst_18 = arith.constant dense<0.000000e+00> : vector<16xf32>
      %26 = vector.multi_reduction <add>, %25, %cst_18 [1] : vector<16x32xf32> to vector<16xf32>
      %27 = vector.shape_cast %26 : vector<16xf32> to vector<16x1xf32>
      %cst_19 = arith.constant 3.200000e+01 : f32
      %28 = vector.broadcast %cst_19 : f32 to vector<16x1xf32>
      %29 = arith.divf %27, %28 : vector<16x1xf32>
      %30 = vector.broadcast %22 : vector<16x1xf32> to vector<16x32xf32>
      %31 = arith.subf %18, %30 : vector<16x32xf32>
      %cst_20 = arith.constant 9.99999974E-6 : f32
      %32 = vector.broadcast %cst_20 : f32 to vector<16x1xf32>
      %33 = arith.addf %29, %32 : vector<16x1xf32>
      %34 = math.rsqrt %33 : vector<16x1xf32>
      %35 = vector.broadcast %34 : vector<16x1xf32> to vector<16x32xf32>
      %36 = arith.mulf %31, %35 : vector<16x32xf32>
      %c0_21 = arith.constant 0 : index
      %c0_22 = arith.constant 0 : index
      %37 = vector.load %arg6[%c0_21, %c0_22] : memref<1x32xf32, #tpu.memory_space<vmem>>, vector<1x32xf32>
      %38 = vector.broadcast %37 : vector<1x32xf32> to vector<16x32xf32>
      %39 = arith.mulf %36, %38 : vector<16x32xf32>
      %c0_23 = arith.constant 0 : index
      %c0_24 = arith.constant 0 : index
      %40 = vector.load %arg7[%c0_23, %c0_24] : memref<1x32xf32, #tpu.memory_space<vmem>>, vector<1x32xf32>
      %41 = vector.broadcast %40 : vector<1x32xf32> to vector<16x32xf32>
      %42 = arith.addf %39, %41 : vector<16x32xf32>
      %43 = arith.truncf %42 : vector<16x32xf32> to vector<16x32xbf16>
      %c0_25 = arith.constant 0 : index
      %c0_26 = arith.constant 0 : index
      %44 = vector.load %arg8[%c0_25, %c0_26] : memref<16x32xbf16, #tpu.memory_space<vmem>>, vector<16x32xbf16>
      tpu.vector_store %arg8[%c0_25, %c0_26], %43 {strides = array<i32>} : memref<16x32xbf16, #tpu.memory_space<vmem>>, vector<16x32xbf16>,
    } else {
    }
    return
  }
  func.func @transform_0(%arg0: i32, %arg1: i32) -> (i32, i32) {
    %c0_i32 = arith.constant 0 : i32
    return %arg0, %arg1 : i32, i32
  }
  func.func @transform_1(%arg0: i32, %arg1: i32) -> (i32, i32) {
    %c0_i32 = arith.constant 0 : i32
    %c0_i32_0 = arith.constant 0 : i32
    return %arg1, %c0_i32 : i32, i32
  }
  func.func @transform_2(%arg0: i32, %arg1: i32) -> (i32, i32) {
    %c0_i32 = arith.constant 0 : i32
    %c0_i32_0 = arith.constant 0 : i32
    %c0_i32_1 = arith.constant 0 : i32
    return %c0_i32, %c0_i32_0 : i32, i32
  }
  func.func @transform_3(%arg0: i32, %arg1: i32) -> (i32, i32) {
    %c0_i32 = arith.constant 0 : i32
    %c0_i32_0 = arith.constant 0 : i32
    return %arg0, %c0_i32 : i32, i32
  }
  func.func @transform_4(%arg0: i32, %arg1: i32) -> (i32, i32) {
    %c0_i32 = arith.constant 0 : i32
    %c0_i32_0 = arith.constant 0 : i32
    %c0_i32_1 = arith.constant 0 : i32
    return %c0_i32, %c0_i32_0 : i32, i32
  }
  func.func @transform_5(%arg0: i32, %arg1: i32) -> (i32, i32) {
    %c0_i32 = arith.constant 0 : i32
    %c0_i32_0 = arith.constant 0 : i32
    %c0_i32_1 = arith.constant 0 : i32
    return %c0_i32, %c0_i32_0 : i32, i32
  }
  func.func @transform_6(%arg0: i32, %arg1: i32) -> (i32, i32) {
    %c0_i32 = arith.constant 0 : i32
    %c0_i32_0 = arith.constant 0 : i32
    return %arg0, %c0_i32 : i32, i32
  }
}

module attributes {stable_mosaic.version = 11 : i64} {
  func.func @_attn_kernel(%arg0: i32, %arg1: i32, %arg2: i32, %arg3: memref<1x8x32xbf16, #tpu.memory_space<vmem>>, %arg4: memref<1x8x32xbf16, #tpu.memory_space<vmem>>, %arg5: memref<1x8x32xbf16, #tpu.memory_space<vmem>>, %arg6: memref<1x8x32xbf16, #tpu.memory_space<vmem>>, %arg7: memref<4x8x1xf32, #tpu.memory_space<vmem>>, %arg8: memref<4x8x1xf32, #tpu.memory_space<vmem>>, %arg9: memref<4x8x8xf32, #tpu.memory_space<vmem>>) attributes {dimension_semantics = [#tpu.dimension_semantics<parallel>, #tpu.dimension_semantics<parallel>, #tpu.dimension_semantics<arbitrary>], iteration_bounds = array<i64: 2, 1, 1>, scalar_prefetch = 0 : i64, scratch_operands = 3 : i64, tpu.core_type = #tpu.core_type<tc>, window_params = [{transform_indices = @transform_0, window_bounds = array<i64: 1, 8, 32>}, {transform_indices = @transform_1, window_bounds = array<i64: 1, 8, 32>}, {transform_indices = @transform_2, window_bounds = array<i64: 1, 8, 32>}, {transform_indices = @transform_3, window_bounds = array<i64: 1, 8, 32>}]} {
    %c0_i32 = arith.constant 0 : i32
    %0 = arith.cmpi eq, %arg2, %c0_i32 : i32
    %1 = arith.extui %0 : i1 to i32
    %c0_i32_0 = arith.constant 0 : i32
    %2 = arith.cmpi ne, %1, %c0_i32_0 : i32
    scf.if %2 {
      %cst_96 = arith.constant -1.000000e+30 : f32
      %162 = vector.broadcast %cst_96 : f32 to vector<4x8x1xf32>
      %c0_97 = arith.constant 0 : index
      %c0_98 = arith.constant 0 : index
      %c0_99 = arith.constant 0 : index
      %163 = vector.load %arg7[%c0_97, %c0_98, %c0_99] : memref<4x8x1xf32, #tpu.memory_space<vmem>>, vector<4x8x1xf32>
      tpu.vector_store %arg7[%c0_97, %c0_98, %c0_99], %162 {strides = array<i32>} : memref<4x8x1xf32, #tpu.memory_space<vmem>>, vector<4x8x1xf32>,
      %cst_100 = arith.constant 0.000000e+00 : f32
      %164 = vector.broadcast %cst_100 : f32 to vector<4x8x1xf32>
      %c0_101 = arith.constant 0 : index
      %c0_102 = arith.constant 0 : index
      %c0_103 = arith.constant 0 : index
      %165 = vector.load %arg8[%c0_101, %c0_102, %c0_103] : memref<4x8x1xf32, #tpu.memory_space<vmem>>, vector<4x8x1xf32>
      tpu.vector_store %arg8[%c0_101, %c0_102, %c0_103], %164 {strides = array<i32>} : memref<4x8x1xf32, #tpu.memory_space<vmem>>, vector<4x8x1xf32>,
      %cst_104 = arith.constant 0.000000e+00 : f32
      %166 = vector.broadcast %cst_104 : f32 to vector<4x8x8xf32>
      %c0_105 = arith.constant 0 : index
      %c0_106 = arith.constant 0 : index
      %c0_107 = arith.constant 0 : index
      %167 = vector.load %arg9[%c0_105, %c0_106, %c0_107] : memref<4x8x8xf32, #tpu.memory_space<vmem>>, vector<4x8x8xf32>
      tpu.vector_store %arg9[%c0_105, %c0_106, %c0_107], %166 {strides = array<i32>} : memref<4x8x8xf32, #tpu.memory_space<vmem>>, vector<4x8x8xf32>,
    } else {
    }
    %c0 = arith.constant 0 : index
    %c0_1 = arith.constant 0 : index
    %c0_2 = arith.constant 0 : index
    %3 = vector.load %arg3[%c0, %c0_1, %c0_2] : memref<1x8x32xbf16, #tpu.memory_space<vmem>>, vector<1x8x32xbf16>
    %4 = vector.shape_cast %3 : vector<1x8x32xbf16> to vector<8x32xbf16>
    %cst = arith.constant 3.535160e-01 : bf16
    %5 = vector.broadcast %cst : bf16 to vector<8x32xbf16>
    %6 = arith.mulf %4, %5 : vector<8x32xbf16>
    %c0_3 = arith.constant 0 : index
    %c0_4 = arith.constant 0 : index
    %c0_5 = arith.constant 0 : index
    %7 = vector.load %arg4[%c0_3, %c0_4, %c0_5] : memref<1x8x32xbf16, #tpu.memory_space<vmem>>, vector<1x8x32xbf16>
    %8 = vector.shape_cast %7 : vector<1x8x32xbf16> to vector<8x32xbf16>
    %c0_6 = arith.constant 0 : index
    %c0_7 = arith.constant 0 : index
    %c0_8 = arith.constant 0 : index
    %9 = vector.load %arg5[%c0_6, %c0_7, %c0_8] : memref<1x8x32xbf16, #tpu.memory_space<vmem>>, vector<1x8x32xbf16>
    %10 = vector.shape_cast %9 : vector<1x8x32xbf16> to vector<8x32xbf16>
    %11 = vector.extract_strided_slice %6 {offsets = [0, 0], sizes = [8, 8], strides = [1, 1]} : vector<8x32xbf16> to vector<8x8xbf16>
    %12 = vector.extract_strided_slice %8 {offsets = [0, 0], sizes = [8, 8], strides = [1, 1]} : vector<8x32xbf16> to vector<8x8xbf16>
    %13 = vector.extract_strided_slice %10 {offsets = [0, 0], sizes = [8, 8], strides = [1, 1]} : vector<8x32xbf16> to vector<8x8xbf16>
    %14 = tpu.transpose %12, [1, 0] : vector<8x8xbf16> -> vector<8x8xbf16>
    %cst_9 = arith.constant dense<0.000000e+00> : vector<8x8xf32>
    %15 = tpu.matmul %11, %14, %cst_9 {dimension_numbers = #tpu.dot_dimension_numbers<[1], [0], [0], [1], [0, 0, 1, 1], [], []>} : vector<8x8xbf16>, vector<8x8xbf16>, vector<8x8xf32> -> vector<8x8xf32>
    %c0_10 = arith.constant 0 : index
    %c0_11 = arith.constant 0 : index
    %c0_12 = arith.constant 0 : index
    %16 = vector.load %arg7[%c0_10, %c0_11, %c0_12] : memref<4x8x1xf32, #tpu.memory_space<vmem>>, vector<1x8x1xf32>
    %17 = vector.shape_cast %16 : vector<1x8x1xf32> to vector<8x1xf32>
    %cst_13 = arith.constant dense<0xFF800000> : vector<8xf32>
    %18 = vector.multi_reduction <maximumf>, %15, %cst_13 [1] : vector<8x8xf32> to vector<8xf32>
    %19 = vector.shape_cast %18 : vector<8xf32> to vector<8x1xf32>
    %20 = arith.maximumf %17, %19 : vector<8x1xf32>
    %21 = arith.subf %17, %20 : vector<8x1xf32>
    %22 = math.exp %21 : vector<8x1xf32>
    %23 = vector.broadcast %20 : vector<8x1xf32> to vector<8x8xf32>
    %24 = arith.subf %15, %23 : vector<8x8xf32>
    %25 = math.exp %24 : vector<8x8xf32>
    %c0_14 = arith.constant 0 : index
    %c0_15 = arith.constant 0 : index
    %c0_16 = arith.constant 0 : index
    %26 = vector.load %arg8[%c0_14, %c0_15, %c0_16] : memref<4x8x1xf32, #tpu.memory_space<vmem>>, vector<1x8x1xf32>
    %27 = vector.shape_cast %26 : vector<1x8x1xf32> to vector<8x1xf32>
    %28 = arith.mulf %22, %27 : vector<8x1xf32>
    %cst_17 = arith.constant dense<0.000000e+00> : vector<8xf32>
    %29 = vector.multi_reduction <add>, %25, %cst_17 [1] : vector<8x8xf32> to vector<8xf32>
    %30 = vector.shape_cast %29 : vector<8xf32> to vector<8x1xf32>
    %31 = arith.addf %28, %30 : vector<8x1xf32>
    %c0_18 = arith.constant 0 : index
    %c0_19 = arith.constant 0 : index
    %c0_20 = arith.constant 0 : index
    %32 = vector.load %arg8[%c0_18, %c0_19, %c0_20] : memref<4x8x1xf32, #tpu.memory_space<vmem>>, vector<1x8x1xf32>
    %33 = vector.shape_cast %32 : vector<1x8x1xf32> to vector<8x1xf32>
    %34 = vector.shape_cast %31 : vector<8x1xf32> to vector<1x8x1xf32>
    tpu.vector_store %arg8[%c0_18, %c0_19, %c0_20], %34 {strides = array<i32>} : memref<4x8x1xf32, #tpu.memory_space<vmem>>, vector<1x8x1xf32>,
    %c0_21 = arith.constant 0 : index
    %c0_22 = arith.constant 0 : index
    %c0_23 = arith.constant 0 : index
    %35 = vector.load %arg9[%c0_21, %c0_22, %c0_23] : memref<4x8x8xf32, #tpu.memory_space<vmem>>, vector<1x8x8xf32>
    %36 = vector.shape_cast %35 : vector<1x8x8xf32> to vector<8x8xf32>
    %37 = vector.broadcast %22 : vector<8x1xf32> to vector<8x8xf32>
    %38 = arith.mulf %37, %36 : vector<8x8xf32>
    %39 = arith.truncf %25 : vector<8x8xf32> to vector<8x8xbf16>
    %cst_24 = arith.constant dense<0.000000e+00> : vector<8x8xf32>
    %40 = tpu.matmul %39, %13, %cst_24 {dimension_numbers = #tpu.dot_dimension_numbers<[1], [0], [0], [1], [0, 0, 1, 1], [], []>} : vector<8x8xbf16>, vector<8x8xbf16>, vector<8x8xf32> -> vector<8x8xf32>
    %41 = arith.addf %38, %40 : vector<8x8xf32>
    %c0_25 = arith.constant 0 : index
    %c0_26 = arith.constant 0 : index
    %c0_27 = arith.constant 0 : index
    %42 = vector.load %arg9[%c0_25, %c0_26, %c0_27] : memref<4x8x8xf32, #tpu.memory_space<vmem>>, vector<1x8x8xf32>
    %43 = vector.shape_cast %42 : vector<1x8x8xf32> to vector<8x8xf32>
    %44 = vector.shape_cast %41 : vector<8x8xf32> to vector<1x8x8xf32>
    tpu.vector_store %arg9[%c0_25, %c0_26, %c0_27], %44 {strides = array<i32>} : memref<4x8x8xf32, #tpu.memory_space<vmem>>, vector<1x8x8xf32>,
    %c0_28 = arith.constant 0 : index
    %c0_29 = arith.constant 0 : index
    %c0_30 = arith.constant 0 : index
    %45 = vector.load %arg7[%c0_28, %c0_29, %c0_30] : memref<4x8x1xf32, #tpu.memory_space<vmem>>, vector<1x8x1xf32>
    %46 = vector.shape_cast %45 : vector<1x8x1xf32> to vector<8x1xf32>
    %47 = vector.shape_cast %20 : vector<8x1xf32> to vector<1x8x1xf32>
    tpu.vector_store %arg7[%c0_28, %c0_29, %c0_30], %47 {strides = array<i32>} : memref<4x8x1xf32, #tpu.memory_space<vmem>>, vector<1x8x1xf32>,
    %48 = vector.extract_strided_slice %6 {offsets = [0, 8], sizes = [8, 8], strides = [1, 1]} : vector<8x32xbf16> to vector<8x8xbf16>
    %49 = vector.extract_strided_slice %8 {offsets = [0, 8], sizes = [8, 8], strides = [1, 1]} : vector<8x32xbf16> to vector<8x8xbf16>
    %50 = vector.extract_strided_slice %10 {offsets = [0, 8], sizes = [8, 8], strides = [1, 1]} : vector<8x32xbf16> to vector<8x8xbf16>
    %51 = tpu.transpose %49, [1, 0] : vector<8x8xbf16> -> vector<8x8xbf16>
    %cst_31 = arith.constant dense<0.000000e+00> : vector<8x8xf32>
    %52 = tpu.matmul %48, %51, %cst_31 {dimension_numbers = #tpu.dot_dimension_numbers<[1], [0], [0], [1], [0, 0, 1, 1], [], []>} : vector<8x8xbf16>, vector<8x8xbf16>, vector<8x8xf32> -> vector<8x8xf32>
    %c1 = arith.constant 1 : index
    %c0_32 = arith.constant 0 : index
    %c0_33 = arith.constant 0 : index
    %53 = vector.load %arg7[%c1, %c0_32, %c0_33] : memref<4x8x1xf32, #tpu.memory_space<vmem>>, vector<1x8x1xf32>
    %54 = vector.shape_cast %53 : vector<1x8x1xf32> to vector<8x1xf32>
    %cst_34 = arith.constant dense<0xFF800000> : vector<8xf32>
    %55 = vector.multi_reduction <maximumf>, %52, %cst_34 [1] : vector<8x8xf32> to vector<8xf32>
    %56 = vector.shape_cast %55 : vector<8xf32> to vector<8x1xf32>
    %57 = arith.maximumf %54, %56 : vector<8x1xf32>
    %58 = arith.subf %54, %57 : vector<8x1xf32>
    %59 = math.exp %58 : vector<8x1xf32>
    %60 = vector.broadcast %57 : vector<8x1xf32> to vector<8x8xf32>
    %61 = arith.subf %52, %60 : vector<8x8xf32>
    %62 = math.exp %61 : vector<8x8xf32>
    %c1_35 = arith.constant 1 : index
    %c0_36 = arith.constant 0 : index
    %c0_37 = arith.constant 0 : index
    %63 = vector.load %arg8[%c1_35, %c0_36, %c0_37] : memref<4x8x1xf32, #tpu.memory_space<vmem>>, vector<1x8x1xf32>
    %64 = vector.shape_cast %63 : vector<1x8x1xf32> to vector<8x1xf32>
    %65 = arith.mulf %59, %64 : vector<8x1xf32>
    %cst_38 = arith.constant dense<0.000000e+00> : vector<8xf32>
    %66 = vector.multi_reduction <add>, %62, %cst_38 [1] : vector<8x8xf32> to vector<8xf32>
    %67 = vector.shape_cast %66 : vector<8xf32> to vector<8x1xf32>
    %68 = arith.addf %65, %67 : vector<8x1xf32>
    %c1_39 = arith.constant 1 : index
    %c0_40 = arith.constant 0 : index
    %c0_41 = arith.constant 0 : index
    %69 = vector.load %arg8[%c1_39, %c0_40, %c0_41] : memref<4x8x1xf32, #tpu.memory_space<vmem>>, vector<1x8x1xf32>
    %70 = vector.shape_cast %69 : vector<1x8x1xf32> to vector<8x1xf32>
    %71 = vector.shape_cast %68 : vector<8x1xf32> to vector<1x8x1xf32>
    tpu.vector_store %arg8[%c1_39, %c0_40, %c0_41], %71 {strides = array<i32>} : memref<4x8x1xf32, #tpu.memory_space<vmem>>, vector<1x8x1xf32>,
    %c1_42 = arith.constant 1 : index
    %c0_43 = arith.constant 0 : index
    %c0_44 = arith.constant 0 : index
    %72 = vector.load %arg9[%c1_42, %c0_43, %c0_44] : memref<4x8x8xf32, #tpu.memory_space<vmem>>, vector<1x8x8xf32>
    %73 = vector.shape_cast %72 : vector<1x8x8xf32> to vector<8x8xf32>
    %74 = vector.broadcast %59 : vector<8x1xf32> to vector<8x8xf32>
    %75 = arith.mulf %74, %73 : vector<8x8xf32>
    %76 = arith.truncf %62 : vector<8x8xf32> to vector<8x8xbf16>
    %cst_45 = arith.constant dense<0.000000e+00> : vector<8x8xf32>
    %77 = tpu.matmul %76, %50, %cst_45 {dimension_numbers = #tpu.dot_dimension_numbers<[1], [0], [0], [1], [0, 0, 1, 1], [], []>} : vector<8x8xbf16>, vector<8x8xbf16>, vector<8x8xf32> -> vector<8x8xf32>
    %78 = arith.addf %75, %77 : vector<8x8xf32>
    %c1_46 = arith.constant 1 : index
    %c0_47 = arith.constant 0 : index
    %c0_48 = arith.constant 0 : index
    %79 = vector.load %arg9[%c1_46, %c0_47, %c0_48] : memref<4x8x8xf32, #tpu.memory_space<vmem>>, vector<1x8x8xf32>
    %80 = vector.shape_cast %79 : vector<1x8x8xf32> to vector<8x8xf32>
    %81 = vector.shape_cast %78 : vector<8x8xf32> to vector<1x8x8xf32>
    tpu.vector_store %arg9[%c1_46, %c0_47, %c0_48], %81 {strides = array<i32>} : memref<4x8x8xf32, #tpu.memory_space<vmem>>, vector<1x8x8xf32>,
    %c1_49 = arith.constant 1 : index
    %c0_50 = arith.constant 0 : index
    %c0_51 = arith.constant 0 : index
    %82 = vector.load %arg7[%c1_49, %c0_50, %c0_51] : memref<4x8x1xf32, #tpu.memory_space<vmem>>, vector<1x8x1xf32>
    %83 = vector.shape_cast %82 : vector<1x8x1xf32> to vector<8x1xf32>
    %84 = vector.shape_cast %57 : vector<8x1xf32> to vector<1x8x1xf32>
    tpu.vector_store %arg7[%c1_49, %c0_50, %c0_51], %84 {strides = array<i32>} : memref<4x8x1xf32, #tpu.memory_space<vmem>>, vector<1x8x1xf32>,
    %85 = vector.extract_strided_slice %6 {offsets = [0, 16], sizes = [8, 8], strides = [1, 1]} : vector<8x32xbf16> to vector<8x8xbf16>
    %86 = vector.extract_strided_slice %8 {offsets = [0, 16], sizes = [8, 8], strides = [1, 1]} : vector<8x32xbf16> to vector<8x8xbf16>
    %87 = vector.extract_strided_slice %10 {offsets = [0, 16], sizes = [8, 8], strides = [1, 1]} : vector<8x32xbf16> to vector<8x8xbf16>
    %88 = tpu.transpose %86, [1, 0] : vector<8x8xbf16> -> vector<8x8xbf16>
    %cst_52 = arith.constant dense<0.000000e+00> : vector<8x8xf32>
    %89 = tpu.matmul %85, %88, %cst_52 {dimension_numbers = #tpu.dot_dimension_numbers<[1], [0], [0], [1], [0, 0, 1, 1], [], []>} : vector<8x8xbf16>, vector<8x8xbf16>, vector<8x8xf32> -> vector<8x8xf32>
    %c2 = arith.constant 2 : index
    %c0_53 = arith.constant 0 : index
    %c0_54 = arith.constant 0 : index
    %90 = vector.load %arg7[%c2, %c0_53, %c0_54] : memref<4x8x1xf32, #tpu.memory_space<vmem>>, vector<1x8x1xf32>
    %91 = vector.shape_cast %90 : vector<1x8x1xf32> to vector<8x1xf32>
    %cst_55 = arith.constant dense<0xFF800000> : vector<8xf32>
    %92 = vector.multi_reduction <maximumf>, %89, %cst_55 [1] : vector<8x8xf32> to vector<8xf32>
    %93 = vector.shape_cast %92 : vector<8xf32> to vector<8x1xf32>
    %94 = arith.maximumf %91, %93 : vector<8x1xf32>
    %95 = arith.subf %91, %94 : vector<8x1xf32>
    %96 = math.exp %95 : vector<8x1xf32>
    %97 = vector.broadcast %94 : vector<8x1xf32> to vector<8x8xf32>
    %98 = arith.subf %89, %97 : vector<8x8xf32>
    %99 = math.exp %98 : vector<8x8xf32>
    %c2_56 = arith.constant 2 : index
    %c0_57 = arith.constant 0 : index
    %c0_58 = arith.constant 0 : index
    %100 = vector.load %arg8[%c2_56, %c0_57, %c0_58] : memref<4x8x1xf32, #tpu.memory_space<vmem>>, vector<1x8x1xf32>
    %101 = vector.shape_cast %100 : vector<1x8x1xf32> to vector<8x1xf32>
    %102 = arith.mulf %96, %101 : vector<8x1xf32>
    %cst_59 = arith.constant dense<0.000000e+00> : vector<8xf32>
    %103 = vector.multi_reduction <add>, %99, %cst_59 [1] : vector<8x8xf32> to vector<8xf32>
    %104 = vector.shape_cast %103 : vector<8xf32> to vector<8x1xf32>
    %105 = arith.addf %102, %104 : vector<8x1xf32>
    %c2_60 = arith.constant 2 : index
    %c0_61 = arith.constant 0 : index
    %c0_62 = arith.constant 0 : index
    %106 = vector.load %arg8[%c2_60, %c0_61, %c0_62] : memref<4x8x1xf32, #tpu.memory_space<vmem>>, vector<1x8x1xf32>
    %107 = vector.shape_cast %106 : vector<1x8x1xf32> to vector<8x1xf32>
    %108 = vector.shape_cast %105 : vector<8x1xf32> to vector<1x8x1xf32>
    tpu.vector_store %arg8[%c2_60, %c0_61, %c0_62], %108 {strides = array<i32>} : memref<4x8x1xf32, #tpu.memory_space<vmem>>, vector<1x8x1xf32>,
    %c2_63 = arith.constant 2 : index
    %c0_64 = arith.constant 0 : index
    %c0_65 = arith.constant 0 : index
    %109 = vector.load %arg9[%c2_63, %c0_64, %c0_65] : memref<4x8x8xf32, #tpu.memory_space<vmem>>, vector<1x8x8xf32>
    %110 = vector.shape_cast %109 : vector<1x8x8xf32> to vector<8x8xf32>
    %111 = vector.broadcast %96 : vector<8x1xf32> to vector<8x8xf32>
    %112 = arith.mulf %111, %110 : vector<8x8xf32>
    %113 = arith.truncf %99 : vector<8x8xf32> to vector<8x8xbf16>
    %cst_66 = arith.constant dense<0.000000e+00> : vector<8x8xf32>
    %114 = tpu.matmul %113, %87, %cst_66 {dimension_numbers = #tpu.dot_dimension_numbers<[1], [0], [0], [1], [0, 0, 1, 1], [], []>} : vector<8x8xbf16>, vector<8x8xbf16>, vector<8x8xf32> -> vector<8x8xf32>
    %115 = arith.addf %112, %114 : vector<8x8xf32>
    %c2_67 = arith.constant 2 : index
    %c0_68 = arith.constant 0 : index
    %c0_69 = arith.constant 0 : index
    %116 = vector.load %arg9[%c2_67, %c0_68, %c0_69] : memref<4x8x8xf32, #tpu.memory_space<vmem>>, vector<1x8x8xf32>
    %117 = vector.shape_cast %116 : vector<1x8x8xf32> to vector<8x8xf32>
    %118 = vector.shape_cast %115 : vector<8x8xf32> to vector<1x8x8xf32>
    tpu.vector_store %arg9[%c2_67, %c0_68, %c0_69], %118 {strides = array<i32>} : memref<4x8x8xf32, #tpu.memory_space<vmem>>, vector<1x8x8xf32>,
    %c2_70 = arith.constant 2 : index
    %c0_71 = arith.constant 0 : index
    %c0_72 = arith.constant 0 : index
    %119 = vector.load %arg7[%c2_70, %c0_71, %c0_72] : memref<4x8x1xf32, #tpu.memory_space<vmem>>, vector<1x8x1xf32>
    %120 = vector.shape_cast %119 : vector<1x8x1xf32> to vector<8x1xf32>
    %121 = vector.shape_cast %94 : vector<8x1xf32> to vector<1x8x1xf32>
    tpu.vector_store %arg7[%c2_70, %c0_71, %c0_72], %121 {strides = array<i32>} : memref<4x8x1xf32, #tpu.memory_space<vmem>>, vector<1x8x1xf32>,
    %122 = vector.extract_strided_slice %6 {offsets = [0, 24], sizes = [8, 8], strides = [1, 1]} : vector<8x32xbf16> to vector<8x8xbf16>
    %123 = vector.extract_strided_slice %8 {offsets = [0, 24], sizes = [8, 8], strides = [1, 1]} : vector<8x32xbf16> to vector<8x8xbf16>
    %124 = vector.extract_strided_slice %10 {offsets = [0, 24], sizes = [8, 8], strides = [1, 1]} : vector<8x32xbf16> to vector<8x8xbf16>
    %125 = tpu.transpose %123, [1, 0] : vector<8x8xbf16> -> vector<8x8xbf16>
    %cst_73 = arith.constant dense<0.000000e+00> : vector<8x8xf32>
    %126 = tpu.matmul %122, %125, %cst_73 {dimension_numbers = #tpu.dot_dimension_numbers<[1], [0], [0], [1], [0, 0, 1, 1], [], []>} : vector<8x8xbf16>, vector<8x8xbf16>, vector<8x8xf32> -> vector<8x8xf32>
    %c3 = arith.constant 3 : index
    %c0_74 = arith.constant 0 : index
    %c0_75 = arith.constant 0 : index
    %127 = vector.load %arg7[%c3, %c0_74, %c0_75] : memref<4x8x1xf32, #tpu.memory_space<vmem>>, vector<1x8x1xf32>
    %128 = vector.shape_cast %127 : vector<1x8x1xf32> to vector<8x1xf32>
    %cst_76 = arith.constant dense<0xFF800000> : vector<8xf32>
    %129 = vector.multi_reduction <maximumf>, %126, %cst_76 [1] : vector<8x8xf32> to vector<8xf32>
    %130 = vector.shape_cast %129 : vector<8xf32> to vector<8x1xf32>
    %131 = arith.maximumf %128, %130 : vector<8x1xf32>
    %132 = arith.subf %128, %131 : vector<8x1xf32>
    %133 = math.exp %132 : vector<8x1xf32>
    %134 = vector.broadcast %131 : vector<8x1xf32> to vector<8x8xf32>
    %135 = arith.subf %126, %134 : vector<8x8xf32>
    %136 = math.exp %135 : vector<8x8xf32>
    %c3_77 = arith.constant 3 : index
    %c0_78 = arith.constant 0 : index
    %c0_79 = arith.constant 0 : index
    %137 = vector.load %arg8[%c3_77, %c0_78, %c0_79] : memref<4x8x1xf32, #tpu.memory_space<vmem>>, vector<1x8x1xf32>
    %138 = vector.shape_cast %137 : vector<1x8x1xf32> to vector<8x1xf32>
    %139 = arith.mulf %133, %138 : vector<8x1xf32>
    %cst_80 = arith.constant dense<0.000000e+00> : vector<8xf32>
    %140 = vector.multi_reduction <add>, %136, %cst_80 [1] : vector<8x8xf32> to vector<8xf32>
    %141 = vector.shape_cast %140 : vector<8xf32> to vector<8x1xf32>
    %142 = arith.addf %139, %141 : vector<8x1xf32>
    %c3_81 = arith.constant 3 : index
    %c0_82 = arith.constant 0 : index
    %c0_83 = arith.constant 0 : index
    %143 = vector.load %arg8[%c3_81, %c0_82, %c0_83] : memref<4x8x1xf32, #tpu.memory_space<vmem>>, vector<1x8x1xf32>
    %144 = vector.shape_cast %143 : vector<1x8x1xf32> to vector<8x1xf32>
    %145 = vector.shape_cast %142 : vector<8x1xf32> to vector<1x8x1xf32>
    tpu.vector_store %arg8[%c3_81, %c0_82, %c0_83], %145 {strides = array<i32>} : memref<4x8x1xf32, #tpu.memory_space<vmem>>, vector<1x8x1xf32>,
    %c3_84 = arith.constant 3 : index
    %c0_85 = arith.constant 0 : index
    %c0_86 = arith.constant 0 : index
    %146 = vector.load %arg9[%c3_84, %c0_85, %c0_86] : memref<4x8x8xf32, #tpu.memory_space<vmem>>, vector<1x8x8xf32>
    %147 = vector.shape_cast %146 : vector<1x8x8xf32> to vector<8x8xf32>
    %148 = vector.broadcast %133 : vector<8x1xf32> to vector<8x8xf32>
    %149 = arith.mulf %148, %147 : vector<8x8xf32>
    %150 = arith.truncf %136 : vector<8x8xf32> to vector<8x8xbf16>
    %cst_87 = arith.constant dense<0.000000e+00> : vector<8x8xf32>
    %151 = tpu.matmul %150, %124, %cst_87 {dimension_numbers = #tpu.dot_dimension_numbers<[1], [0], [0], [1], [0, 0, 1, 1], [], []>} : vector<8x8xbf16>, vector<8x8xbf16>, vector<8x8xf32> -> vector<8x8xf32>
    %152 = arith.addf %149, %151 : vector<8x8xf32>
    %c3_88 = arith.constant 3 : index
    %c0_89 = arith.constant 0 : index
    %c0_90 = arith.constant 0 : index
    %153 = vector.load %arg9[%c3_88, %c0_89, %c0_90] : memref<4x8x8xf32, #tpu.memory_space<vmem>>, vector<1x8x8xf32>
    %154 = vector.shape_cast %153 : vector<1x8x8xf32> to vector<8x8xf32>
    %155 = vector.shape_cast %152 : vector<8x8xf32> to vector<1x8x8xf32>
    tpu.vector_store %arg9[%c3_88, %c0_89, %c0_90], %155 {strides = array<i32>} : memref<4x8x8xf32, #tpu.memory_space<vmem>>, vector<1x8x8xf32>,
    %c3_91 = arith.constant 3 : index
    %c0_92 = arith.constant 0 : index
    %c0_93 = arith.constant 0 : index
    %156 = vector.load %arg7[%c3_91, %c0_92, %c0_93] : memref<4x8x1xf32, #tpu.memory_space<vmem>>, vector<1x8x1xf32>
    %157 = vector.shape_cast %156 : vector<1x8x1xf32> to vector<8x1xf32>
    %158 = vector.shape_cast %131 : vector<8x1xf32> to vector<1x8x1xf32>
    tpu.vector_store %arg7[%c3_91, %c0_92, %c0_93], %158 {strides = array<i32>} : memref<4x8x1xf32, #tpu.memory_space<vmem>>, vector<1x8x1xf32>,
    %c0_i32_94 = arith.constant 0 : i32
    %159 = arith.cmpi eq, %arg2, %c0_i32_94 : i32
    %160 = arith.extui %159 : i1 to i32
    %c0_i32_95 = arith.constant 0 : i32
    %161 = arith.cmpi ne, %160, %c0_i32_95 : i32
    scf.if %161 {
      %c0_96 = arith.constant 0 : index
      %c0_97 = arith.constant 0 : index
      %c0_98 = arith.constant 0 : index
      %162 = vector.load %arg9[%c0_96, %c0_97, %c0_98] : memref<4x8x8xf32, #tpu.memory_space<vmem>>, vector<1x8x8xf32>
      %163 = vector.shape_cast %162 : vector<1x8x8xf32> to vector<8x8xf32>
      %c0_99 = arith.constant 0 : index
      %c0_100 = arith.constant 0 : index
      %c0_101 = arith.constant 0 : index
      %164 = vector.load %arg8[%c0_99, %c0_100, %c0_101] : memref<4x8x1xf32, #tpu.memory_space<vmem>>, vector<1x8x1xf32>
      %165 = vector.shape_cast %164 : vector<1x8x1xf32> to vector<8x1xf32>
      %166 = tpu.reciprocal %165 {approx = true} : vector<8x1xf32> -> vector<8x1xf32>
      %167 = vector.broadcast %166 : vector<8x1xf32> to vector<8x8xf32>
      %168 = arith.mulf %163, %167 : vector<8x8xf32>
      %c1_102 = arith.constant 1 : index
      %c0_103 = arith.constant 0 : index
      %c0_104 = arith.constant 0 : index
      %169 = vector.load %arg9[%c1_102, %c0_103, %c0_104] : memref<4x8x8xf32, #tpu.memory_space<vmem>>, vector<1x8x8xf32>
      %170 = vector.shape_cast %169 : vector<1x8x8xf32> to vector<8x8xf32>
      %c1_105 = arith.constant 1 : index
      %c0_106 = arith.constant 0 : index
      %c0_107 = arith.constant 0 : index
      %171 = vector.load %arg8[%c1_105, %c0_106, %c0_107] : memref<4x8x1xf32, #tpu.memory_space<vmem>>, vector<1x8x1xf32>
      %172 = vector.shape_cast %171 : vector<1x8x1xf32> to vector<8x1xf32>
      %173 = tpu.reciprocal %172 {approx = true} : vector<8x1xf32> -> vector<8x1xf32>
      %174 = vector.broadcast %173 : vector<8x1xf32> to vector<8x8xf32>
      %175 = arith.mulf %170, %174 : vector<8x8xf32>
      %c2_108 = arith.constant 2 : index
      %c0_109 = arith.constant 0 : index
      %c0_110 = arith.constant 0 : index
      %176 = vector.load %arg9[%c2_108, %c0_109, %c0_110] : memref<4x8x8xf32, #tpu.memory_space<vmem>>, vector<1x8x8xf32>
      %177 = vector.shape_cast %176 : vector<1x8x8xf32> to vector<8x8xf32>
      %c2_111 = arith.constant 2 : index
      %c0_112 = arith.constant 0 : index
      %c0_113 = arith.constant 0 : index
      %178 = vector.load %arg8[%c2_111, %c0_112, %c0_113] : memref<4x8x1xf32, #tpu.memory_space<vmem>>, vector<1x8x1xf32>
      %179 = vector.shape_cast %178 : vector<1x8x1xf32> to vector<8x1xf32>
      %180 = tpu.reciprocal %179 {approx = true} : vector<8x1xf32> -> vector<8x1xf32>
      %181 = vector.broadcast %180 : vector<8x1xf32> to vector<8x8xf32>
      %182 = arith.mulf %177, %181 : vector<8x8xf32>
      %c3_114 = arith.constant 3 : index
      %c0_115 = arith.constant 0 : index
      %c0_116 = arith.constant 0 : index
      %183 = vector.load %arg9[%c3_114, %c0_115, %c0_116] : memref<4x8x8xf32, #tpu.memory_space<vmem>>, vector<1x8x8xf32>
      %184 = vector.shape_cast %183 : vector<1x8x8xf32> to vector<8x8xf32>
      %c3_117 = arith.constant 3 : index
      %c0_118 = arith.constant 0 : index
      %c0_119 = arith.constant 0 : index
      %185 = vector.load %arg8[%c3_117, %c0_118, %c0_119] : memref<4x8x1xf32, #tpu.memory_space<vmem>>, vector<1x8x1xf32>
      %186 = vector.shape_cast %185 : vector<1x8x1xf32> to vector<8x1xf32>
      %187 = tpu.reciprocal %186 {approx = true} : vector<8x1xf32> -> vector<8x1xf32>
      %188 = vector.broadcast %187 : vector<8x1xf32> to vector<8x8xf32>
      %189 = arith.mulf %184, %188 : vector<8x8xf32>
      %190 = tpu.concatenate %168, %175, %182, %189 in 1 : vector<8x8xf32>, vector<8x8xf32>, vector<8x8xf32>, vector<8x8xf32> -> vector<8x32xf32>
      %191 = arith.truncf %190 : vector<8x32xf32> to vector<8x32xbf16>
      %c0_120 = arith.constant 0 : index
      %c0_121 = arith.constant 0 : index
      %c0_122 = arith.constant 0 : index
      %192 = vector.load %arg6[%c0_120, %c0_121, %c0_122] : memref<1x8x32xbf16, #tpu.memory_space<vmem>>, vector<1x8x32xbf16>
      %193 = vector.shape_cast %192 : vector<1x8x32xbf16> to vector<8x32xbf16>
      %194 = vector.shape_cast %191 : vector<8x32xbf16> to vector<1x8x32xbf16>
      tpu.vector_store %arg6[%c0_120, %c0_121, %c0_122], %194 {strides = array<i32>} : memref<1x8x32xbf16, #tpu.memory_space<vmem>>, vector<1x8x32xbf16>,
    } else {
    }
    return
  }
  func.func @transform_0(%arg0: i32, %arg1: i32, %arg2: i32) -> (i32, i32, i32) {
    %c0_i32 = arith.constant 0 : i32
    %c0_i32_0 = arith.constant 0 : i32
    return %arg0, %arg1, %c0_i32 : i32, i32, i32
  }
  func.func @transform_1(%arg0: i32, %arg1: i32, %arg2: i32) -> (i32, i32, i32) {
    %c0_i32 = arith.constant 0 : i32
    %c0_i32_0 = arith.constant 0 : i32
    return %arg0, %arg2, %c0_i32 : i32, i32, i32
  }
  func.func @transform_2(%arg0: i32, %arg1: i32, %arg2: i32) -> (i32, i32, i32) {
    %c0_i32 = arith.constant 0 : i32
    %c0_i32_0 = arith.constant 0 : i32
    return %arg0, %arg2, %c0_i32 : i32, i32, i32
  }
  func.func @transform_3(%arg0: i32, %arg1: i32, %arg2: i32) -> (i32, i32, i32) {
    %c0_i32 = arith.constant 0 : i32
    %c0_i32_0 = arith.constant 0 : i32
    return %arg0, %arg1, %c0_i32 : i32, i32, i32
  }
}

module attributes {stable_mosaic.version = 11 : i64} {
  func.func @_ffn_kernel(%arg0: i32, %arg1: i32, %arg2: memref<16x32xbf16, #tpu.memory_space<vmem>>, %arg3: memref<32x64xbf16, #tpu.memory_space<vmem>>, %arg4: memref<1x64xf32, #tpu.memory_space<vmem>>, %arg5: memref<64x32xbf16, #tpu.memory_space<vmem>>, %arg6: memref<1x32xf32, #tpu.memory_space<vmem>>, %arg7: memref<16x32xbf16, #tpu.memory_space<vmem>>, %arg8: memref<1x32xf32, #tpu.memory_space<vmem>>, %arg9: memref<1x32xf32, #tpu.memory_space<vmem>>, %arg10: memref<16x32xbf16, #tpu.memory_space<vmem>>, %arg11: memref<16x32xf32, #tpu.memory_space<vmem>>) attributes {dimension_semantics = [#tpu.dimension_semantics<parallel>, #tpu.dimension_semantics<arbitrary>], iteration_bounds = array<i64: 1, 1>, scalar_prefetch = 0 : i64, scratch_operands = 1 : i64, tpu.core_type = #tpu.core_type<tc>, window_params = [{transform_indices = @transform_0, window_bounds = array<i64: 16, 32>}, {transform_indices = @transform_1, window_bounds = array<i64: 32, 64>}, {transform_indices = @transform_2, window_bounds = array<i64: 1, 64>}, {transform_indices = @transform_3, window_bounds = array<i64: 64, 32>}, {pipeline_mode = #tpu.pipeline_mode<synchronous>, transform_indices = @transform_4, window_bounds = array<i64: 1, 32>}, {transform_indices = @transform_5, window_bounds = array<i64: 16, 32>}, {pipeline_mode = #tpu.pipeline_mode<synchronous>, transform_indices = @transform_6, window_bounds = array<i64: 1, 32>}, {pipeline_mode = #tpu.pipeline_mode<synchronous>, transform_indices = @transform_7, window_bounds = array<i64: 1, 32>}, {transform_indices = @transform_8, window_bounds = array<i64: 16, 32>}]} {
    %c0_i32 = arith.constant 0 : i32
    %0 = arith.cmpi eq, %arg1, %c0_i32 : i32
    %1 = arith.extui %0 : i1 to i32
    %c0_i32_0 = arith.constant 0 : i32
    %2 = arith.cmpi ne, %1, %c0_i32_0 : i32
    scf.if %2 {
      %cst_16 = arith.constant 0.000000e+00 : f32
      %20 = vector.broadcast %cst_16 : f32 to vector<16x32xf32>
      %c0_17 = arith.constant 0 : index
      %c0_18 = arith.constant 0 : index
      %21 = vector.load %arg11[%c0_17, %c0_18] : memref<16x32xf32, #tpu.memory_space<vmem>>, vector<16x32xf32>
      tpu.vector_store %arg11[%c0_17, %c0_18], %20 {strides = array<i32>} : memref<16x32xf32, #tpu.memory_space<vmem>>, vector<16x32xf32>,
    } else {
    }
    %c0 = arith.constant 0 : index
    %c0_1 = arith.constant 0 : index
    %3 = vector.load %arg2[%c0, %c0_1] : memref<16x32xbf16, #tpu.memory_space<vmem>>, vector<16x32xbf16>
    %c0_2 = arith.constant 0 : index
    %c0_3 = arith.constant 0 : index
    %4 = vector.load %arg3[%c0_2, %c0_3] : memref<32x64xbf16, #tpu.memory_space<vmem>>, vector<32x64xbf16>
    %cst = arith.constant dense<0.000000e+00> : vector<16x64xf32>
    %5 = tpu.matmul %3, %4, %cst {dimension_numbers = #tpu.dot_dimension_numbers<[1], [0], [0], [1], [0, 0, 1, 1], [], []>} : vector<16x32xbf16>, vector<32x64xbf16>, vector<16x64xf32> -> vector<16x64xf32>
    %c0_4 = arith.constant 0 : index
    %c0_5 = arith.constant 0 : index
    %6 = vector.load %arg4[%c0_4, %c0_5] : memref<1x64xf32, #tpu.memory_space<vmem>>, vector<1x64xf32>
    %7 = vector.broadcast %6 : vector<1x64xf32> to vector<16x64xf32>
    %8 = arith.addf %5, %7 : vector<16x64xf32>
    %cst_6 = arith.constant 0.000000e+00 : f32
    %9 = vector.broadcast %cst_6 : f32 to vector<16x64xf32>
    %10 = arith.maximumf %8, %9 : vector<16x64xf32>
    %c0_7 = arith.constant 0 : index
    %c0_8 = arith.constant 0 : index
    %11 = vector.load %arg11[%c0_7, %c0_8] : memref<16x32xf32, #tpu.memory_space<vmem>>, vector<16x32xf32>
    %12 = arith.truncf %10 : vector<16x64xf32> to vector<16x64xbf16>
    %c0_9 = arith.constant 0 : index
    %c0_10 = arith.constant 0 : index
    %13 = vector.load %arg5[%c0_9, %c0_10] : memref<64x32xbf16, #tpu.memory_space<vmem>>, vector<64x32xbf16>
    %cst_11 = arith.constant dense<0.000000e+00> : vector<16x32xf32>
    %14 = tpu.matmul %12, %13, %cst_11 {dimension_numbers = #tpu.dot_dimension_numbers<[1], [0], [0], [1], [0, 0, 1, 1], [], []>} : vector<16x64xbf16>, vector<64x32xbf16>, vector<16x32xf32> -> vector<16x32xf32>
    %15 = arith.addf %11, %14 : vector<16x32xf32>
    %c0_12 = arith.constant 0 : index
    %c0_13 = arith.constant 0 : index
    %16 = vector.load %arg11[%c0_12, %c0_13] : memref<16x32xf32, #tpu.memory_space<vmem>>, vector<16x32xf32>
    tpu.vector_store %arg11[%c0_12, %c0_13], %15 {strides = array<i32>} : memref<16x32xf32, #tpu.memory_space<vmem>>, vector<16x32xf32>,
    %c0_i32_14 = arith.constant 0 : i32
    %17 = arith.cmpi eq, %arg1, %c0_i32_14 : i32
    %18 = arith.extui %17 : i1 to i32
    %c0_i32_15 = arith.constant 0 : i32
    %19 = arith.cmpi ne, %18, %c0_i32_15 : i32
    scf.if %19 {
      %c0_16 = arith.constant 0 : index
      %c0_17 = arith.constant 0 : index
      %20 = vector.load %arg11[%c0_16, %c0_17] : memref<16x32xf32, #tpu.memory_space<vmem>>, vector<16x32xf32>
      %c0_18 = arith.constant 0 : index
      %c0_19 = arith.constant 0 : index
      %21 = vector.load %arg6[%c0_18, %c0_19] : memref<1x32xf32, #tpu.memory_space<vmem>>, vector<1x32xf32>
      %22 = vector.broadcast %21 : vector<1x32xf32> to vector<16x32xf32>
      %23 = arith.addf %20, %22 : vector<16x32xf32>
      %c0_20 = arith.constant 0 : index
      %c0_21 = arith.constant 0 : index
      %24 = vector.load %arg7[%c0_20, %c0_21] : memref<16x32xbf16, #tpu.memory_space<vmem>>, vector<16x32xbf16>
      %25 = arith.extf %24 : vector<16x32xbf16> to vector<16x32xf32>
      %26 = arith.addf %23, %25 : vector<16x32xf32>
      %cst_22 = arith.constant dense<0.000000e+00> : vector<16xf32>
      %27 = vector.multi_reduction <add>, %26, %cst_22 [1] : vector<16x32xf32> to vector<16xf32>
      %28 = vector.shape_cast %27 : vector<16xf32> to vector<16x1xf32>
      %cst_23 = arith.constant 3.200000e+01 : f32
      %29 = vector.broadcast %cst_23 : f32 to vector<16x1xf32>
      %30 = arith.divf %28, %29 : vector<16x1xf32>
      %31 = vector.broadcast %30 : vector<16x1xf32> to vector<16x32xf32>
      %32 = arith.subf %26, %31 : vector<16x32xf32>
      %33 = arith.mulf %32, %32 : vector<16x32xf32>
      %cst_24 = arith.constant dense<0.000000e+00> : vector<16xf32>
      %34 = vector.multi_reduction <add>, %33, %cst_24 [1] : vector<16x32xf32> to vector<16xf32>
      %35 = vector.shape_cast %34 : vector<16xf32> to vector<16x1xf32>
      %cst_25 = arith.constant 3.200000e+01 : f32
      %36 = vector.broadcast %cst_25 : f32 to vector<16x1xf32>
      %37 = arith.divf %35, %36 : vector<16x1xf32>
      %38 = vector.broadcast %30 : vector<16x1xf32> to vector<16x32xf32>
      %39 = arith.subf %26, %38 : vector<16x32xf32>
      %cst_26 = arith.constant 9.99999974E-6 : f32
      %40 = vector.broadcast %cst_26 : f32 to vector<16x1xf32>
      %41 = arith.addf %37, %40 : vector<16x1xf32>
      %42 = math.rsqrt %41 : vector<16x1xf32>
      %43 = vector.broadcast %42 : vector<16x1xf32> to vector<16x32xf32>
      %44 = arith.mulf %39, %43 : vector<16x32xf32>
      %c0_27 = arith.constant 0 : index
      %c0_28 = arith.constant 0 : index
      %45 = vector.load %arg8[%c0_27, %c0_28] : memref<1x32xf32, #tpu.memory_space<vmem>>, vector<1x32xf32>
      %46 = vector.broadcast %45 : vector<1x32xf32> to vector<16x32xf32>
      %47 = arith.mulf %44, %46 : vector<16x32xf32>
      %c0_29 = arith.constant 0 : index
      %c0_30 = arith.constant 0 : index
      %48 = vector.load %arg9[%c0_29, %c0_30] : memref<1x32xf32, #tpu.memory_space<vmem>>, vector<1x32xf32>
      %49 = vector.broadcast %48 : vector<1x32xf32> to vector<16x32xf32>
      %50 = arith.addf %47, %49 : vector<16x32xf32>
      %51 = arith.truncf %50 : vector<16x32xf32> to vector<16x32xbf16>
      %c0_31 = arith.constant 0 : index
      %c0_32 = arith.constant 0 : index
      %52 = vector.load %arg10[%c0_31, %c0_32] : memref<16x32xbf16, #tpu.memory_space<vmem>>, vector<16x32xbf16>
      tpu.vector_store %arg10[%c0_31, %c0_32], %51 {strides = array<i32>} : memref<16x32xbf16, #tpu.memory_space<vmem>>, vector<16x32xbf16>,
    } else {
    }
    return
  }
  func.func @transform_0(%arg0: i32, %arg1: i32) -> (i32, i32) {
    %c0_i32 = arith.constant 0 : i32
    %c0_i32_0 = arith.constant 0 : i32
    return %arg0, %c0_i32 : i32, i32
  }
  func.func @transform_1(%arg0: i32, %arg1: i32) -> (i32, i32) {
    %c0_i32 = arith.constant 0 : i32
    %c0_i32_0 = arith.constant 0 : i32
    return %c0_i32, %arg1 : i32, i32
  }
  func.func @transform_2(%arg0: i32, %arg1: i32) -> (i32, i32) {
    %c0_i32 = arith.constant 0 : i32
    %c0_i32_0 = arith.constant 0 : i32
    return %c0_i32, %arg1 : i32, i32
  }
  func.func @transform_3(%arg0: i32, %arg1: i32) -> (i32, i32) {
    %c0_i32 = arith.constant 0 : i32
    %c0_i32_0 = arith.constant 0 : i32
    return %arg1, %c0_i32 : i32, i32
  }
  func.func @transform_4(%arg0: i32, %arg1: i32) -> (i32, i32) {
    %c0_i32 = arith.constant 0 : i32
    %c0_i32_0 = arith.constant 0 : i32
    %c0_i32_1 = arith.constant 0 : i32
    return %c0_i32, %c0_i32_0 : i32, i32
  }
  func.func @transform_5(%arg0: i32, %arg1: i32) -> (i32, i32) {
    %c0_i32 = arith.constant 0 : i32
    %c0_i32_0 = arith.constant 0 : i32
    return %arg0, %c0_i32 : i32, i32
  }
  func.func @transform_6(%arg0: i32, %arg1: i32) -> (i32, i32) {
    %c0_i32 = arith.constant 0 : i32
    %c0_i32_0 = arith.constant 0 : i32
    %c0_i32_1 = arith.constant 0 : i32
    return %c0_i32, %c0_i32_0 : i32, i32
  }
  func.func @transform_7(%arg0: i32, %arg1: i32) -> (i32, i32) {
    %c0_i32 = arith.constant 0 : i32
    %c0_i32_0 = arith.constant 0 : i32
    %c0_i32_1 = arith.constant 0 : i32
    return %c0_i32, %c0_i32_0 : i32, i32
  }
  func.func @transform_8(%arg0: i32, %arg1: i32) -> (i32, i32) {
    %c0_i32 = arith.constant 0 : i32
    %c0_i32_0 = arith.constant 0 : i32
    return %arg0, %c0_i32 : i32, i32
  }
}

module attributes {stable_mosaic.version = 11 : i64} {
  func.func @_linear_kernel(%arg0: i32, %arg1: i32, %arg2: i32, %arg3: memref<16x32xbf16, #tpu.memory_space<vmem>>, %arg4: memref<32x32xbf16, #tpu.memory_space<vmem>>, %arg5: memref<1x32xf32, #tpu.memory_space<vmem>>, %arg6: memref<16x32xbf16, #tpu.memory_space<vmem>>, %arg7: memref<16x32xf32, #tpu.memory_space<vmem>>) attributes {dimension_semantics = [#tpu.dimension_semantics<parallel>, #tpu.dimension_semantics<parallel>, #tpu.dimension_semantics<arbitrary>], iteration_bounds = array<i64: 1, 1, 1>, scalar_prefetch = 0 : i64, scratch_operands = 1 : i64, tpu.core_type = #tpu.core_type<tc>, window_params = [{transform_indices = @transform_0, window_bounds = array<i64: 16, 32>}, {transform_indices = @transform_1, window_bounds = array<i64: 32, 32>}, {transform_indices = @transform_2, window_bounds = array<i64: 1, 32>}, {transform_indices = @transform_3, window_bounds = array<i64: 16, 32>}]} {
    %c0_i32 = arith.constant 0 : i32
    %0 = arith.cmpi eq, %arg2, %c0_i32 : i32
    %1 = arith.extui %0 : i1 to i32
    %c0_i32_0 = arith.constant 0 : i32
    %2 = arith.cmpi ne, %1, %c0_i32_0 : i32
    scf.if %2 {
      %cst_10 = arith.constant 0.000000e+00 : f32
      %12 = vector.broadcast %cst_10 : f32 to vector<16x32xf32>
      %c0_11 = arith.constant 0 : index
      %c0_12 = arith.constant 0 : index
      %13 = vector.load %arg7[%c0_11, %c0_12] : memref<16x32xf32, #tpu.memory_space<vmem>>, vector<16x32xf32>
      tpu.vector_store %arg7[%c0_11, %c0_12], %12 {strides = array<i32>} : memref<16x32xf32, #tpu.memory_space<vmem>>, vector<16x32xf32>,
    } else {
    }
    %c0 = arith.constant 0 : index
    %c0_1 = arith.constant 0 : index
    %3 = vector.load %arg7[%c0, %c0_1] : memref<16x32xf32, #tpu.memory_space<vmem>>, vector<16x32xf32>
    %c0_2 = arith.constant 0 : index
    %c0_3 = arith.constant 0 : index
    %4 = vector.load %arg3[%c0_2, %c0_3] : memref<16x32xbf16, #tpu.memory_space<vmem>>, vector<16x32xbf16>
    %c0_4 = arith.constant 0 : index
    %c0_5 = arith.constant 0 : index
    %5 = vector.load %arg4[%c0_4, %c0_5] : memref<32x32xbf16, #tpu.memory_space<vmem>>, vector<32x32xbf16>
    %cst = arith.constant dense<0.000000e+00> : vector<16x32xf32>
    %6 = tpu.matmul %4, %5, %cst {dimension_numbers = #tpu.dot_dimension_numbers<[1], [0], [0], [1], [0, 0, 1, 1], [], []>} : vector<16x32xbf16>, vector<32x32xbf16>, vector<16x32xf32> -> vector<16x32xf32>
    %7 = arith.addf %3, %6 : vector<16x32xf32>
    %c0_6 = arith.constant 0 : index
    %c0_7 = arith.constant 0 : index
    %8 = vector.load %arg7[%c0_6, %c0_7] : memref<16x32xf32, #tpu.memory_space<vmem>>, vector<16x32xf32>
    tpu.vector_store %arg7[%c0_6, %c0_7], %7 {strides = array<i32>} : memref<16x32xf32, #tpu.memory_space<vmem>>, vector<16x32xf32>,
    %c0_i32_8 = arith.constant 0 : i32
    %9 = arith.cmpi eq, %arg2, %c0_i32_8 : i32
    %10 = arith.extui %9 : i1 to i32
    %c0_i32_9 = arith.constant 0 : i32
    %11 = arith.cmpi ne, %10, %c0_i32_9 : i32
    scf.if %11 {
      %c0_10 = arith.constant 0 : index
      %c0_11 = arith.constant 0 : index
      %12 = vector.load %arg7[%c0_10, %c0_11] : memref<16x32xf32, #tpu.memory_space<vmem>>, vector<16x32xf32>
      %c0_12 = arith.constant 0 : index
      %c0_13 = arith.constant 0 : index
      %13 = vector.load %arg5[%c0_12, %c0_13] : memref<1x32xf32, #tpu.memory_space<vmem>>, vector<1x32xf32>
      %14 = vector.broadcast %13 : vector<1x32xf32> to vector<16x32xf32>
      %15 = arith.addf %12, %14 : vector<16x32xf32>
      %16 = arith.truncf %15 : vector<16x32xf32> to vector<16x32xbf16>
      %c0_14 = arith.constant 0 : index
      %c0_15 = arith.constant 0 : index
      %17 = vector.load %arg6[%c0_14, %c0_15] : memref<16x32xbf16, #tpu.memory_space<vmem>>, vector<16x32xbf16>
      tpu.vector_store %arg6[%c0_14, %c0_15], %16 {strides = array<i32>} : memref<16x32xbf16, #tpu.memory_space<vmem>>, vector<16x32xbf16>,
    } else {
    }
    return
  }
  func.func @transform_0(%arg0: i32, %arg1: i32, %arg2: i32) -> (i32, i32) {
    %c0_i32 = arith.constant 0 : i32
    return %arg0, %arg2 : i32, i32
  }
  func.func @transform_1(%arg0: i32, %arg1: i32, %arg2: i32) -> (i32, i32) {
    %c0_i32 = arith.constant 0 : i32
    return %arg2, %arg1 : i32, i32
  }
  func.func @transform_2(%arg0: i32, %arg1: i32, %arg2: i32) -> (i32, i32) {
    %c0_i32 = arith.constant 0 : i32
    %c0_i32_0 = arith.constant 0 : i32
    return %c0_i32, %arg1 : i32, i32
  }
  func.func @transform_3(%arg0: i32, %arg1: i32, %arg2: i32) -> (i32, i32) {
    %c0_i32 = arith.constant 0 : i32
    return %arg0, %arg1 : i32, i32
  }
}

module attributes {stable_mosaic.version = 11 : i64} {
  func.func @_attn_kernel(%arg0: i32, %arg1: i32, %arg2: i32, %arg3: memref<1x8x32xbf16, #tpu.memory_space<vmem>>, %arg4: memref<1x8x32xbf16, #tpu.memory_space<vmem>>, %arg5: memref<1x8x32xbf16, #tpu.memory_space<vmem>>, %arg6: memref<1x8x32xbf16, #tpu.memory_space<vmem>>, %arg7: memref<4x8x1xf32, #tpu.memory_space<vmem>>, %arg8: memref<4x8x1xf32, #tpu.memory_space<vmem>>, %arg9: memref<4x8x8xf32, #tpu.memory_space<vmem>>) attributes {dimension_semantics = [#tpu.dimension_semantics<parallel>, #tpu.dimension_semantics<parallel>, #tpu.dimension_semantics<arbitrary>], iteration_bounds = array<i64: 2, 1, 1>, scalar_prefetch = 0 : i64, scratch_operands = 3 : i64, tpu.core_type = #tpu.core_type<tc>, window_params = [{transform_indices = @transform_0, window_bounds = array<i64: 1, 8, 32>}, {transform_indices = @transform_1, window_bounds = array<i64: 1, 8, 32>}, {transform_indices = @transform_2, window_bounds = array<i64: 1, 8, 32>}, {transform_indices = @transform_3, window_bounds = array<i64: 1, 8, 32>}]} {
    %c0_i32 = arith.constant 0 : i32
    %0 = arith.cmpi eq, %arg2, %c0_i32 : i32
    %1 = arith.extui %0 : i1 to i32
    %c0_i32_0 = arith.constant 0 : i32
    %2 = arith.cmpi ne, %1, %c0_i32_0 : i32
    scf.if %2 {
      %cst_101 = arith.constant -1.000000e+30 : f32
      %179 = vector.broadcast %cst_101 : f32 to vector<4x8x1xf32>
      %c0_102 = arith.constant 0 : index
      %c0_103 = arith.constant 0 : index
      %c0_104 = arith.constant 0 : index
      %180 = vector.load %arg7[%c0_102, %c0_103, %c0_104] : memref<4x8x1xf32, #tpu.memory_space<vmem>>, vector<4x8x1xf32>
      tpu.vector_store %arg7[%c0_102, %c0_103, %c0_104], %179 {strides = array<i32>} : memref<4x8x1xf32, #tpu.memory_space<vmem>>, vector<4x8x1xf32>,
      %cst_105 = arith.constant 0.000000e+00 : f32
      %181 = vector.broadcast %cst_105 : f32 to vector<4x8x1xf32>
      %c0_106 = arith.constant 0 : index
      %c0_107 = arith.constant 0 : index
      %c0_108 = arith.constant 0 : index
      %182 = vector.load %arg8[%c0_106, %c0_107, %c0_108] : memref<4x8x1xf32, #tpu.memory_space<vmem>>, vector<4x8x1xf32>
      tpu.vector_store %arg8[%c0_106, %c0_107, %c0_108], %181 {strides = array<i32>} : memref<4x8x1xf32, #tpu.memory_space<vmem>>, vector<4x8x1xf32>,
      %cst_109 = arith.constant 0.000000e+00 : f32
      %183 = vector.broadcast %cst_109 : f32 to vector<4x8x8xf32>
      %c0_110 = arith.constant 0 : index
      %c0_111 = arith.constant 0 : index
      %c0_112 = arith.constant 0 : index
      %184 = vector.load %arg9[%c0_110, %c0_111, %c0_112] : memref<4x8x8xf32, #tpu.memory_space<vmem>>, vector<4x8x8xf32>
      tpu.vector_store %arg9[%c0_110, %c0_111, %c0_112], %183 {strides = array<i32>} : memref<4x8x8xf32, #tpu.memory_space<vmem>>, vector<4x8x8xf32>,
    } else {
    }
    %c0 = arith.constant 0 : index
    %c0_1 = arith.constant 0 : index
    %c0_2 = arith.constant 0 : index
    %3 = vector.load %arg3[%c0, %c0_1, %c0_2] : memref<1x8x32xbf16, #tpu.memory_space<vmem>>, vector<1x8x32xbf16>
    %4 = vector.shape_cast %3 : vector<1x8x32xbf16> to vector<8x32xbf16>
    %cst = arith.constant 3.535160e-01 : bf16
    %5 = vector.broadcast %cst : bf16 to vector<8x32xbf16>
    %6 = arith.mulf %4, %5 : vector<8x32xbf16>
    %c0_3 = arith.constant 0 : index
    %c0_4 = arith.constant 0 : index
    %c0_5 = arith.constant 0 : index
    %7 = vector.load %arg4[%c0_3, %c0_4, %c0_5] : memref<1x8x32xbf16, #tpu.memory_space<vmem>>, vector<1x8x32xbf16>
    %8 = vector.shape_cast %7 : vector<1x8x32xbf16> to vector<8x32xbf16>
    %c0_6 = arith.constant 0 : index
    %c0_7 = arith.constant 0 : index
    %c0_8 = arith.constant 0 : index
    %9 = vector.load %arg5[%c0_6, %c0_7, %c0_8] : memref<1x8x32xbf16, #tpu.memory_space<vmem>>, vector<1x8x32xbf16>
    %10 = vector.shape_cast %9 : vector<1x8x32xbf16> to vector<8x32xbf16>
    %c8_i32 = arith.constant 8 : i32
    %11 = arith.muli %arg1, %c8_i32 : i32
    %12 = tpu.iota {dimensions = array<i32: 0>} : vector<8x8xi32>
    %13 = vector.broadcast %11 : i32 to vector<8x8xi32>
    %14 = arith.addi %13, %12 : vector<8x8xi32>
    %c8_i32_9 = arith.constant 8 : i32
    %15 = arith.muli %arg2, %c8_i32_9 : i32
    %16 = tpu.iota {dimensions = array<i32: 1>} : vector<8x8xi32>
    %17 = vector.broadcast %15 : i32 to vector<8x8xi32>
    %18 = arith.addi %17, %16 : vector<8x8xi32>
    %19 = arith.cmpi sle, %18, %14 : vector<8x8xi32>
    %20 = vector.extract_strided_slice %6 {offsets = [0, 0], sizes = [8, 8], strides = [1, 1]} : vector<8x32xbf16> to vector<8x8xbf16>
    %21 = vector.extract_strided_slice %8 {offsets = [0, 0], sizes = [8, 8], strides = [1, 1]} : vector<8x32xbf16> to vector<8x8xbf16>
    %22 = vector.extract_strided_slice %10 {offsets = [0, 0], sizes = [8, 8], strides = [1, 1]} : vector<8x32xbf16> to vector<8x8xbf16>
    %23 = tpu.transpose %21, [1, 0] : vector<8x8xbf16> -> vector<8x8xbf16>
    %cst_10 = arith.constant dense<0.000000e+00> : vector<8x8xf32>
    %24 = tpu.matmul %20, %23, %cst_10 {dimension_numbers = #tpu.dot_dimension_numbers<[1], [0], [0], [1], [0, 0, 1, 1], [], []>} : vector<8x8xbf16>, vector<8x8xbf16>, vector<8x8xf32> -> vector<8x8xf32>
    %cst_11 = arith.constant -1.000000e+30 : f32
    %25 = vector.broadcast %cst_11 : f32 to vector<8x8xf32>
    %26 = arith.select %19, %24, %25 : vector<8x8xi1>, vector<8x8xf32>
    %c0_12 = arith.constant 0 : index
    %c0_13 = arith.constant 0 : index
    %c0_14 = arith.constant 0 : index
    %27 = vector.load %arg7[%c0_12, %c0_13, %c0_14] : memref<4x8x1xf32, #tpu.memory_space<vmem>>, vector<1x8x1xf32>
    %28 = vector.shape_cast %27 : vector<1x8x1xf32> to vector<8x1xf32>
    %cst_15 = arith.constant dense<0xFF800000> : vector<8xf32>
    %29 = vector.multi_reduction <maximumf>, %26, %cst_15 [1] : vector<8x8xf32> to vector<8xf32>
    %30 = vector.shape_cast %29 : vector<8xf32> to vector<8x1xf32>
    %31 = arith.maximumf %28, %30 : vector<8x1xf32>
    %32 = arith.subf %28, %31 : vector<8x1xf32>
    %33 = math.exp %32 : vector<8x1xf32>
    %34 = vector.broadcast %31 : vector<8x1xf32> to vector<8x8xf32>
    %35 = arith.subf %26, %34 : vector<8x8xf32>
    %36 = math.exp %35 : vector<8x8xf32>
    %c0_16 = arith.constant 0 : index
    %c0_17 = arith.constant 0 : index
    %c0_18 = arith.constant 0 : index
    %37 = vector.load %arg8[%c0_16, %c0_17, %c0_18] : memref<4x8x1xf32, #tpu.memory_space<vmem>>, vector<1x8x1xf32>
    %38 = vector.shape_cast %37 : vector<1x8x1xf32> to vector<8x1xf32>
    %39 = arith.mulf %33, %38 : vector<8x1xf32>
    %cst_19 = arith.constant dense<0.000000e+00> : vector<8xf32>
    %40 = vector.multi_reduction <add>, %36, %cst_19 [1] : vector<8x8xf32> to vector<8xf32>
    %41 = vector.shape_cast %40 : vector<8xf32> to vector<8x1xf32>
    %42 = arith.addf %39, %41 : vector<8x1xf32>
    %c0_20 = arith.constant 0 : index
    %c0_21 = arith.constant 0 : index
    %c0_22 = arith.constant 0 : index
    %43 = vector.load %arg8[%c0_20, %c0_21, %c0_22] : memref<4x8x1xf32, #tpu.memory_space<vmem>>, vector<1x8x1xf32>
    %44 = vector.shape_cast %43 : vector<1x8x1xf32> to vector<8x1xf32>
    %45 = vector.shape_cast %42 : vector<8x1xf32> to vector<1x8x1xf32>
    tpu.vector_store %arg8[%c0_20, %c0_21, %c0_22], %45 {strides = array<i32>} : memref<4x8x1xf32, #tpu.memory_space<vmem>>, vector<1x8x1xf32>,
    %c0_23 = arith.constant 0 : index
    %c0_24 = arith.constant 0 : index
    %c0_25 = arith.constant 0 : index
    %46 = vector.load %arg9[%c0_23, %c0_24, %c0_25] : memref<4x8x8xf32, #tpu.memory_space<vmem>>, vector<1x8x8xf32>
    %47 = vector.shape_cast %46 : vector<1x8x8xf32> to vector<8x8xf32>
    %48 = vector.broadcast %33 : vector<8x1xf32> to vector<8x8xf32>
    %49 = arith.mulf %48, %47 : vector<8x8xf32>
    %50 = arith.truncf %36 : vector<8x8xf32> to vector<8x8xbf16>
    %cst_26 = arith.constant dense<0.000000e+00> : vector<8x8xf32>
    %51 = tpu.matmul %50, %22, %cst_26 {dimension_numbers = #tpu.dot_dimension_numbers<[1], [0], [0], [1], [0, 0, 1, 1], [], []>} : vector<8x8xbf16>, vector<8x8xbf16>, vector<8x8xf32> -> vector<8x8xf32>
    %52 = arith.addf %49, %51 : vector<8x8xf32>
    %c0_27 = arith.constant 0 : index
    %c0_28 = arith.constant 0 : index
    %c0_29 = arith.constant 0 : index
    %53 = vector.load %arg9[%c0_27, %c0_28, %c0_29] : memref<4x8x8xf32, #tpu.memory_space<vmem>>, vector<1x8x8xf32>
    %54 = vector.shape_cast %53 : vector<1x8x8xf32> to vector<8x8xf32>
    %55 = vector.shape_cast %52 : vector<8x8xf32> to vector<1x8x8xf32>
    tpu.vector_store %arg9[%c0_27, %c0_28, %c0_29], %55 {strides = array<i32>} : memref<4x8x8xf32, #tpu.memory_space<vmem>>, vector<1x8x8xf32>,
    %c0_30 = arith.constant 0 : index
    %c0_31 = arith.constant 0 : index
    %c0_32 = arith.constant 0 : index
    %56 = vector.load %arg7[%c0_30, %c0_31, %c0_32] : memref<4x8x1xf32, #tpu.memory_space<vmem>>, vector<1x8x1xf32>
    %57 = vector.shape_cast %56 : vector<1x8x1xf32> to vector<8x1xf32>
    %58 = vector.shape_cast %31 : vector<8x1xf32> to vector<1x8x1xf32>
    tpu.vector_store %arg7[%c0_30, %c0_31, %c0_32], %58 {strides = array<i32>} : memref<4x8x1xf32, #tpu.memory_space<vmem>>, vector<1x8x1xf32>,
    %59 = vector.extract_strided_slice %6 {offsets = [0, 8], sizes = [8, 8], strides = [1, 1]} : vector<8x32xbf16> to vector<8x8xbf16>
    %60 = vector.extract_strided_slice %8 {offsets = [0, 8], sizes = [8, 8], strides = [1, 1]} : vector<8x32xbf16> to vector<8x8xbf16>
    %61 = vector.extract_strided_slice %10 {offsets = [0, 8], sizes = [8, 8], strides = [1, 1]} : vector<8x32xbf16> to vector<8x8xbf16>
    %62 = tpu.transpose %60, [1, 0] : vector<8x8xbf16> -> vector<8x8xbf16>
    %cst_33 = arith.constant dense<0.000000e+00> : vector<8x8xf32>
    %63 = tpu.matmul %59, %62, %cst_33 {dimension_numbers = #tpu.dot_dimension_numbers<[1], [0], [0], [1], [0, 0, 1, 1], [], []>} : vector<8x8xbf16>, vector<8x8xbf16>, vector<8x8xf32> -> vector<8x8xf32>
    %cst_34 = arith.constant -1.000000e+30 : f32
    %64 = vector.broadcast %cst_34 : f32 to vector<8x8xf32>
    %65 = arith.select %19, %63, %64 : vector<8x8xi1>, vector<8x8xf32>
    %c1 = arith.constant 1 : index
    %c0_35 = arith.constant 0 : index
    %c0_36 = arith.constant 0 : index
    %66 = vector.load %arg7[%c1, %c0_35, %c0_36] : memref<4x8x1xf32, #tpu.memory_space<vmem>>, vector<1x8x1xf32>
    %67 = vector.shape_cast %66 : vector<1x8x1xf32> to vector<8x1xf32>
    %cst_37 = arith.constant dense<0xFF800000> : vector<8xf32>
    %68 = vector.multi_reduction <maximumf>, %65, %cst_37 [1] : vector<8x8xf32> to vector<8xf32>
    %69 = vector.shape_cast %68 : vector<8xf32> to vector<8x1xf32>
    %70 = arith.maximumf %67, %69 : vector<8x1xf32>
    %71 = arith.subf %67, %70 : vector<8x1xf32>
    %72 = math.exp %71 : vector<8x1xf32>
    %73 = vector.broadcast %70 : vector<8x1xf32> to vector<8x8xf32>
    %74 = arith.subf %65, %73 : vector<8x8xf32>
    %75 = math.exp %74 : vector<8x8xf32>
    %c1_38 = arith.constant 1 : index
    %c0_39 = arith.constant 0 : index
    %c0_40 = arith.constant 0 : index
    %76 = vector.load %arg8[%c1_38, %c0_39, %c0_40] : memref<4x8x1xf32, #tpu.memory_space<vmem>>, vector<1x8x1xf32>
    %77 = vector.shape_cast %76 : vector<1x8x1xf32> to vector<8x1xf32>
    %78 = arith.mulf %72, %77 : vector<8x1xf32>
    %cst_41 = arith.constant dense<0.000000e+00> : vector<8xf32>
    %79 = vector.multi_reduction <add>, %75, %cst_41 [1] : vector<8x8xf32> to vector<8xf32>
    %80 = vector.shape_cast %79 : vector<8xf32> to vector<8x1xf32>
    %81 = arith.addf %78, %80 : vector<8x1xf32>
    %c1_42 = arith.constant 1 : index
    %c0_43 = arith.constant 0 : index
    %c0_44 = arith.constant 0 : index
    %82 = vector.load %arg8[%c1_42, %c0_43, %c0_44] : memref<4x8x1xf32, #tpu.memory_space<vmem>>, vector<1x8x1xf32>
    %83 = vector.shape_cast %82 : vector<1x8x1xf32> to vector<8x1xf32>
    %84 = vector.shape_cast %81 : vector<8x1xf32> to vector<1x8x1xf32>
    tpu.vector_store %arg8[%c1_42, %c0_43, %c0_44], %84 {strides = array<i32>} : memref<4x8x1xf32, #tpu.memory_space<vmem>>, vector<1x8x1xf32>,
    %c1_45 = arith.constant 1 : index
    %c0_46 = arith.constant 0 : index
    %c0_47 = arith.constant 0 : index
    %85 = vector.load %arg9[%c1_45, %c0_46, %c0_47] : memref<4x8x8xf32, #tpu.memory_space<vmem>>, vector<1x8x8xf32>
    %86 = vector.shape_cast %85 : vector<1x8x8xf32> to vector<8x8xf32>
    %87 = vector.broadcast %72 : vector<8x1xf32> to vector<8x8xf32>
    %88 = arith.mulf %87, %86 : vector<8x8xf32>
    %89 = arith.truncf %75 : vector<8x8xf32> to vector<8x8xbf16>
    %cst_48 = arith.constant dense<0.000000e+00> : vector<8x8xf32>
    %90 = tpu.matmul %89, %61, %cst_48 {dimension_numbers = #tpu.dot_dimension_numbers<[1], [0], [0], [1], [0, 0, 1, 1], [], []>} : vector<8x8xbf16>, vector<8x8xbf16>, vector<8x8xf32> -> vector<8x8xf32>
    %91 = arith.addf %88, %90 : vector<8x8xf32>
    %c1_49 = arith.constant 1 : index
    %c0_50 = arith.constant 0 : index
    %c0_51 = arith.constant 0 : index
    %92 = vector.load %arg9[%c1_49, %c0_50, %c0_51] : memref<4x8x8xf32, #tpu.memory_space<vmem>>, vector<1x8x8xf32>
    %93 = vector.shape_cast %92 : vector<1x8x8xf32> to vector<8x8xf32>
    %94 = vector.shape_cast %91 : vector<8x8xf32> to vector<1x8x8xf32>
    tpu.vector_store %arg9[%c1_49, %c0_50, %c0_51], %94 {strides = array<i32>} : memref<4x8x8xf32, #tpu.memory_space<vmem>>, vector<1x8x8xf32>,
    %c1_52 = arith.constant 1 : index
    %c0_53 = arith.constant 0 : index
    %c0_54 = arith.constant 0 : index
    %95 = vector.load %arg7[%c1_52, %c0_53, %c0_54] : memref<4x8x1xf32, #tpu.memory_space<vmem>>, vector<1x8x1xf32>
    %96 = vector.shape_cast %95 : vector<1x8x1xf32> to vector<8x1xf32>
    %97 = vector.shape_cast %70 : vector<8x1xf32> to vector<1x8x1xf32>
    tpu.vector_store %arg7[%c1_52, %c0_53, %c0_54], %97 {strides = array<i32>} : memref<4x8x1xf32, #tpu.memory_space<vmem>>, vector<1x8x1xf32>,
    %98 = vector.extract_strided_slice %6 {offsets = [0, 16], sizes = [8, 8], strides = [1, 1]} : vector<8x32xbf16> to vector<8x8xbf16>
    %99 = vector.extract_strided_slice %8 {offsets = [0, 16], sizes = [8, 8], strides = [1, 1]} : vector<8x32xbf16> to vector<8x8xbf16>
    %100 = vector.extract_strided_slice %10 {offsets = [0, 16], sizes = [8, 8], strides = [1, 1]} : vector<8x32xbf16> to vector<8x8xbf16>
    %101 = tpu.transpose %99, [1, 0] : vector<8x8xbf16> -> vector<8x8xbf16>
    %cst_55 = arith.constant dense<0.000000e+00> : vector<8x8xf32>
    %102 = tpu.matmul %98, %101, %cst_55 {dimension_numbers = #tpu.dot_dimension_numbers<[1], [0], [0], [1], [0, 0, 1, 1], [], []>} : vector<8x8xbf16>, vector<8x8xbf16>, vector<8x8xf32> -> vector<8x8xf32>
    %cst_56 = arith.constant -1.000000e+30 : f32
    %103 = vector.broadcast %cst_56 : f32 to vector<8x8xf32>
    %104 = arith.select %19, %102, %103 : vector<8x8xi1>, vector<8x8xf32>
    %c2 = arith.constant 2 : index
    %c0_57 = arith.constant 0 : index
    %c0_58 = arith.constant 0 : index
    %105 = vector.load %arg7[%c2, %c0_57, %c0_58] : memref<4x8x1xf32, #tpu.memory_space<vmem>>, vector<1x8x1xf32>
    %106 = vector.shape_cast %105 : vector<1x8x1xf32> to vector<8x1xf32>
    %cst_59 = arith.constant dense<0xFF800000> : vector<8xf32>
    %107 = vector.multi_reduction <maximumf>, %104, %cst_59 [1] : vector<8x8xf32> to vector<8xf32>
    %108 = vector.shape_cast %107 : vector<8xf32> to vector<8x1xf32>
    %109 = arith.maximumf %106, %108 : vector<8x1xf32>
    %110 = arith.subf %106, %109 : vector<8x1xf32>
    %111 = math.exp %110 : vector<8x1xf32>
    %112 = vector.broadcast %109 : vector<8x1xf32> to vector<8x8xf32>
    %113 = arith.subf %104, %112 : vector<8x8xf32>
    %114 = math.exp %113 : vector<8x8xf32>
    %c2_60 = arith.constant 2 : index
    %c0_61 = arith.constant 0 : index
    %c0_62 = arith.constant 0 : index
    %115 = vector.load %arg8[%c2_60, %c0_61, %c0_62] : memref<4x8x1xf32, #tpu.memory_space<vmem>>, vector<1x8x1xf32>
    %116 = vector.shape_cast %115 : vector<1x8x1xf32> to vector<8x1xf32>
    %117 = arith.mulf %111, %116 : vector<8x1xf32>
    %cst_63 = arith.constant dense<0.000000e+00> : vector<8xf32>
    %118 = vector.multi_reduction <add>, %114, %cst_63 [1] : vector<8x8xf32> to vector<8xf32>
    %119 = vector.shape_cast %118 : vector<8xf32> to vector<8x1xf32>
    %120 = arith.addf %117, %119 : vector<8x1xf32>
    %c2_64 = arith.constant 2 : index
    %c0_65 = arith.constant 0 : index
    %c0_66 = arith.constant 0 : index
    %121 = vector.load %arg8[%c2_64, %c0_65, %c0_66] : memref<4x8x1xf32, #tpu.memory_space<vmem>>, vector<1x8x1xf32>
    %122 = vector.shape_cast %121 : vector<1x8x1xf32> to vector<8x1xf32>
    %123 = vector.shape_cast %120 : vector<8x1xf32> to vector<1x8x1xf32>
    tpu.vector_store %arg8[%c2_64, %c0_65, %c0_66], %123 {strides = array<i32>} : memref<4x8x1xf32, #tpu.memory_space<vmem>>, vector<1x8x1xf32>,
    %c2_67 = arith.constant 2 : index
    %c0_68 = arith.constant 0 : index
    %c0_69 = arith.constant 0 : index
    %124 = vector.load %arg9[%c2_67, %c0_68, %c0_69] : memref<4x8x8xf32, #tpu.memory_space<vmem>>, vector<1x8x8xf32>
    %125 = vector.shape_cast %124 : vector<1x8x8xf32> to vector<8x8xf32>
    %126 = vector.broadcast %111 : vector<8x1xf32> to vector<8x8xf32>
    %127 = arith.mulf %126, %125 : vector<8x8xf32>
    %128 = arith.truncf %114 : vector<8x8xf32> to vector<8x8xbf16>
    %cst_70 = arith.constant dense<0.000000e+00> : vector<8x8xf32>
    %129 = tpu.matmul %128, %100, %cst_70 {dimension_numbers = #tpu.dot_dimension_numbers<[1], [0], [0], [1], [0, 0, 1, 1], [], []>} : vector<8x8xbf16>, vector<8x8xbf16>, vector<8x8xf32> -> vector<8x8xf32>
    %130 = arith.addf %127, %129 : vector<8x8xf32>
    %c2_71 = arith.constant 2 : index
    %c0_72 = arith.constant 0 : index
    %c0_73 = arith.constant 0 : index
    %131 = vector.load %arg9[%c2_71, %c0_72, %c0_73] : memref<4x8x8xf32, #tpu.memory_space<vmem>>, vector<1x8x8xf32>
    %132 = vector.shape_cast %131 : vector<1x8x8xf32> to vector<8x8xf32>
    %133 = vector.shape_cast %130 : vector<8x8xf32> to vector<1x8x8xf32>
    tpu.vector_store %arg9[%c2_71, %c0_72, %c0_73], %133 {strides = array<i32>} : memref<4x8x8xf32, #tpu.memory_space<vmem>>, vector<1x8x8xf32>,
    %c2_74 = arith.constant 2 : index
    %c0_75 = arith.constant 0 : index
    %c0_76 = arith.constant 0 : index
    %134 = vector.load %arg7[%c2_74, %c0_75, %c0_76] : memref<4x8x1xf32, #tpu.memory_space<vmem>>, vector<1x8x1xf32>
    %135 = vector.shape_cast %134 : vector<1x8x1xf32> to vector<8x1xf32>
    %136 = vector.shape_cast %109 : vector<8x1xf32> to vector<1x8x1xf32>
    tpu.vector_store %arg7[%c2_74, %c0_75, %c0_76], %136 {strides = array<i32>} : memref<4x8x1xf32, #tpu.memory_space<vmem>>, vector<1x8x1xf32>,
    %137 = vector.extract_strided_slice %6 {offsets = [0, 24], sizes = [8, 8], strides = [1, 1]} : vector<8x32xbf16> to vector<8x8xbf16>
    %138 = vector.extract_strided_slice %8 {offsets = [0, 24], sizes = [8, 8], strides = [1, 1]} : vector<8x32xbf16> to vector<8x8xbf16>
    %139 = vector.extract_strided_slice %10 {offsets = [0, 24], sizes = [8, 8], strides = [1, 1]} : vector<8x32xbf16> to vector<8x8xbf16>
    %140 = tpu.transpose %138, [1, 0] : vector<8x8xbf16> -> vector<8x8xbf16>
    %cst_77 = arith.constant dense<0.000000e+00> : vector<8x8xf32>
    %141 = tpu.matmul %137, %140, %cst_77 {dimension_numbers = #tpu.dot_dimension_numbers<[1], [0], [0], [1], [0, 0, 1, 1], [], []>} : vector<8x8xbf16>, vector<8x8xbf16>, vector<8x8xf32> -> vector<8x8xf32>
    %cst_78 = arith.constant -1.000000e+30 : f32
    %142 = vector.broadcast %cst_78 : f32 to vector<8x8xf32>
    %143 = arith.select %19, %141, %142 : vector<8x8xi1>, vector<8x8xf32>
    %c3 = arith.constant 3 : index
    %c0_79 = arith.constant 0 : index
    %c0_80 = arith.constant 0 : index
    %144 = vector.load %arg7[%c3, %c0_79, %c0_80] : memref<4x8x1xf32, #tpu.memory_space<vmem>>, vector<1x8x1xf32>
    %145 = vector.shape_cast %144 : vector<1x8x1xf32> to vector<8x1xf32>
    %cst_81 = arith.constant dense<0xFF800000> : vector<8xf32>
    %146 = vector.multi_reduction <maximumf>, %143, %cst_81 [1] : vector<8x8xf32> to vector<8xf32>
    %147 = vector.shape_cast %146 : vector<8xf32> to vector<8x1xf32>
    %148 = arith.maximumf %145, %147 : vector<8x1xf32>
    %149 = arith.subf %145, %148 : vector<8x1xf32>
    %150 = math.exp %149 : vector<8x1xf32>
    %151 = vector.broadcast %148 : vector<8x1xf32> to vector<8x8xf32>
    %152 = arith.subf %143, %151 : vector<8x8xf32>
    %153 = math.exp %152 : vector<8x8xf32>
    %c3_82 = arith.constant 3 : index
    %c0_83 = arith.constant 0 : index
    %c0_84 = arith.constant 0 : index
    %154 = vector.load %arg8[%c3_82, %c0_83, %c0_84] : memref<4x8x1xf32, #tpu.memory_space<vmem>>, vector<1x8x1xf32>
    %155 = vector.shape_cast %154 : vector<1x8x1xf32> to vector<8x1xf32>
    %156 = arith.mulf %150, %155 : vector<8x1xf32>
    %cst_85 = arith.constant dense<0.000000e+00> : vector<8xf32>
    %157 = vector.multi_reduction <add>, %153, %cst_85 [1] : vector<8x8xf32> to vector<8xf32>
    %158 = vector.shape_cast %157 : vector<8xf32> to vector<8x1xf32>
    %159 = arith.addf %156, %158 : vector<8x1xf32>
    %c3_86 = arith.constant 3 : index
    %c0_87 = arith.constant 0 : index
    %c0_88 = arith.constant 0 : index
    %160 = vector.load %arg8[%c3_86, %c0_87, %c0_88] : memref<4x8x1xf32, #tpu.memory_space<vmem>>, vector<1x8x1xf32>
    %161 = vector.shape_cast %160 : vector<1x8x1xf32> to vector<8x1xf32>
    %162 = vector.shape_cast %159 : vector<8x1xf32> to vector<1x8x1xf32>
    tpu.vector_store %arg8[%c3_86, %c0_87, %c0_88], %162 {strides = array<i32>} : memref<4x8x1xf32, #tpu.memory_space<vmem>>, vector<1x8x1xf32>,
    %c3_89 = arith.constant 3 : index
    %c0_90 = arith.constant 0 : index
    %c0_91 = arith.constant 0 : index
    %163 = vector.load %arg9[%c3_89, %c0_90, %c0_91] : memref<4x8x8xf32, #tpu.memory_space<vmem>>, vector<1x8x8xf32>
    %164 = vector.shape_cast %163 : vector<1x8x8xf32> to vector<8x8xf32>
    %165 = vector.broadcast %150 : vector<8x1xf32> to vector<8x8xf32>
    %166 = arith.mulf %165, %164 : vector<8x8xf32>
    %167 = arith.truncf %153 : vector<8x8xf32> to vector<8x8xbf16>
    %cst_92 = arith.constant dense<0.000000e+00> : vector<8x8xf32>
    %168 = tpu.matmul %167, %139, %cst_92 {dimension_numbers = #tpu.dot_dimension_numbers<[1], [0], [0], [1], [0, 0, 1, 1], [], []>} : vector<8x8xbf16>, vector<8x8xbf16>, vector<8x8xf32> -> vector<8x8xf32>
    %169 = arith.addf %166, %168 : vector<8x8xf32>
    %c3_93 = arith.constant 3 : index
    %c0_94 = arith.constant 0 : index
    %c0_95 = arith.constant 0 : index
    %170 = vector.load %arg9[%c3_93, %c0_94, %c0_95] : memref<4x8x8xf32, #tpu.memory_space<vmem>>, vector<1x8x8xf32>
    %171 = vector.shape_cast %170 : vector<1x8x8xf32> to vector<8x8xf32>
    %172 = vector.shape_cast %169 : vector<8x8xf32> to vector<1x8x8xf32>
    tpu.vector_store %arg9[%c3_93, %c0_94, %c0_95], %172 {strides = array<i32>} : memref<4x8x8xf32, #tpu.memory_space<vmem>>, vector<1x8x8xf32>,
    %c3_96 = arith.constant 3 : index
    %c0_97 = arith.constant 0 : index
    %c0_98 = arith.constant 0 : index
    %173 = vector.load %arg7[%c3_96, %c0_97, %c0_98] : memref<4x8x1xf32, #tpu.memory_space<vmem>>, vector<1x8x1xf32>
    %174 = vector.shape_cast %173 : vector<1x8x1xf32> to vector<8x1xf32>
    %175 = vector.shape_cast %148 : vector<8x1xf32> to vector<1x8x1xf32>
    tpu.vector_store %arg7[%c3_96, %c0_97, %c0_98], %175 {strides = array<i32>} : memref<4x8x1xf32, #tpu.memory_space<vmem>>, vector<1x8x1xf32>,
    %c0_i32_99 = arith.constant 0 : i32
    %176 = arith.cmpi eq, %arg2, %c0_i32_99 : i32
    %177 = arith.extui %176 : i1 to i32
    %c0_i32_100 = arith.constant 0 : i32
    %178 = arith.cmpi ne, %177, %c0_i32_100 : i32
    scf.if %178 {
      %c0_101 = arith.constant 0 : index
      %c0_102 = arith.constant 0 : index
      %c0_103 = arith.constant 0 : index
      %179 = vector.load %arg9[%c0_101, %c0_102, %c0_103] : memref<4x8x8xf32, #tpu.memory_space<vmem>>, vector<1x8x8xf32>
      %180 = vector.shape_cast %179 : vector<1x8x8xf32> to vector<8x8xf32>
      %c0_104 = arith.constant 0 : index
      %c0_105 = arith.constant 0 : index
      %c0_106 = arith.constant 0 : index
      %181 = vector.load %arg8[%c0_104, %c0_105, %c0_106] : memref<4x8x1xf32, #tpu.memory_space<vmem>>, vector<1x8x1xf32>
      %182 = vector.shape_cast %181 : vector<1x8x1xf32> to vector<8x1xf32>
      %183 = tpu.reciprocal %182 {approx = true} : vector<8x1xf32> -> vector<8x1xf32>
      %184 = vector.broadcast %183 : vector<8x1xf32> to vector<8x8xf32>
      %185 = arith.mulf %180, %184 : vector<8x8xf32>
      %c1_107 = arith.constant 1 : index
      %c0_108 = arith.constant 0 : index
      %c0_109 = arith.constant 0 : index
      %186 = vector.load %arg9[%c1_107, %c0_108, %c0_109] : memref<4x8x8xf32, #tpu.memory_space<vmem>>, vector<1x8x8xf32>
      %187 = vector.shape_cast %186 : vector<1x8x8xf32> to vector<8x8xf32>
      %c1_110 = arith.constant 1 : index
      %c0_111 = arith.constant 0 : index
      %c0_112 = arith.constant 0 : index
      %188 = vector.load %arg8[%c1_110, %c0_111, %c0_112] : memref<4x8x1xf32, #tpu.memory_space<vmem>>, vector<1x8x1xf32>
      %189 = vector.shape_cast %188 : vector<1x8x1xf32> to vector<8x1xf32>
      %190 = tpu.reciprocal %189 {approx = true} : vector<8x1xf32> -> vector<8x1xf32>
      %191 = vector.broadcast %190 : vector<8x1xf32> to vector<8x8xf32>
      %192 = arith.mulf %187, %191 : vector<8x8xf32>
      %c2_113 = arith.constant 2 : index
      %c0_114 = arith.constant 0 : index
      %c0_115 = arith.constant 0 : index
      %193 = vector.load %arg9[%c2_113, %c0_114, %c0_115] : memref<4x8x8xf32, #tpu.memory_space<vmem>>, vector<1x8x8xf32>
      %194 = vector.shape_cast %193 : vector<1x8x8xf32> to vector<8x8xf32>
      %c2_116 = arith.constant 2 : index
      %c0_117 = arith.constant 0 : index
      %c0_118 = arith.constant 0 : index
      %195 = vector.load %arg8[%c2_116, %c0_117, %c0_118] : memref<4x8x1xf32, #tpu.memory_space<vmem>>, vector<1x8x1xf32>
      %196 = vector.shape_cast %195 : vector<1x8x1xf32> to vector<8x1xf32>
      %197 = tpu.reciprocal %196 {approx = true} : vector<8x1xf32> -> vector<8x1xf32>
      %198 = vector.broadcast %197 : vector<8x1xf32> to vector<8x8xf32>
      %199 = arith.mulf %194, %198 : vector<8x8xf32>
      %c3_119 = arith.constant 3 : index
      %c0_120 = arith.constant 0 : index
      %c0_121 = arith.constant 0 : index
      %200 = vector.load %arg9[%c3_119, %c0_120, %c0_121] : memref<4x8x8xf32, #tpu.memory_space<vmem>>, vector<1x8x8xf32>
      %201 = vector.shape_cast %200 : vector<1x8x8xf32> to vector<8x8xf32>
      %c3_122 = arith.constant 3 : index
      %c0_123 = arith.constant 0 : index
      %c0_124 = arith.constant 0 : index
      %202 = vector.load %arg8[%c3_122, %c0_123, %c0_124] : memref<4x8x1xf32, #tpu.memory_space<vmem>>, vector<1x8x1xf32>
      %203 = vector.shape_cast %202 : vector<1x8x1xf32> to vector<8x1xf32>
      %204 = tpu.reciprocal %203 {approx = true} : vector<8x1xf32> -> vector<8x1xf32>
      %205 = vector.broadcast %204 : vector<8x1xf32> to vector<8x8xf32>
      %206 = arith.mulf %201, %205 : vector<8x8xf32>
      %207 = tpu.concatenate %185, %192, %199, %206 in 1 : vector<8x8xf32>, vector<8x8xf32>, vector<8x8xf32>, vector<8x8xf32> -> vector<8x32xf32>
      %208 = arith.truncf %207 : vector<8x32xf32> to vector<8x32xbf16>
      %c0_125 = arith.constant 0 : index
      %c0_126 = arith.constant 0 : index
      %c0_127 = arith.constant 0 : index
      %209 = vector.load %arg6[%c0_125, %c0_126, %c0_127] : memref<1x8x32xbf16, #tpu.memory_space<vmem>>, vector<1x8x32xbf16>
      %210 = vector.shape_cast %209 : vector<1x8x32xbf16> to vector<8x32xbf16>
      %211 = vector.shape_cast %208 : vector<8x32xbf16> to vector<1x8x32xbf16>
      tpu.vector_store %arg6[%c0_125, %c0_126, %c0_127], %211 {strides = array<i32>} : memref<1x8x32xbf16, #tpu.memory_space<vmem>>, vector<1x8x32xbf16>,
    } else {
    }
    return
  }
  func.func @transform_0(%arg0: i32, %arg1: i32, %arg2: i32) -> (i32, i32, i32) {
    %c0_i32 = arith.constant 0 : i32
    %c0_i32_0 = arith.constant 0 : i32
    return %arg0, %arg1, %c0_i32 : i32, i32, i32
  }
  func.func @transform_1(%arg0: i32, %arg1: i32, %arg2: i32) -> (i32, i32, i32) {
    %c0_i32 = arith.constant 0 : i32
    %c0_i32_0 = arith.constant 0 : i32
    return %arg0, %arg2, %c0_i32 : i32, i32, i32
  }
  func.func @transform_2(%arg0: i32, %arg1: i32, %arg2: i32) -> (i32, i32, i32) {
    %c0_i32 = arith.constant 0 : i32
    %c0_i32_0 = arith.constant 0 : i32
    return %arg0, %arg2, %c0_i32 : i32, i32, i32
  }
  func.func @transform_3(%arg0: i32, %arg1: i32, %arg2: i32) -> (i32, i32, i32) {
    %c0_i32 = arith.constant 0 : i32
    %c0_i32_0 = arith.constant 0 : i32
    return %arg0, %arg1, %c0_i32 : i32, i32, i32
  }
}

module attributes {stable_mosaic.version = 11 : i64} {
  func.func @_linear_kernel(%arg0: i32, %arg1: i32, %arg2: i32, %arg3: memref<16x32xbf16, #tpu.memory_space<vmem>>, %arg4: memref<32x64xbf16, #tpu.memory_space<vmem>>, %arg5: memref<1x64xf32, #tpu.memory_space<vmem>>, %arg6: memref<16x64xbf16, #tpu.memory_space<vmem>>, %arg7: memref<16x64xf32, #tpu.memory_space<vmem>>) attributes {dimension_semantics = [#tpu.dimension_semantics<parallel>, #tpu.dimension_semantics<parallel>, #tpu.dimension_semantics<arbitrary>], iteration_bounds = array<i64: 1, 1, 1>, scalar_prefetch = 0 : i64, scratch_operands = 1 : i64, tpu.core_type = #tpu.core_type<tc>, window_params = [{transform_indices = @transform_0, window_bounds = array<i64: 16, 32>}, {transform_indices = @transform_1, window_bounds = array<i64: 32, 64>}, {transform_indices = @transform_2, window_bounds = array<i64: 1, 64>}, {transform_indices = @transform_3, window_bounds = array<i64: 16, 64>}]} {
    %c0_i32 = arith.constant 0 : i32
    %0 = arith.cmpi eq, %arg2, %c0_i32 : i32
    %1 = arith.extui %0 : i1 to i32
    %c0_i32_0 = arith.constant 0 : i32
    %2 = arith.cmpi ne, %1, %c0_i32_0 : i32
    scf.if %2 {
      %cst_10 = arith.constant 0.000000e+00 : f32
      %12 = vector.broadcast %cst_10 : f32 to vector<16x64xf32>
      %c0_11 = arith.constant 0 : index
      %c0_12 = arith.constant 0 : index
      %13 = vector.load %arg7[%c0_11, %c0_12] : memref<16x64xf32, #tpu.memory_space<vmem>>, vector<16x64xf32>
      tpu.vector_store %arg7[%c0_11, %c0_12], %12 {strides = array<i32>} : memref<16x64xf32, #tpu.memory_space<vmem>>, vector<16x64xf32>,
    } else {
    }
    %c0 = arith.constant 0 : index
    %c0_1 = arith.constant 0 : index
    %3 = vector.load %arg7[%c0, %c0_1] : memref<16x64xf32, #tpu.memory_space<vmem>>, vector<16x64xf32>
    %c0_2 = arith.constant 0 : index
    %c0_3 = arith.constant 0 : index
    %4 = vector.load %arg3[%c0_2, %c0_3] : memref<16x32xbf16, #tpu.memory_space<vmem>>, vector<16x32xbf16>
    %c0_4 = arith.constant 0 : index
    %c0_5 = arith.constant 0 : index
    %5 = vector.load %arg4[%c0_4, %c0_5] : memref<32x64xbf16, #tpu.memory_space<vmem>>, vector<32x64xbf16>
    %cst = arith.constant dense<0.000000e+00> : vector<16x64xf32>
    %6 = tpu.matmul %4, %5, %cst {dimension_numbers = #tpu.dot_dimension_numbers<[1], [0], [0], [1], [0, 0, 1, 1], [], []>} : vector<16x32xbf16>, vector<32x64xbf16>, vector<16x64xf32> -> vector<16x64xf32>
    %7 = arith.addf %3, %6 : vector<16x64xf32>
    %c0_6 = arith.constant 0 : index
    %c0_7 = arith.constant 0 : index
    %8 = vector.load %arg7[%c0_6, %c0_7] : memref<16x64xf32, #tpu.memory_space<vmem>>, vector<16x64xf32>
    tpu.vector_store %arg7[%c0_6, %c0_7], %7 {strides = array<i32>} : memref<16x64xf32, #tpu.memory_space<vmem>>, vector<16x64xf32>,
    %c0_i32_8 = arith.constant 0 : i32
    %9 = arith.cmpi eq, %arg2, %c0_i32_8 : i32
    %10 = arith.extui %9 : i1 to i32
    %c0_i32_9 = arith.constant 0 : i32
    %11 = arith.cmpi ne, %10, %c0_i32_9 : i32
    scf.if %11 {
      %c0_10 = arith.constant 0 : index
      %c0_11 = arith.constant 0 : index
      %12 = vector.load %arg7[%c0_10, %c0_11] : memref<16x64xf32, #tpu.memory_space<vmem>>, vector<16x64xf32>
      %c0_12 = arith.constant 0 : index
      %c0_13 = arith.constant 0 : index
      %13 = vector.load %arg5[%c0_12, %c0_13] : memref<1x64xf32, #tpu.memory_space<vmem>>, vector<1x64xf32>
      %14 = vector.broadcast %13 : vector<1x64xf32> to vector<16x64xf32>
      %15 = arith.addf %12, %14 : vector<16x64xf32>
      %16 = arith.truncf %15 : vector<16x64xf32> to vector<16x64xbf16>
      %c0_14 = arith.constant 0 : index
      %c0_15 = arith.constant 0 : index
      %17 = vector.load %arg6[%c0_14, %c0_15] : memref<16x64xbf16, #tpu.memory_space<vmem>>, vector<16x64xbf16>
      tpu.vector_store %arg6[%c0_14, %c0_15], %16 {strides = array<i32>} : memref<16x64xbf16, #tpu.memory_space<vmem>>, vector<16x64xbf16>,
    } else {
    }
    return
  }
  func.func @transform_0(%arg0: i32, %arg1: i32, %arg2: i32) -> (i32, i32) {
    %c0_i32 = arith.constant 0 : i32
    return %arg0, %arg2 : i32, i32
  }
  func.func @transform_1(%arg0: i32, %arg1: i32, %arg2: i32) -> (i32, i32) {
    %c0_i32 = arith.constant 0 : i32
    return %arg2, %arg1 : i32, i32
  }
  func.func @transform_2(%arg0: i32, %arg1: i32, %arg2: i32) -> (i32, i32) {
    %c0_i32 = arith.constant 0 : i32
    %c0_i32_0 = arith.constant 0 : i32
    return %c0_i32, %arg1 : i32, i32
  }
  func.func @transform_3(%arg0: i32, %arg1: i32, %arg2: i32) -> (i32, i32) {
    %c0_i32 = arith.constant 0 : i32
    return %arg0, %arg1 : i32, i32
  }
}

module attributes {stable_mosaic.version = 11 : i64} {
  func.func @_linear_kernel(%arg0: i32, %arg1: i32, %arg2: i32, %arg3: memref<16x32xbf16, #tpu.memory_space<vmem>>, %arg4: memref<32x64xbf16, #tpu.memory_space<vmem>>, %arg5: memref<1x64xf32, #tpu.memory_space<vmem>>, %arg6: memref<16x64xf32, #tpu.memory_space<vmem>>, %arg7: memref<16x64xf32, #tpu.memory_space<vmem>>) attributes {dimension_semantics = [#tpu.dimension_semantics<parallel>, #tpu.dimension_semantics<parallel>, #tpu.dimension_semantics<arbitrary>], iteration_bounds = array<i64: 1, 1, 1>, scalar_prefetch = 0 : i64, scratch_operands = 1 : i64, tpu.core_type = #tpu.core_type<tc>, window_params = [{transform_indices = @transform_0, window_bounds = array<i64: 16, 32>}, {transform_indices = @transform_1, window_bounds = array<i64: 32, 64>}, {transform_indices = @transform_2, window_bounds = array<i64: 1, 64>}, {transform_indices = @transform_3, window_bounds = array<i64: 16, 64>}]} {
    %c0_i32 = arith.constant 0 : i32
    %0 = arith.cmpi eq, %arg2, %c0_i32 : i32
    %1 = arith.extui %0 : i1 to i32
    %c0_i32_0 = arith.constant 0 : i32
    %2 = arith.cmpi ne, %1, %c0_i32_0 : i32
    scf.if %2 {
      %cst_10 = arith.constant 0.000000e+00 : f32
      %12 = vector.broadcast %cst_10 : f32 to vector<16x64xf32>
      %c0_11 = arith.constant 0 : index
      %c0_12 = arith.constant 0 : index
      %13 = vector.load %arg7[%c0_11, %c0_12] : memref<16x64xf32, #tpu.memory_space<vmem>>, vector<16x64xf32>
      tpu.vector_store %arg7[%c0_11, %c0_12], %12 {strides = array<i32>} : memref<16x64xf32, #tpu.memory_space<vmem>>, vector<16x64xf32>,
    } else {
    }
    %c0 = arith.constant 0 : index
    %c0_1 = arith.constant 0 : index
    %3 = vector.load %arg7[%c0, %c0_1] : memref<16x64xf32, #tpu.memory_space<vmem>>, vector<16x64xf32>
    %c0_2 = arith.constant 0 : index
    %c0_3 = arith.constant 0 : index
    %4 = vector.load %arg3[%c0_2, %c0_3] : memref<16x32xbf16, #tpu.memory_space<vmem>>, vector<16x32xbf16>
    %c0_4 = arith.constant 0 : index
    %c0_5 = arith.constant 0 : index
    %5 = vector.load %arg4[%c0_4, %c0_5] : memref<32x64xbf16, #tpu.memory_space<vmem>>, vector<32x64xbf16>
    %cst = arith.constant dense<0.000000e+00> : vector<16x64xf32>
    %6 = tpu.matmul %4, %5, %cst {dimension_numbers = #tpu.dot_dimension_numbers<[1], [0], [0], [1], [0, 0, 1, 1], [], []>} : vector<16x32xbf16>, vector<32x64xbf16>, vector<16x64xf32> -> vector<16x64xf32>
    %7 = arith.addf %3, %6 : vector<16x64xf32>
    %c0_6 = arith.constant 0 : index
    %c0_7 = arith.constant 0 : index
    %8 = vector.load %arg7[%c0_6, %c0_7] : memref<16x64xf32, #tpu.memory_space<vmem>>, vector<16x64xf32>
    tpu.vector_store %arg7[%c0_6, %c0_7], %7 {strides = array<i32>} : memref<16x64xf32, #tpu.memory_space<vmem>>, vector<16x64xf32>,
    %c0_i32_8 = arith.constant 0 : i32
    %9 = arith.cmpi eq, %arg2, %c0_i32_8 : i32
    %10 = arith.extui %9 : i1 to i32
    %c0_i32_9 = arith.constant 0 : i32
    %11 = arith.cmpi ne, %10, %c0_i32_9 : i32
    scf.if %11 {
      %c0_10 = arith.constant 0 : index
      %c0_11 = arith.constant 0 : index
      %12 = vector.load %arg7[%c0_10, %c0_11] : memref<16x64xf32, #tpu.memory_space<vmem>>, vector<16x64xf32>
      %c0_12 = arith.constant 0 : index
      %c0_13 = arith.constant 0 : index
      %13 = vector.load %arg5[%c0_12, %c0_13] : memref<1x64xf32, #tpu.memory_space<vmem>>, vector<1x64xf32>
      %14 = vector.broadcast %13 : vector<1x64xf32> to vector<16x64xf32>
      %15 = arith.addf %12, %14 : vector<16x64xf32>
      %c0_14 = arith.constant 0 : index
      %c0_15 = arith.constant 0 : index
      %16 = vector.load %arg6[%c0_14, %c0_15] : memref<16x64xf32, #tpu.memory_space<vmem>>, vector<16x64xf32>
      tpu.vector_store %arg6[%c0_14, %c0_15], %15 {strides = array<i32>} : memref<16x64xf32, #tpu.memory_space<vmem>>, vector<16x64xf32>,
    } else {
    }
    return
  }
  func.func @transform_0(%arg0: i32, %arg1: i32, %arg2: i32) -> (i32, i32) {
    %c0_i32 = arith.constant 0 : i32
    return %arg0, %arg2 : i32, i32
  }
  func.func @transform_1(%arg0: i32, %arg1: i32, %arg2: i32) -> (i32, i32) {
    %c0_i32 = arith.constant 0 : i32
    return %arg2, %arg1 : i32, i32
  }
  func.func @transform_2(%arg0: i32, %arg1: i32, %arg2: i32) -> (i32, i32) {
    %c0_i32 = arith.constant 0 : i32
    %c0_i32_0 = arith.constant 0 : i32
    return %c0_i32, %arg1 : i32, i32
  }
  func.func @transform_3(%arg0: i32, %arg1: i32, %arg2: i32) -> (i32, i32) {
    %c0_i32 = arith.constant 0 : i32
    return %arg0, %arg1 : i32, i32
  }
}

</mosaic_0001>

<llo_original>
// kernel: transformer_forward.27
$region0: #{transformer_forward.27}
  #allocation0 [shape = 'u32[]', space=smem, size = 0x4, offset = 0x4, fixed_abs, tag = 'smem constant byte address 0x4 - core index']
  #allocation1 [shape = 'u32[144,128]{1,0:T(1,128)}', space=vmem, size = 0x12000, scoped, tag = 'internal scratch']
  #allocation2 [shape = 'f32[16,32]{1,0:T(8,128)}', space=vmem, size = 0x2000, scoped, tag = 'scratch operand']
  %s0 = inlined_call_operand.vmem [shape: bf16[16,32], index: 0, kind: input, shape index: {}]
  %s1 = inlined_call_operand.vmem [shape: bf16[32,32], index: 1, kind: input, shape index: {}]
  %s2 = inlined_call_operand.vmem [shape: f32[1,32], index: 2, kind: input, shape index: {}]
  %s3 = inlined_call_operand.vmem [shape: bf16[16,32], index: 3, kind: input, shape index: {}]
  %s4 = inlined_call_operand.vmem [shape: f32[1,32], index: 4, kind: input, shape index: {}]
  %s5 = inlined_call_operand.vmem [shape: f32[1,32], index: 5, kind: input, shape index: {}]
  %s6 = inlined_call_operand.vmem [shape: bf16[16,32], index: 6, kind: output, shape index: {}]
  %s7 = sld [smem:[#allocation0]]
  $region42: #{transformer_forward.27} parent=0
    _
  %s9 = ssub.s32 1, %s7
  %s10 = scalar_select 0, %s9, %s7
  // Predicated region
  $region2: #{transformer_forward.27} parent=0 // pred_check
    _
  $region3: #{transformer_forward.27} parent=0 // pred_check_branch
    %12 = sbr.rel (0) target = $region5
  $region4: #{transformer_forward.27} parent=0 // pred_region
    _
  $region5: #{transformer_forward.27} parent=0 // pred_fallthru
    _
  // Predicated region
  $region6: #{transformer_forward.27} parent=0 // pred_check
    _
  $region7: #{transformer_forward.27} parent=0 // pred_check_branch
    %14 = sbr.rel (0) target = $region9
  $region8: #{transformer_forward.27} parent=0 // pred_region
    _
  $region9: #{transformer_forward.27} parent=0 // pred_fallthru
    _
  // Predicated region
  $region10: #{transformer_forward.27} parent=0 // pred_check
    _
  $region11: #{transformer_forward.27} parent=0 // pred_check_branch
    %16 = sbr.rel (0) target = $region13
  $region12: #{transformer_forward.27} parent=0 // pred_region
    _
  $region13: #{transformer_forward.27} parent=0 // pred_fallthru
    _
  // Predicated region
  $region14: #{transformer_forward.27} parent=0 // pred_check
    _
  $region15: #{transformer_forward.27} parent=0 // pred_check_branch
    %18 = sbr.rel (0) target = $region17
  $region16: #{transformer_forward.27} parent=0 // pred_region
    _
  $region17: #{transformer_forward.27} parent=0 // pred_fallthru
    _
  // Predicated region
  $region18: #{transformer_forward.27} parent=0 // pred_check
    _
  $region19: #{transformer_forward.27} parent=0 // pred_check_branch
    %20 = sbr.rel (0) target = $region21
  $region20: #{transformer_forward.27} parent=0 // pred_region
    _
  $region21: #{transformer_forward.27} parent=0 // pred_fallthru
    _
  // Predicated region
  $region22: #{transformer_forward.27} parent=0 // pred_check
    _
  $region23: #{transformer_forward.27} parent=0 // pred_check_branch
    %22 = sbr.rel (0) target = $region25
  $region24: #{transformer_forward.27} parent=0 // pred_region
    _
  $region25: #{transformer_forward.27} parent=0 // pred_fallthru
    _
  %p24 = scmp.eq.s32.totalorder 0, 0
  // Predicated region
  $region26: #{transformer_forward.27} parent=0 // pred_check
    %p25 = pneg %p24
  $region27: #{transformer_forward.27} parent=0 // pred_check_branch
    %27 = sbr.rel (%p25) target = $region29
  $region28: #{transformer_forward.27} parent=0 // pred_region
    %vm28 = vcmask 261120
    %29 = vst.msk [vmem:[#allocation2] sm:$0xff] %vm28, 0.0
    %30 = vst.msk [vmem:[#allocation2 + $0x8] sm:$0xff] %vm28, 0.0
  $region29: #{transformer_forward.27} parent=0 // pred_fallthru
    _
  %v31 = vld [vmem:[#allocation2] sm:$0xff]
  %v32 = vld [vmem:[#allocation2 + $0x8] sm:$0xff]
  %v33 = vld [vmem:[%s0] sm:$0xf]
  %v34 = vld [vmem:[%s0 + $0x4] sm:$0xf]
  %v35 = vld [vmem:[%s1] sm:$0xf]
  %v36 = vld [vmem:[%s1 + $0x4] sm:$0xf]
  %v37 = vld [vmem:[%s1 + $0x8] sm:$0xf]
  %v38 = vld [vmem:[%s1 + $0xc] sm:$0xf]
  %v41 = vunpack.c.l.b16 %v33
  %v42 = vunpack.c.l.b16 %v34
  %v43 = vpack.c.b16 %v42, %v41
  %v48 = vunpack.c.l.b16 %v35
  %v49 = vunpack.c.l.b16 %v36
  %v50 = vunpack.c.l.b16 %v37
  %v51 = vunpack.c.l.b16 %v38
  %v52 = vpack.c.b16 %v49, %v48
  %v53 = vpack.c.b16 %v51, %v50
  %vm56 = vcmask 261120
  %v58 = vsel %vm56, %v43, 0
  %60 = vmatprep.subr.bf16.mxu0 0
  %61 = vmatpush1.bf16.msra.mxu0 %v52
  %62 = vmatprep.subr.bf16.mxu0 0
  %63 = vmatpush1.bf16.msra.mxu0 %v53
  %64 = vmatprep.subr.bf16.mxu0 0
  %65 = vmatpush1.bf16.msra.mxu0 0
  %66 = vmatprep.subr.bf16.mxu0 0
  %67 = vmatpush1.bf16.msra.mxu0 0
  %68 = vmatprep.subr.bf16.mxu0 0
  %69 = vmatpush1.bf16.msra.mxu0 0
  %70 = vmatprep.subr.bf16.mxu0 0
  %71 = vmatpush1.bf16.msra.mxu0 0
  %72 = vmatprep.subr.bf16.mxu0 0
  %73 = vmatpush1.bf16.msra.mxu0 0
  %74 = vmatprep.subr.bf16.mxu0 0
  %75 = vmatpush1.bf16.msra.mxu0 0
  %76 = vmatprep.subr.bf16.mxu0 0
  %77 = vmatpush1.bf16.msra.mxu0 0
  %78 = vmatprep.subr.bf16.mxu0 0
  %79 = vmatpush1.bf16.msra.mxu0 0
  %80 = vmatprep.subr.bf16.mxu0 0
  %81 = vmatpush1.bf16.msra.mxu0 0
  %82 = vmatprep.subr.bf16.mxu0 0
  %83 = vmatpush1.bf16.msra.mxu0 0
  %84 = vmatprep.subr.bf16.mxu0 0
  %85 = vmatpush1.bf16.msra.mxu0 0
  %86 = vmatprep.subr.bf16.mxu0 0
  %87 = vmatpush1.bf16.msra.mxu0 0
  %88 = vmatprep.subr.bf16.mxu0 0
  %89 = vmatpush1.bf16.msra.mxu0 0
  %90 = vmatprep.subr.bf16.mxu0 0
  %91 = vmatpush1.bf16.msra.mxu0 0
  %92 = vmatprep.mubr.bf16.mxu0 0
  %93 = vmatmul.mubr.bf16.gmra.mrb[0].mxu0 %v58
  %v94 = vpop.f32.mrb[0].mxu0
  %v95 = vadd.f32 0.0, %v94
  %v96 = vpop.f32.mrb[0].mxu0
  %v97 = vpop.f32.mrb[0].mxu0
  %v98 = vadd.f32 0.0, %v97
  %v99 = vpop.f32.mrb[0].mxu0
  %100 = vdwg.mxu0
  %v101 = vadd.f32 %v31, %v95
  %v102 = vadd.f32 %v32, %v98
  %103 = vst.msk [vmem:[#allocation2] sm:$0xff] %vm56, %v101
  %104 = vst.msk [vmem:[#allocation2 + $0x8] sm:$0xff] %vm56, %v102
  // Predicated region
  $region30: #{transformer_forward.27} parent=0 // pred_check
    %p105 = pneg %p24
  $region31: #{transformer_forward.27} parent=0 // pred_check_branch
    %107 = sbr.rel (%p105) target = $region33
  $region32: #{transformer_forward.27} parent=0 // pred_region
    %v108 = vld [vmem:[#allocation2] sm:$0xff]
    %v109 = vld [vmem:[#allocation2 + $0x8] sm:$0xff]
    %v110 = vld [vmem:[%s2] sm:$0x1]
    %v112 = vlaneseq
    %v113 = vshrl.u32 %v112, 7
    %v114 = vsub.s32 0, %v113
    %v115 = vrot.slane %v110, %v114
    %v117 = vadd.f32 %v108, %v115
    %v118 = vadd.f32 %v109, %v115
    %v119 = vld [vmem:[%s3] sm:$0xf]
    %v120 = vld [vmem:[%s3 + $0x4] sm:$0xf]
    %v121 = vunpack.c.l.bf16 %v119
    %v122 = vunpack.c.l.bf16 %v120
    %v123 = vadd.f32 %v117, %v121
    %v124 = vadd.f32 %v118, %v122
    %v125 = vsel %vm56, %v123, 0.0
    %126 = vadd.xlane.f32.xlu0 %v125
    %v127 = vpop.xlane.xlu0 %126
    %v128 = vsel %vm56, %v124, 0.0
    %129 = vadd.xlane.f32.xlu0 %v128
    %v130 = vpop.xlane.xlu0 %129
    %v131 = vrcp.pop 32.0
    %v132 = vmul.f32 %v127, %v131
    %v133 = vmul.f32 %v130, %v131
    %v134 = vsub.f32 %v123, %v132
    %v135 = vsub.f32 %v124, %v133
    %v136 = vmul.f32 %v134, %v134
    %v137 = vmul.f32 %v135, %v135
    %v138 = vsel %vm56, %v136, 0.0
    %139 = vadd.xlane.f32.xlu0 %v138
    %v140 = vpop.xlane.xlu0 %139
    %v141 = vsel %vm56, %v137, 0.0
    %142 = vadd.xlane.f32.xlu0 %v141
    %v143 = vpop.xlane.xlu0 %142
    %v144 = vmul.f32 %v140, %v131
    %v145 = vmul.f32 %v143, %v131
    %v146 = vadd.f32 %v144, 1e-05
    %v147 = vadd.f32 %v145, 1e-05
    %v148 = vrsqrt.pop %v146
    %v149 = vrsqrt.pop %v147
    %v150 = vmul.f32 %v134, %v148
    %v151 = vmul.f32 %v135, %v149
    %v152 = vld [vmem:[%s4] sm:$0x1]
    %v154 = vlaneseq
    %v155 = vshrl.u32 %v154, 7
    %v156 = vsub.s32 0, %v155
    %v157 = vrot.slane %v152, %v156
    %v159 = vmul.f32 %v150, %v157
    %v160 = vmul.f32 %v151, %v157
    %v161 = vld [vmem:[%s5] sm:$0x1]
    %v163 = vlaneseq
    %v164 = vshrl.u32 %v163, 7
    %v165 = vsub.s32 0, %v164
    %v166 = vrot.slane %v161, %v165
    %v168 = vadd.f32 %v159, %v166
    %v169 = vadd.f32 %v160, %v166
    %v170 = vpack.c.bf16 %v169, %v168
    %v172 = vunpack.c.l.b16 %v170
    %v173 = vunpack.c.h.b16 %v170
    %v174 = vpack.c.b16 %v172, %v172
    %v175 = vpack.c.b16 %v173, %v173
    %vm178 = vcmask 257024
    %179 = vst.msk [vmem:[%s6] sm:$0xf] %vm178, %v174
    %180 = vst.msk [vmem:[%s6 + $0x4] sm:$0xf] %vm178, %v175
  $region33: #{transformer_forward.27} parent=0 // pred_fallthru
    _
  // Predicated region
  $region34: #{transformer_forward.27} parent=0 // pred_check
    _
  $region35: #{transformer_forward.27} parent=0 // pred_check_branch
    %182 = sbr.rel (0) target = $region37
  $region36: #{transformer_forward.27} parent=0 // pred_region
    _
  $region37: #{transformer_forward.27} parent=0 // pred_fallthru
    _
  // Predicated region
  $region38: #{transformer_forward.27} parent=0 // pred_check
    _
  $region39: #{transformer_forward.27} parent=0 // pred_check_branch
    %184 = sbr.rel (0) target = $region41
  $region40: #{transformer_forward.27} parent=0 // pred_region
    _
  $region41: #{transformer_forward.27} parent=0 // pred_fallthru
    _

// kernel: transformer_forward.25
$region0: #{transformer_forward.25}
  #allocation0 [shape = 'u32[]', space=smem, size = 0x4, offset = 0x4, fixed_abs, tag = 'smem constant byte address 0x4 - core index']
  #allocation1 [shape = 'u32[144,128]{1,0:T(1,128)}', space=vmem, size = 0x12000, scoped, tag = 'internal scratch']
  #allocation2 [shape = 'f32[16,96]{1,0:T(8,128)}', space=vmem, size = 0x2000, scoped, tag = 'scratch operand']
  %s0 = inlined_call_operand.vmem [shape: bf16[16,32], index: 0, kind: input, shape index: {}]
  %s1 = inlined_call_operand.vmem [shape: bf16[32,96], index: 1, kind: input, shape index: {}]
  %s2 = inlined_call_operand.vmem [shape: f32[1,96], index: 2, kind: input, shape index: {}]
  %s3 = inlined_call_operand.vmem [shape: bf16[16,96], index: 3, kind: output, shape index: {}]
  %s4 = sld [smem:[#allocation0]]
  $region30: #{transformer_forward.25} parent=0
    _
  %s6 = ssub.s32 1, %s4
  %s7 = scalar_select 0, %s6, %s4
  // Predicated region
  $region2: #{transformer_forward.25} parent=0 // pred_check
    _
  $region3: #{transformer_forward.25} parent=0 // pred_check_branch
    %9 = sbr.rel (0) target = $region5
  $region4: #{transformer_forward.25} parent=0 // pred_region
    _
  $region5: #{transformer_forward.25} parent=0 // pred_fallthru
    _
  // Predicated region
  $region6: #{transformer_forward.25} parent=0 // pred_check
    _
  $region7: #{transformer_forward.25} parent=0 // pred_check_branch
    %11 = sbr.rel (0) target = $region9
  $region8: #{transformer_forward.25} parent=0 // pred_region
    _
  $region9: #{transformer_forward.25} parent=0 // pred_fallthru
    _
  // Predicated region
  $region10: #{transformer_forward.25} parent=0 // pred_check
    _
  $region11: #{transformer_forward.25} parent=0 // pred_check_branch
    %13 = sbr.rel (0) target = $region13
  $region12: #{transformer_forward.25} parent=0 // pred_region
    _
  $region13: #{transformer_forward.25} parent=0 // pred_fallthru
    _
  %p15 = scmp.eq.s32.totalorder 0, 0
  // Predicated region
  $region14: #{transformer_forward.25} parent=0 // pred_check
    %p16 = pneg %p15
  $region15: #{transformer_forward.25} parent=0 // pred_check_branch
    %18 = sbr.rel (%p16) target = $region17
  $region16: #{transformer_forward.25} parent=0 // pred_region
    %vm19 = vcmask 785408
    %20 = vst.msk [vmem:[#allocation2] sm:$0xff] %vm19, 0.0
    %21 = vst.msk [vmem:[#allocation2 + $0x8] sm:$0xff] %vm19, 0.0
  $region17: #{transformer_forward.25} parent=0 // pred_fallthru
    _
  %v22 = vld [vmem:[#allocation2] sm:$0xff]
  %v23 = vld [vmem:[#allocation2 + $0x8] sm:$0xff]
  %v24 = vld [vmem:[%s0] sm:$0xf]
  %v25 = vld [vmem:[%s0 + $0x4] sm:$0xf]
  %v26 = vld [vmem:[%s1] sm:$0xf]
  %v27 = vld [vmem:[%s1 + $0x4] sm:$0xf]
  %v28 = vld [vmem:[%s1 + $0x8] sm:$0xf]
  %v29 = vld [vmem:[%s1 + $0xc] sm:$0xf]
  %v32 = vunpack.c.l.b16 %v24
  %v33 = vunpack.c.l.b16 %v25
  %v34 = vpack.c.b16 %v33, %v32
  %v39 = vunpack.c.l.b16 %v26
  %v40 = vunpack.c.l.b16 %v27
  %v41 = vunpack.c.l.b16 %v28
  %v42 = vunpack.c.l.b16 %v29
  %v43 = vpack.c.b16 %v40, %v39
  %v44 = vpack.c.b16 %v42, %v41
  %vm47 = vcmask 261120
  %v49 = vsel %vm47, %v34, 0
  %51 = vmatprep.subr.bf16.mxu0 0
  %52 = vmatpush1.bf16.msra.mxu0 %v43
  %53 = vmatprep.subr.bf16.mxu0 0
  %54 = vmatpush1.bf16.msra.mxu0 %v44
  %55 = vmatprep.subr.bf16.mxu0 0
  %56 = vmatpush1.bf16.msra.mxu0 0
  %57 = vmatprep.subr.bf16.mxu0 0
  %58 = vmatpush1.bf16.msra.mxu0 0
  %59 = vmatprep.subr.bf16.mxu0 0
  %60 = vmatpush1.bf16.msra.mxu0 0
  %61 = vmatprep.subr.bf16.mxu0 0
  %62 = vmatpush1.bf16.msra.mxu0 0
  %63 = vmatprep.subr.bf16.mxu0 0
  %64 = vmatpush1.bf16.msra.mxu0 0
  %65 = vmatprep.subr.bf16.mxu0 0
  %66 = vmatpush1.bf16.msra.mxu0 0
  %67 = vmatprep.subr.bf16.mxu0 0
  %68 = vmatpush1.bf16.msra.mxu0 0
  %69 = vmatprep.subr.bf16.mxu0 0
  %70 = vmatpush1.bf16.msra.mxu0 0
  %71 = vmatprep.subr.bf16.mxu0 0
  %72 = vmatpush1.bf16.msra.mxu0 0
  %73 = vmatprep.subr.bf16.mxu0 0
  %74 = vmatpush1.bf16.msra.mxu0 0
  %75 = vmatprep.subr.bf16.mxu0 0
  %76 = vmatpush1.bf16.msra.mxu0 0
  %77 = vmatprep.subr.bf16.mxu0 0
  %78 = vmatpush1.bf16.msra.mxu0 0
  %79 = vmatprep.subr.bf16.mxu0 0
  %80 = vmatpush1.bf16.msra.mxu0 0
  %81 = vmatprep.subr.bf16.mxu0 0
  %82 = vmatpush1.bf16.msra.mxu0 0
  %83 = vmatprep.mubr.bf16.mxu0 0
  %84 = vmatmul.mubr.bf16.gmra.mrb[0].mxu0 %v49
  %v85 = vpop.f32.mrb[0].mxu0
  %v86 = vadd.f32 0.0, %v85
  %v87 = vpop.f32.mrb[0].mxu0
  %v88 = vpop.f32.mrb[0].mxu0
  %v89 = vadd.f32 0.0, %v88
  %v90 = vpop.f32.mrb[0].mxu0
  %91 = vdwg.mxu0
  %v92 = vadd.f32 %v22, %v86
  %v93 = vadd.f32 %v23, %v89
  %vm94 = vcmask 785408
  %95 = vst.msk [vmem:[#allocation2] sm:$0xff] %vm94, %v92
  %96 = vst.msk [vmem:[#allocation2 + $0x8] sm:$0xff] %vm94, %v93
  // Predicated region
  $region18: #{transformer_forward.25} parent=0 // pred_check
    %p97 = pneg %p15
  $region19: #{transformer_forward.25} parent=0 // pred_check_branch
    %99 = sbr.rel (%p97) target = $region21
  $region20: #{transformer_forward.25} parent=0 // pred_region
    %v100 = vld [vmem:[#allocation2] sm:$0xff]
    %v101 = vld [vmem:[#allocation2 + $0x8] sm:$0xff]
    %v102 = vld [vmem:[%s2] sm:$0x1]
    %v104 = vlaneseq
    %v105 = vshrl.u32 %v104, 7
    %v106 = vsub.s32 0, %v105
    %v107 = vrot.slane %v102, %v106
    %v109 = vadd.f32 %v100, %v107
    %v110 = vadd.f32 %v101, %v107
    %v111 = vpack.c.bf16 %v110, %v109
    %v113 = vunpack.c.l.b16 %v111
    %v114 = vunpack.c.h.b16 %v111
    %v115 = vpack.c.b16 %v113, %v113
    %v116 = vpack.c.b16 %v114, %v114
    %vm119 = vcmask 781312
    %120 = vst.msk [vmem:[%s3] sm:$0xf] %vm119, %v115
    %121 = vst.msk [vmem:[%s3 + $0x4] sm:$0xf] %vm119, %v116
  $region21: #{transformer_forward.25} parent=0 // pred_fallthru
    _
  // Predicated region
  $region22: #{transformer_forward.25} parent=0 // pred_check
    _
  $region23: #{transformer_forward.25} parent=0 // pred_check_branch
    %123 = sbr.rel (0) target = $region25
  $region24: #{transformer_forward.25} parent=0 // pred_region
    _
  $region25: #{transformer_forward.25} parent=0 // pred_fallthru
    _
  // Predicated region
  $region26: #{transformer_forward.25} parent=0 // pred_check
    _
  $region27: #{transformer_forward.25} parent=0 // pred_check_branch
    %125 = sbr.rel (0) target = $region29
  $region28: #{transformer_forward.25} parent=0 // pred_region
    _
  $region29: #{transformer_forward.25} parent=0 // pred_fallthru
    _

// kernel: transformer_forward.28
$region0: #{transformer_forward.28}
  #allocation0 [shape = 'u32[]', space=smem, size = 0x4, offset = 0x4, fixed_abs, tag = 'smem constant byte address 0x4 - core index']
  #allocation1 [shape = 'u32[144,128]{1,0:T(1,128)}', space=vmem, size = 0x12000, scoped, tag = 'internal scratch']
  #allocation2 [shape = 'f32[16,32]{1,0:T(8,128)}', space=vmem, size = 0x2000, scoped, tag = 'scratch operand']
  %s0 = inlined_call_operand.vmem [shape: bf16[16,32], index: 0, kind: input, shape index: {}, may-alias: {0,5}]
  %s1 = inlined_call_operand.vmem [shape: bf16[32,64], index: 1, kind: input, shape index: {}]
  %s2 = inlined_call_operand.vmem [shape: f32[1,64], index: 2, kind: input, shape index: {}]
  %s3 = inlined_call_operand.vmem [shape: bf16[64,32], index: 3, kind: input, shape index: {}]
  %s4 = inlined_call_operand.vmem [shape: f32[1,32], index: 4, kind: input, shape index: {}]
  %s5 = inlined_call_operand.vmem [shape: bf16[16,32], index: 5, kind: input, shape index: {}, may-alias: {0,5}]
  %s6 = inlined_call_operand.vmem [shape: f32[1,32], index: 6, kind: input, shape index: {}]
  %s7 = inlined_call_operand.vmem [shape: f32[1,32], index: 7, kind: input, shape index: {}]
  %s8 = inlined_call_operand.vmem [shape: bf16[16,32], index: 8, kind: output, shape index: {}]
  %s9 = sld [smem:[#allocation0]]
  $region50: #{transformer_forward.28} parent=0
    _
  %s11 = ssub.s32 1, %s9
  %s12 = scalar_select 0, %s11, %s9
  // Predicated region
  $region2: #{transformer_forward.28} parent=0 // pred_check
    _
  $region3: #{transformer_forward.28} parent=0 // pred_check_branch
    %14 = sbr.rel (0) target = $region5
  $region4: #{transformer_forward.28} parent=0 // pred_region
    _
  $region5: #{transformer_forward.28} parent=0 // pred_fallthru
    _
  // Predicated region
  $region6: #{transformer_forward.28} parent=0 // pred_check
    _
  $region7: #{transformer_forward.28} parent=0 // pred_check_branch
    %16 = sbr.rel (0) target = $region9
  $region8: #{transformer_forward.28} parent=0 // pred_region
    _
  $region9: #{transformer_forward.28} parent=0 // pred_fallthru
    _
  // Predicated region
  $region10: #{transformer_forward.28} parent=0 // pred_check
    _
  $region11: #{transformer_forward.28} parent=0 // pred_check_branch
    %18 = sbr.rel (0) target = $region13
  $region12: #{transformer_forward.28} parent=0 // pred_region
    _
  $region13: #{transformer_forward.28} parent=0 // pred_fallthru
    _
  // Predicated region
  $region14: #{transformer_forward.28} parent=0 // pred_check
    _
  $region15: #{transformer_forward.28} parent=0 // pred_check_branch
    %20 = sbr.rel (0) target = $region17
  $region16: #{transformer_forward.28} parent=0 // pred_region
    _
  $region17: #{transformer_forward.28} parent=0 // pred_fallthru
    _
  // Predicated region
  $region18: #{transformer_forward.28} parent=0 // pred_check
    _
  $region19: #{transformer_forward.28} parent=0 // pred_check_branch
    %22 = sbr.rel (0) target = $region21
  $region20: #{transformer_forward.28} parent=0 // pred_region
    _
  $region21: #{transformer_forward.28} parent=0 // pred_fallthru
    _
  // Predicated region
  $region22: #{transformer_forward.28} parent=0 // pred_check
    _
  $region23: #{transformer_forward.28} parent=0 // pred_check_branch
    %24 = sbr.rel (0) target = $region25
  $region24: #{transformer_forward.28} parent=0 // pred_region
    _
  $region25: #{transformer_forward.28} parent=0 // pred_fallthru
    _
  // Predicated region
  $region26: #{transformer_forward.28} parent=0 // pred_check
    _
  $region27: #{transformer_forward.28} parent=0 // pred_check_branch
    %26 = sbr.rel (0) target = $region29
  $region28: #{transformer_forward.28} parent=0 // pred_region
    _
  $region29: #{transformer_forward.28} parent=0 // pred_fallthru
    _
  // Predicated region
  $region30: #{transformer_forward.28} parent=0 // pred_check
    _
  $region31: #{transformer_forward.28} parent=0 // pred_check_branch
    %28 = sbr.rel (0) target = $region33
  $region32: #{transformer_forward.28} parent=0 // pred_region
    _
  $region33: #{transformer_forward.28} parent=0 // pred_fallthru
    _
  %p30 = scmp.eq.s32.totalorder 0, 0
  // Predicated region
  $region34: #{transformer_forward.28} parent=0 // pred_check
    %p31 = pneg %p30
  $region35: #{transformer_forward.28} parent=0 // pred_check_branch
    %33 = sbr.rel (%p31) target = $region37
  $region36: #{transformer_forward.28} parent=0 // pred_region
    %vm34 = vcmask 261120
    %35 = vst.msk [vmem:[#allocation2] sm:$0xff] %vm34, 0.0
    %36 = vst.msk [vmem:[#allocation2 + $0x8] sm:$0xff] %vm34, 0.0
  $region37: #{transformer_forward.28} parent=0 // pred_fallthru
    _
  %v37 = vld [vmem:[%s0] sm:$0xf]
  %v38 = vld [vmem:[%s0 + $0x4] sm:$0xf]
  %v39 = vld [vmem:[%s1] sm:$0xf]
  %v40 = vld [vmem:[%s1 + $0x4] sm:$0xf]
  %v41 = vld [vmem:[%s1 + $0x8] sm:$0xf]
  %v42 = vld [vmem:[%s1 + $0xc] sm:$0xf]
  %v43 = vld [vmem:[%s2] sm:$0x1]
  %v45 = vlaneseq
  %v46 = vshrl.u32 %v45, 7
  %v47 = vsub.s32 0, %v46
  %v48 = vrot.slane %v43, %v47
  %v52 = vunpack.c.l.b16 %v37
  %v53 = vunpack.c.l.b16 %v38
  %v54 = vpack.c.b16 %v53, %v52
  %v59 = vunpack.c.l.b16 %v39
  %v60 = vunpack.c.l.b16 %v40
  %v61 = vunpack.c.l.b16 %v41
  %v62 = vunpack.c.l.b16 %v42
  %v63 = vpack.c.b16 %v60, %v59
  %v64 = vpack.c.b16 %v62, %v61
  %vm67 = vcmask 261120
  %v69 = vsel %vm67, %v54, 0
  %71 = vmatprep.subr.bf16.mxu0 0
  %72 = vmatpush1.bf16.msra.mxu0 %v63
  %73 = vmatprep.subr.bf16.mxu0 0
  %74 = vmatpush1.bf16.msra.mxu0 %v64
  %75 = vmatprep.subr.bf16.mxu0 0
  %76 = vmatpush1.bf16.msra.mxu0 0
  %77 = vmatprep.subr.bf16.mxu0 0
  %78 = vmatpush1.bf16.msra.mxu0 0
  %79 = vmatprep.subr.bf16.mxu0 0
  %80 = vmatpush1.bf16.msra.mxu0 0
  %81 = vmatprep.subr.bf16.mxu0 0
  %82 = vmatpush1.bf16.msra.mxu0 0
  %83 = vmatprep.subr.bf16.mxu0 0
  %84 = vmatpush1.bf16.msra.mxu0 0
  %85 = vmatprep.subr.bf16.mxu0 0
  %86 = vmatpush1.bf16.msra.mxu0 0
  %87 = vmatprep.subr.bf16.mxu0 0
  %88 = vmatpush1.bf16.msra.mxu0 0
  %89 = vmatprep.subr.bf16.mxu0 0
  %90 = vmatpush1.bf16.msra.mxu0 0
  %91 = vmatprep.subr.bf16.mxu0 0
  %92 = vmatpush1.bf16.msra.mxu0 0
  %93 = vmatprep.subr.bf16.mxu0 0
  %94 = vmatpush1.bf16.msra.mxu0 0
  %95 = vmatprep.subr.bf16.mxu0 0
  %96 = vmatpush1.bf16.msra.mxu0 0
  %97 = vmatprep.subr.bf16.mxu0 0
  %98 = vmatpush1.bf16.msra.mxu0 0
  %99 = vmatprep.subr.bf16.mxu0 0
  %100 = vmatpush1.bf16.msra.mxu0 0
  %101 = vmatprep.subr.bf16.mxu0 0
  %102 = vmatpush1.bf16.msra.mxu0 0
  %103 = vmatprep.mubr.bf16.mxu0 0
  %104 = vmatmul.mubr.bf16.gmra.mrb[0].mxu0 %v69
  %v105 = vpop.f32.mrb[0].mxu0
  %v106 = vadd.f32 %v48, %v105
  %v107 = vpop.f32.mrb[0].mxu0
  %v108 = vpop.f32.mrb[0].mxu0
  %v109 = vadd.f32 %v48, %v108
  %v110 = vpop.f32.mrb[0].mxu0
  %111 = vdwg.mxu0
  %v112 = vmax.f32 %v106, 0.0
  %v113 = vmax.f32 %v109, 0.0
  %v114 = vld [vmem:[#allocation2] sm:$0xff]
  %v115 = vld [vmem:[#allocation2 + $0x8] sm:$0xff]
  %v116 = vpack.c.bf16 %v113, %v112
  %v117 = vld [vmem:[%s3] sm:$0xf]
  %v118 = vld [vmem:[%s3 + $0x4] sm:$0xf]
  %v119 = vld [vmem:[%s3 + $0x8] sm:$0xf]
  %v120 = vld [vmem:[%s3 + $0xc] sm:$0xf]
  %v121 = vld [vmem:[%s3 + $0x10] sm:$0xf]
  %v122 = vld [vmem:[%s3 + $0x14] sm:$0xf]
  %v123 = vld [vmem:[%s3 + $0x18] sm:$0xf]
  %v124 = vld [vmem:[%s3 + $0x1c] sm:$0xf]
  %v133 = vunpack.c.l.b16 %v117
  %v134 = vunpack.c.l.b16 %v118
  %v135 = vunpack.c.l.b16 %v119
  %v136 = vunpack.c.l.b16 %v120
  %v137 = vunpack.c.l.b16 %v121
  %v138 = vunpack.c.l.b16 %v122
  %v139 = vunpack.c.l.b16 %v123
  %v140 = vunpack.c.l.b16 %v124
  %v141 = vpack.c.b16 %v134, %v133
  %v142 = vpack.c.b16 %v136, %v135
  %v143 = vpack.c.b16 %v138, %v137
  %v144 = vpack.c.b16 %v140, %v139
  %vm149 = vcmask 523264
  %v151 = vsel %vm149, %v116, 0
  %153 = vmatprep.subr.bf16.mxu0 0
  %154 = vmatpush1.bf16.msra.mxu0 %v141
  %155 = vmatprep.subr.bf16.mxu0 0
  %156 = vmatpush1.bf16.msra.mxu0 %v142
  %157 = vmatprep.subr.bf16.mxu0 0
  %158 = vmatpush1.bf16.msra.mxu0 %v143
  %159 = vmatprep.subr.bf16.mxu0 0
  %160 = vmatpush1.bf16.msra.mxu0 %v144
  %161 = vmatprep.subr.bf16.mxu0 0
  %162 = vmatpush1.bf16.msra.mxu0 0
  %163 = vmatprep.subr.bf16.mxu0 0
  %164 = vmatpush1.bf16.msra.mxu0 0
  %165 = vmatprep.subr.bf16.mxu0 0
  %166 = vmatpush1.bf16.msra.mxu0 0
  %167 = vmatprep.subr.bf16.mxu0 0
  %168 = vmatpush1.bf16.msra.mxu0 0
  %169 = vmatprep.subr.bf16.mxu0 0
  %170 = vmatpush1.bf16.msra.mxu0 0
  %171 = vmatprep.subr.bf16.mxu0 0
  %172 = vmatpush1.bf16.msra.mxu0 0
  %173 = vmatprep.subr.bf16.mxu0 0
  %174 = vmatpush1.bf16.msra.mxu0 0
  %175 = vmatprep.subr.bf16.mxu0 0
  %176 = vmatpush1.bf16.msra.mxu0 0
  %177 = vmatprep.subr.bf16.mxu0 0
  %178 = vmatpush1.bf16.msra.mxu0 0
  %179 = vmatprep.subr.bf16.mxu0 0
  %180 = vmatpush1.bf16.msra.mxu0 0
  %181 = vmatprep.subr.bf16.mxu0 0
  %182 = vmatpush1.bf16.msra.mxu0 0
  %183 = vmatprep.subr.bf16.mxu0 0
  %184 = vmatpush1.bf16.msra.mxu0 0
  %185 = vmatprep.mubr.bf16.mxu0 0
  %186 = vmatmul.mubr.bf16.gmra.mrb[0].mxu0 %v151
  %v187 = vpop.f32.mrb[0].mxu0
  %v188 = vadd.f32 0.0, %v187
  %v189 = vpop.f32.mrb[0].mxu0
  %v190 = vpop.f32.mrb[0].mxu0
  %v191 = vadd.f32 0.0, %v190
  %v192 = vpop.f32.mrb[0].mxu0
  %193 = vdwg.mxu0
  %v194 = vadd.f32 %v114, %v188
  %v195 = vadd.f32 %v115, %v191
  %196 = vst.msk [vmem:[#allocation2] sm:$0xff] %vm67, %v194
  %197 = vst.msk [vmem:[#allocation2 + $0x8] sm:$0xff] %vm67, %v195
  // Predicated region
  $region38: #{transformer_forward.28} parent=0 // pred_check
    %p198 = pneg %p30
  $region39: #{transformer_forward.28} parent=0 // pred_check_branch
    %200 = sbr.rel (%p198) target = $region41
  $region40: #{transformer_forward.28} parent=0 // pred_region
    %v201 = vld [vmem:[#allocation2] sm:$0xff]
    %v202 = vld [vmem:[#allocation2 + $0x8] sm:$0xff]
    %v203 = vld [vmem:[%s4] sm:$0x1]
    %v205 = vlaneseq
    %v206 = vshrl.u32 %v205, 7
    %v207 = vsub.s32 0, %v206
    %v208 = vrot.slane %v203, %v207
    %v210 = vadd.f32 %v201, %v208
    %v211 = vadd.f32 %v202, %v208
    %v212 = vld [vmem:[%s5] sm:$0xf]
    %v213 = vld [vmem:[%s5 + $0x4] sm:$0xf]
    %v214 = vunpack.c.l.bf16 %v212
    %v215 = vunpack.c.l.bf16 %v213
    %v216 = vadd.f32 %v210, %v214
    %v217 = vadd.f32 %v211, %v215
    %v218 = vsel %vm67, %v216, 0.0
    %219 = vadd.xlane.f32.xlu0 %v218
    %v220 = vpop.xlane.xlu0 %219
    %v221 = vsel %vm67, %v217, 0.0
    %222 = vadd.xlane.f32.xlu0 %v221
    %v223 = vpop.xlane.xlu0 %222
    %v224 = vrcp.pop 32.0
    %v225 = vmul.f32 %v220, %v224
    %v226 = vmul.f32 %v223, %v224
    %v227 = vsub.f32 %v216, %v225
    %v228 = vsub.f32 %v217, %v226
    %v229 = vmul.f32 %v227, %v227
    %v230 = vmul.f32 %v228, %v228
    %v231 = vsel %vm67, %v229, 0.0
    %232 = vadd.xlane.f32.xlu0 %v231
    %v233 = vpop.xlane.xlu0 %232
    %v234 = vsel %vm67, %v230, 0.0
    %235 = vadd.xlane.f32.xlu0 %v234
    %v236 = vpop.xlane.xlu0 %235
    %v237 = vmul.f32 %v233, %v224
    %v238 = vmul.f32 %v236, %v224
    %v239 = vadd.f32 %v237, 1e-05
    %v240 = vadd.f32 %v238, 1e-05
    %v241 = vrsqrt.pop %v239
    %v242 = vrsqrt.pop %v240
    %v243 = vmul.f32 %v227, %v241
    %v244 = vmul.f32 %v228, %v242
    %v245 = vld [vmem:[%s6] sm:$0x1]
    %v247 = vlaneseq
    %v248 = vshrl.u32 %v247, 7
    %v249 = vsub.s32 0, %v248
    %v250 = vrot.slane %v245, %v249
    %v252 = vmul.f32 %v243, %v250
    %v253 = vmul.f32 %v244, %v250
    %v254 = vld [vmem:[%s7] sm:$0x1]
    %v256 = vlaneseq
    %v257 = vshrl.u32 %v256, 7
    %v258 = vsub.s32 0, %v257
    %v259 = vrot.slane %v254, %v258
    %v261 = vadd.f32 %v252, %v259
    %v262 = vadd.f32 %v253, %v259
    %v263 = vpack.c.bf16 %v262, %v261
    %v265 = vunpack.c.l.b16 %v263
    %v266 = vunpack.c.h.b16 %v263
    %v267 = vpack.c.b16 %v265, %v265
    %v268 = vpack.c.b16 %v266, %v266
    %vm271 = vcmask 257024
    %272 = vst.msk [vmem:[%s8] sm:$0xf] %vm271, %v267
    %273 = vst.msk [vmem:[%s8 + $0x4] sm:$0xf] %vm271, %v268
  $region41: #{transformer_forward.28} parent=0 // pred_fallthru
    _
  // Predicated region
  $region42: #{transformer_forward.28} parent=0 // pred_check
    _
  $region43: #{transformer_forward.28} parent=0 // pred_check_branch
    %275 = sbr.rel (0) target = $region45
  $region44: #{transformer_forward.28} parent=0 // pred_region
    _
  $region45: #{transformer_forward.28} parent=0 // pred_fallthru
    _
  // Predicated region
  $region46: #{transformer_forward.28} parent=0 // pred_check
    _
  $region47: #{transformer_forward.28} parent=0 // pred_check_branch
    %277 = sbr.rel (0) target = $region49
  $region48: #{transformer_forward.28} parent=0 // pred_region
    _
  $region49: #{transformer_forward.28} parent=0 // pred_fallthru
    _

// kernel: transformer_forward.26
$region0: #{transformer_forward.26}
  #allocation0 [shape = 'u32[]', space=smem, size = 0x4, offset = 0x4, fixed_abs, tag = 'smem constant byte address 0x4 - core index']
  #allocation1 [shape = 'u32[144,128]{1,0:T(1,128)}', space=vmem, size = 0x12000, scoped, tag = 'internal scratch']
  #allocation2 [shape = 'f32[4,8,1]{2,1,0:T(8,128)}', space=vmem, size = 0x4000, scoped, tag = 'scratch operand']
  #allocation3 [shape = 'f32[4,8,1]{2,1,0:T(8,128)}', space=vmem, size = 0x4000, scoped, tag = 'scratch operand']
  #allocation4 [shape = 'f32[4,8,8]{2,1,0:T(8,128)}', space=vmem, size = 0x4000, scoped, tag = 'scratch operand']
  %s0 = inlined_call_operand.vmem [shape: bf16[2,8,32], index: 0, kind: input, shape index: {}]
  %s1 = inlined_call_operand.vmem [shape: bf16[2,8,32], index: 1, kind: input, shape index: {}]
  %s2 = inlined_call_operand.vmem [shape: bf16[2,8,32], index: 2, kind: input, shape index: {}]
  %s3 = inlined_call_operand.vmem [shape: bf16[2,8,32], index: 3, kind: output, shape index: {}]
  %s4 = sld [smem:[#allocation0]]
  $region53: #{transformer_forward.26} parent=0
    _
  %s6 = ssub.s32 1, %s4
  %s7 = scalar_select 0, %s6, %s4
  loop: start=0, step=1, limit=4
  $region2: #{transformer_forward.26} parent=0 // loop_pre_header
    _
  $region3: #{transformer_forward.26} parent=0 // loop_header
    %s9 = sphi 0, %s13
    %p10 = scmp.ge.s32.totalorder %s9, 4
    %s16 = sphi 0, %s35
    %s17 = sphi 0, %s31
    %s18 = sphi 0, %s27
    %s19 = sphi 0, %s16
    %s20 = sphi 0, %s17
    %s21 = sphi 0, %s18
    %s22 = sphi 0, %s19
    %s23 = sphi 0, %s20
    %s24 = sphi 0, %s21
    %s40 = sphi 0, %s42
    %s43 = sphi 0, %s40
    %s44 = sphi 0, %s43
    %s60 = sphi 0, %s44
    %s68 = sphi 0, %s70
    %s71 = sphi 0, %s68
    %s72 = sphi 0, %s71
    %s88 = sphi 0, %s72
    %s96 = sphi 0, %s98
    %s99 = sphi 0, %s96
    %s100 = sphi 0, %s99
    %s116 = sphi 0, %s100
    %s124 = sphi 0, %s126
    %s127 = sphi 0, %s124
    %s128 = sphi 0, %s127
    %s144 = sphi 0, %s128
  $region4: #{transformer_forward.26} parent=0 // loop_header_branch
    %12 = sbr.rel (%p10) target = $region8
  $region5: #{transformer_forward.26} parent=0 // loop_body
    %s14 = ssub.s32 %s9, 1
    %s15 = ssub.s32 %s9, 2
    %s25 = sadd.s32 1, %s18
    %p26 = scmp.ge.s32.totalorder %s25, 1
    %s27 = scalar_select %p26, 0, %s25
    %s28 = sadd.s32 1, %s17
    %s29 = scalar_select %p26, %s28, %s17
    %p30 = scmp.ge.s32.totalorder %s29, 1
    %s31 = scalar_select %p30, 0, %s29
    %s32 = sadd.s32 1, %s16
    %s33 = scalar_select %p30, %s32, %s16
    %p34 = scmp.ge.s32.totalorder %s33, 2
    %s35 = scalar_select %p34, 0, %s33
    %s36 = ssub.s32 %s16, %s35
    %s37 = ssub.s32 %s17, %s31
    %s38 = sor.u32 %s36, %s37
    %p39 = scmp.eq.s32.totalorder %s38, 0
    %s41 = sadd.s32 %s40, 1
    %s42 = scalar_select %p39, %s40, %s41
    %p45 = pneg %p39
    %p46 = scmp.eq.s32.totalorder %s9, 1
    %p47 = por %p45, %p46
    %p48 = scmp.ne.s32.totalorder %s40, %s43
    %p49 = scmp.eq.s32.totalorder %s9, 0
    %p50 = por %p48, %p49
    %p51 = scmp.ne.s32.totalorder %s40, %s43
    %p52 = scmp.eq.s32.totalorder %s14, 1
    %p53 = por %p51, %p52
    %p54 = scmp.ne.s32.totalorder %s43, %s44
    %p55 = scmp.eq.s32.totalorder %s14, 0
    %p56 = por %p54, %p55
    %p57 = scmp.ne.s32.totalorder %s43, %s44
    %p58 = scmp.eq.s32.totalorder %s15, 1
    %p59 = por %p57, %p58
    %p61 = scmp.ne.s32.totalorder %s44, %s60
    %p62 = scmp.eq.s32.totalorder %s15, 0
    %p63 = por %p61, %p62
    %s64 = ssub.s32 %s16, %s35
    %s65 = ssub.s32 %s18, %s27
    %s66 = sor.u32 %s64, %s65
    %p67 = scmp.eq.s32.totalorder %s66, 0
    %s69 = sadd.s32 %s68, 1
    %s70 = scalar_select %p67, %s68, %s69
    %p73 = pneg %p67
    %p74 = scmp.eq.s32.totalorder %s9, 1
    %p75 = por %p73, %p74
    %p76 = scmp.ne.s32.totalorder %s68, %s71
    %p77 = scmp.eq.s32.totalorder %s9, 0
    %p78 = por %p76, %p77
    %p79 = scmp.ne.s32.totalorder %s68, %s71
    %p80 = scmp.eq.s32.totalorder %s14, 1
    %p81 = por %p79, %p80
    %p82 = scmp.ne.s32.totalorder %s71, %s72
    %p83 = scmp.eq.s32.totalorder %s14, 0
    %p84 = por %p82, %p83
    %p85 = scmp.ne.s32.totalorder %s71, %s72
    %p86 = scmp.eq.s32.totalorder %s15, 1
    %p87 = por %p85, %p86
    %p89 = scmp.ne.s32.totalorder %s72, %s88
    %p90 = scmp.eq.s32.totalorder %s15, 0
    %p91 = por %p89, %p90
    %s92 = ssub.s32 %s16, %s35
    %s93 = ssub.s32 %s18, %s27
    %s94 = sor.u32 %s92, %s93
    %p95 = scmp.eq.s32.totalorder %s94, 0
    %s97 = sadd.s32 %s96, 1
    %s98 = scalar_select %p95, %s96, %s97
    %p101 = pneg %p95
    %p102 = scmp.eq.s32.totalorder %s9, 1
    %p103 = por %p101, %p102
    %p104 = scmp.ne.s32.totalorder %s96, %s99
    %p105 = scmp.eq.s32.totalorder %s9, 0
    %p106 = por %p104, %p105
    %p107 = scmp.ne.s32.totalorder %s96, %s99
    %p108 = scmp.eq.s32.totalorder %s14, 1
    %p109 = por %p107, %p108
    %p110 = scmp.ne.s32.totalorder %s99, %s100
    %p111 = scmp.eq.s32.totalorder %s14, 0
    %p112 = por %p110, %p111
    %p113 = scmp.ne.s32.totalorder %s99, %s100
    %p114 = scmp.eq.s32.totalorder %s15, 1
    %p115 = por %p113, %p114
    %p117 = scmp.ne.s32.totalorder %s100, %s116
    %p118 = scmp.eq.s32.totalorder %s15, 0
    %p119 = por %p117, %p118
    %s120 = ssub.s32 %s16, %s35
    %s121 = ssub.s32 %s17, %s31
    %s122 = sor.u32 %s120, %s121
    %p123 = scmp.eq.s32.totalorder %s122, 0
    %s125 = sadd.s32 %s124, 1
    %s126 = scalar_select %p123, %s124, %s125
    %p129 = pneg %p123
    %p130 = scmp.eq.s32.totalorder %s9, 1
    %p131 = por %p129, %p130
    %p132 = scmp.ne.s32.totalorder %s124, %s127
    %p133 = scmp.eq.s32.totalorder %s9, 0
    %p134 = por %p132, %p133
    %p135 = scmp.ne.s32.totalorder %s124, %s127
    %p136 = scmp.eq.s32.totalorder %s14, 1
    %p137 = por %p135, %p136
    %p138 = scmp.ne.s32.totalorder %s127, %s128
    %p139 = scmp.eq.s32.totalorder %s14, 0
    %p140 = por %p138, %p139
    %p141 = scmp.ne.s32.totalorder %s127, %s128
    %p142 = scmp.eq.s32.totalorder %s15, 1
    %p143 = por %p141, %p142
    %p145 = scmp.ne.s32.totalorder %s128, %s144
    %p146 = scmp.eq.s32.totalorder %s15, 0
    %p147 = por %p145, %p146
    %p148 = scmp.le.s32.totalorder 1, %s9
    %p149 = scmp.lt.s32.totalorder %s9, 3
    %p150 = pnand %p148, %p149
    %p151 = pneg %p150
    // Predicated region
    $region9: #{transformer_forward.26} parent=5 // pred_check
      _
    $region10: #{transformer_forward.26} parent=5 // pred_check_branch
      %153 = sbr.rel (%p150) target = $region12
    $region11: #{transformer_forward.26} parent=5 // pred_region
      %s154 = ssub.s32 %s9, 1
    $region12: #{transformer_forward.26} parent=5 // pred_fallthru
      _
    %p155 = scmp.lt.s32.totalorder %s9, 2
    // Predicated region
    $region13: #{transformer_forward.26} parent=5 // pred_check
      %p156 = pneg %p155
    $region14: #{transformer_forward.26} parent=5 // pred_check_branch
      %158 = sbr.rel (%p156) target = $region16
    $region15: #{transformer_forward.26} parent=5 // pred_region
      // Predicated region
      $region17: #{transformer_forward.26} parent=15 // pred_check
        %p159 = pneg %p50
      $region18: #{transformer_forward.26} parent=15 // pred_check_branch
        %161 = sbr.rel (%p159) target = $region20
      $region19: #{transformer_forward.26} parent=15 // pred_region
        %p162 = scmp.lt.s32.totalorder %s16, 1
        %s163 = scalar_select %p162, %s16, 1
        %p164 = scmp.lt.s32.totalorder %s17, 0
        %s165 = scalar_select %p164, %s17, 0
        %s166 = sadd.s32 %s165, %s163
        %s167 = smul.addr %s166, 4
        %s168 = scalar_lea.vmem %s0, %s167
      $region20: #{transformer_forward.26} parent=15 // pred_fallthru
        _
      // Predicated region
      $region21: #{transformer_forward.26} parent=15 // pred_check
        %p169 = pneg %p78
      $region22: #{transformer_forward.26} parent=15 // pred_check_branch
        %171 = sbr.rel (%p169) target = $region24
      $region23: #{transformer_forward.26} parent=15 // pred_region
        %p172 = scmp.lt.s32.totalorder %s16, 1
        %s173 = scalar_select %p172, %s16, 1
        %p174 = scmp.lt.s32.totalorder %s18, 0
        %s175 = scalar_select %p174, %s18, 0
        %s176 = sadd.s32 %s175, %s173
        %s177 = smul.addr %s176, 4
        %s178 = scalar_lea.vmem %s1, %s177
      $region24: #{transformer_forward.26} parent=15 // pred_fallthru
        _
      // Predicated region
      $region25: #{transformer_forward.26} parent=15 // pred_check
        %p179 = pneg %p106
      $region26: #{transformer_forward.26} parent=15 // pred_check_branch
        %181 = sbr.rel (%p179) target = $region28
      $region27: #{transformer_forward.26} parent=15 // pred_region
        %p182 = scmp.lt.s32.totalorder %s16, 1
        %s183 = scalar_select %p182, %s16, 1
        %p184 = scmp.lt.s32.totalorder %s18, 0
        %s185 = scalar_select %p184, %s18, 0
        %s186 = sadd.s32 %s185, %s183
        %s187 = smul.addr %s186, 4
        %s188 = scalar_lea.vmem %s2, %s187
      $region28: #{transformer_forward.26} parent=15 // pred_fallthru
        _
    $region16: #{transformer_forward.26} parent=5 // pred_fallthru
      _
    %p189 = scmp.le.s32.totalorder 1, %s9
    %p190 = scmp.lt.s32.totalorder %s9, 3
    %p191 = pnand %p189, %p190
    %p192 = pneg %p191
    // Predicated region
    $region29: #{transformer_forward.26} parent=5 // pred_check
      _
    $region30: #{transformer_forward.26} parent=5 // pred_check_branch
      %194 = sbr.rel (%p191) target = $region32
    $region31: #{transformer_forward.26} parent=5 // pred_region
      %s195 = ssub.s32 %s9, 1
      %p196 = scmp.lt.s32.totalorder %s19, 1
      %s197 = scalar_select %p196, %s19, 1
      %p198 = scmp.lt.s32.totalorder %s20, 0
      %s199 = scalar_select %p198, %s20, 0
      %s200 = sadd.s32 %s199, %s197
      %s201 = smul.addr %s200, 4
      %s202 = scalar_lea.vmem %s0, %s201
      %p203 = pneg %p56
      %p204 = pneg %p53
      %p205 = scmp.lt.s32.totalorder %s19, 1
      %s206 = scalar_select %p205, %s19, 1
      %p207 = scmp.lt.s32.totalorder %s21, 0
      %s208 = scalar_select %p207, %s21, 0
      %s209 = sadd.s32 %s208, %s206
      %s210 = smul.addr %s209, 4
      %s211 = scalar_lea.vmem %s1, %s210
      %p212 = pneg %p84
      %p213 = pneg %p81
      %p214 = scmp.lt.s32.totalorder %s19, 1
      %s215 = scalar_select %p214, %s19, 1
      %p216 = scmp.lt.s32.totalorder %s21, 0
      %s217 = scalar_select %p216, %s21, 0
      %s218 = sadd.s32 %s217, %s215
      %s219 = smul.addr %s218, 4
      %s220 = scalar_lea.vmem %s2, %s219
      %p221 = pneg %p112
      %p222 = pneg %p109
      %p223 = pneg %p140
      %p224 = pneg %p137
      %p225 = scmp.lt.s32.totalorder %s19, 1
      %s226 = scalar_select %p225, %s19, 1
      %p227 = scmp.lt.s32.totalorder %s20, 0
      %s228 = scalar_select %p227, %s20, 0
      %s229 = sadd.s32 %s228, %s226
      %s230 = smul.addr %s229, 4
      %s231 = scalar_lea.vmem %s3, %s230
      %p232 = scmp.lt.s32.totalorder %s19, 1
      %s233 = scalar_select %p232, %s19, 1
      %p234 = scmp.lt.s32.totalorder %s20, 0
      %s235 = scalar_select %p234, %s20, 0
      %s236 = sadd.s32 %s235, %s233
      %s237 = smul.addr %s236, 4
      %s238 = scalar_lea.vmem %s0, %s237
      %p239 = scmp.lt.s32.totalorder %s19, 1
      %s240 = scalar_select %p239, %s19, 1
      %p241 = scmp.lt.s32.totalorder %s21, 0
      %s242 = scalar_select %p241, %s21, 0
      %s243 = sadd.s32 %s242, %s240
      %s244 = smul.addr %s243, 4
      %s245 = scalar_lea.vmem %s1, %s244
      %p246 = scmp.lt.s32.totalorder %s19, 1
      %s247 = scalar_select %p246, %s19, 1
      %p248 = scmp.lt.s32.totalorder %s21, 0
      %s249 = scalar_select %p248, %s21, 0
      %s250 = sadd.s32 %s249, %s247
      %s251 = smul.addr %s250, 4
      %s252 = scalar_lea.vmem %s2, %s251
      %p253 = scmp.lt.s32.totalorder %s19, 1
      %s254 = scalar_select %p253, %s19, 1
      %p255 = scmp.lt.s32.totalorder %s20, 0
      %s256 = scalar_select %p255, %s20, 0
      %s257 = sadd.s32 %s256, %s254
      %s258 = smul.addr %s257, 4
      %s259 = scalar_lea.vmem %s3, %s258
      %p262 = scmp.eq.s32.totalorder %s21, 0
      // Predicated region
      $region33: #{transformer_forward.26} parent=31 // pred_check
        %p263 = pneg %p262
      $region34: #{transformer_forward.26} parent=31 // pred_check_branch
        %265 = sbr.rel (%p263) target = $region36
      $region35: #{transformer_forward.26} parent=31 // pred_region
        %vm266 = vcmask 7168
        %267 = vst.msk [vmem:[#allocation2] sm:$0xff] %vm266, -1e+30
        %268 = vst.msk [vmem:[#allocation2 + $0x8] sm:$0xff] %vm266, -1e+30
        %269 = vst.msk [vmem:[#allocation2 + $0x10] sm:$0xff] %vm266, -1e+30
        %270 = vst.msk [vmem:[#allocation2 + $0x18] sm:$0xff] %vm266, -1e+30
        %271 = vst.msk [vmem:[#allocation3] sm:$0xff] %vm266, 0.0
        %272 = vst.msk [vmem:[#allocation3 + $0x8] sm:$0xff] %vm266, 0.0
        %273 = vst.msk [vmem:[#allocation3 + $0x10] sm:$0xff] %vm266, 0.0
        %274 = vst.msk [vmem:[#allocation3 + $0x18] sm:$0xff] %vm266, 0.0
        %vm275 = vcmask 64512
        %276 = vst.msk [vmem:[#allocation4] sm:$0xff] %vm275, 0.0
        %277 = vst.msk [vmem:[#allocation4 + $0x8] sm:$0xff] %vm275, 0.0
        %278 = vst.msk [vmem:[#allocation4 + $0x10] sm:$0xff] %vm275, 0.0
        %279 = vst.msk [vmem:[#allocation4 + $0x18] sm:$0xff] %vm275, 0.0
      $region36: #{transformer_forward.26} parent=31 // pred_fallthru
        _
      %v280 = vld [vmem:[%s238] sm:$0xf]
      %v281 = vmul.bf16 %v280, 1052065461
      %v282 = vld [vmem:[%s245] sm:$0xf]
      %v283 = vld [vmem:[%s252] sm:$0xf]
      %vm284 = vcmask 64512
      %v286 = vsel %vm284, %v281, 0
      %v289 = vsel %vm284, %v282, 0
      %291 = vmatprep.subr.bf16.mxu0 0
      %292 = vmatpush1.bf16.xpose.msra.mxu0 %v289
      %293 = vmatprep.subr.bf16.mxu0 0
      %294 = vmatpush1.bf16.xpose.msra.mxu0 0
      %295 = vmatprep.subr.bf16.mxu0 0
      %296 = vmatpush1.bf16.xpose.msra.mxu0 0
      %297 = vmatprep.subr.bf16.mxu0 0
      %298 = vmatpush1.bf16.xpose.msra.mxu0 0
      %299 = vmatprep.subr.bf16.mxu0 0
      %300 = vmatpush1.bf16.xpose.msra.mxu0 0
      %301 = vmatprep.subr.bf16.mxu0 0
      %302 = vmatpush1.bf16.xpose.msra.mxu0 0
      %303 = vmatprep.subr.bf16.mxu0 0
      %304 = vmatpush1.bf16.xpose.msra.mxu0 0
      %305 = vmatprep.subr.bf16.mxu0 0
      %306 = vmatpush1.bf16.xpose.msra.mxu0 0
      %307 = vmatprep.subr.bf16.mxu0 0
      %308 = vmatpush1.bf16.xpose.msra.mxu0 0
      %309 = vmatprep.subr.bf16.mxu0 0
      %310 = vmatpush1.bf16.xpose.msra.mxu0 0
      %311 = vmatprep.subr.bf16.mxu0 0
      %312 = vmatpush1.bf16.xpose.msra.mxu0 0
      %313 = vmatprep.subr.bf16.mxu0 0
      %314 = vmatpush1.bf16.xpose.msra.mxu0 0
      %315 = vmatprep.subr.bf16.mxu0 0
      %316 = vmatpush1.bf16.xpose.msra.mxu0 0
      %317 = vmatprep.subr.bf16.mxu0 0
      %318 = vmatpush1.bf16.xpose.msra.mxu0 0
      %319 = vmatprep.subr.bf16.mxu0 0
      %320 = vmatpush1.bf16.xpose.msra.mxu0 0
      %321 = vmatprep.subr.bf16.mxu0 0
      %322 = vmatpush1.bf16.xpose.msra.mxu0 0
      %323 = vmatprep.mubr.bf16.mxu0 0
      %324 = vmatmul.mubr.bf16.gmra.mrb[0].mxu0 %v286
      %v325 = vpop.f32.mrb[0].mxu0
      %v326 = vadd.f32 0.0, %v325
      %v327 = vpop.f32.mrb[0].mxu0
      %v328 = vpop.f32.mrb[0].mxu0
      %v329 = vpop.f32.mrb[0].mxu0
      %330 = vdwg.mxu0
      %v331 = vld [vmem:[#allocation2] sm:$0xff]
      %v332 = vsel %vm284, %v326, -inf
      %333 = vmax.xlane.f32.xlu0 %v332
      %v334 = vpop.xlane.xlu0 %333
      %v335 = vmax.f32 %v331, %v334
      %v336 = vsub.f32 %v331, %v335
      %v337 = vmul.f32 %v336, 1.442695
      %v338 = vpow.pop %v337
      %340 = vset.pattern.permute.xlu0 0
      %341 = vperm.xlu0 %340, %v335
      %v342 = vpop.permute.xlu0 %341
      %v344 = vsub.f32 %v326, %v342
      %v345 = vmul.f32 %v344, 1.442695
      %v346 = vpow.pop %v345
      %v347 = vld [vmem:[#allocation3] sm:$0xff]
      %v348 = vmul.f32 %v338, %v347
      %v349 = vsel %vm284, %v346, 0.0
      %350 = vadd.xlane.f32.xlu0 %v349
      %v351 = vpop.xlane.xlu0 %350
      %v352 = vadd.f32 %v348, %v351
      %vm353 = vcmask 7168
      %354 = vst.msk [vmem:[#allocation3] sm:$0xff] %vm353, %v352
      %v355 = vld [vmem:[#allocation4] sm:$0xff]
      %357 = vset.pattern.permute.xlu0 0
      %358 = vperm.xlu0 %357, %v338
      %v359 = vpop.permute.xlu0 %358
      %v361 = vmul.f32 %v359, %v355
      %v362 = vpack.c.bf16 %v346, %v346
      %v364 = vsel %vm284, %v362, 0
      %vm366 = vcmask 1043456
      %v368 = vsel %vm366, %v283, 0
      %370 = vmatprep.subr.bf16.mxu0 0
      %371 = vmatpush1.bf16.msra.mxu0 %v368
      %372 = vmatprep.subr.bf16.mxu0 0
      %373 = vmatpush1.bf16.msra.mxu0 0
      %374 = vmatprep.subr.bf16.mxu0 0
      %375 = vmatpush1.bf16.msra.mxu0 0
      %376 = vmatprep.subr.bf16.mxu0 0
      %377 = vmatpush1.bf16.msra.mxu0 0
      %378 = vmatprep.subr.bf16.mxu0 0
      %379 = vmatpush1.bf16.msra.mxu0 0
      %380 = vmatprep.subr.bf16.mxu0 0
      %381 = vmatpush1.bf16.msra.mxu0 0
      %382 = vmatprep.subr.bf16.mxu0 0
      %383 = vmatpush1.bf16.msra.mxu0 0
      %384 = vmatprep.subr.bf16.mxu0 0
      %385 = vmatpush1.bf16.msra.mxu0 0
      %386 = vmatprep.subr.bf16.mxu0 0
      %387 = vmatpush1.bf16.msra.mxu0 0
      %388 = vmatprep.subr.bf16.mxu0 0
      %389 = vmatpush1.bf16.msra.mxu0 0
      %390 = vmatprep.subr.bf16.mxu0 0
      %391 = vmatpush1.bf16.msra.mxu0 0
      %392 = vmatprep.subr.bf16.mxu0 0
      %393 = vmatpush1.bf16.msra.mxu0 0
      %394 = vmatprep.subr.bf16.mxu0 0
      %395 = vmatpush1.bf16.msra.mxu0 0
      %396 = vmatprep.subr.bf16.mxu0 0
      %397 = vmatpush1.bf16.msra.mxu0 0
      %398 = vmatprep.subr.bf16.mxu0 0
      %399 = vmatpush1.bf16.msra.mxu0 0
      %400 = vmatprep.subr.bf16.mxu0 0
      %401 = vmatpush1.bf16.msra.mxu0 0
      %402 = vmatprep.mubr.bf16.mxu0 0
      %403 = vmatmul.mubr.bf16.gmra.mrb[0].mxu0 %v364
      %v404 = vpop.f32.mrb[0].mxu0
      %v405 = vadd.f32 0.0, %v404
      %v406 = vpop.f32.mrb[0].mxu0
      %v407 = vpop.f32.mrb[0].mxu0
      %v408 = vpop.f32.mrb[0].mxu0
      %409 = vdwg.mxu0
      %v410 = vadd.f32 %v361, %v405
      %411 = vst.msk [vmem:[#allocation4] sm:$0xff] %vm284, %v410
      %412 = vst.msk [vmem:[#allocation2] sm:$0xff] %vm353, %v335
      %v414 = vunpack.c.l.b16 %v281
      %v415 = vpack.c.b16 %v414, %v414
      %416 = vrot.lane.b32.xlu0 %v415, 120
      %v417 = vpop.permute.xlu0 %416
      %v419 = vunpack.c.l.b16 %v282
      %v420 = vpack.c.b16 %v419, %v419
      %421 = vrot.lane.b32.xlu0 %v420, 120
      %v422 = vpop.permute.xlu0 %421
      %v424 = vsel %vm284, %v417, 0
      %v427 = vsel %vm284, %v422, 0
      %429 = vmatprep.subr.bf16.mxu0 0
      %430 = vmatpush1.bf16.xpose.msra.mxu0 %v427
      %431 = vmatprep.subr.bf16.mxu0 0
      %432 = vmatpush1.bf16.xpose.msra.mxu0 0
      %433 = vmatprep.subr.bf16.mxu0 0
      %434 = vmatpush1.bf16.xpose.msra.mxu0 0
      %435 = vmatprep.subr.bf16.mxu0 0
      %436 = vmatpush1.bf16.xpose.msra.mxu0 0
      %437 = vmatprep.subr.bf16.mxu0 0
      %438 = vmatpush1.bf16.xpose.msra.mxu0 0
      %439 = vmatprep.subr.bf16.mxu0 0
      %440 = vmatpush1.bf16.xpose.msra.mxu0 0
      %441 = vmatprep.subr.bf16.mxu0 0
      %442 = vmatpush1.bf16.xpose.msra.mxu0 0
      %443 = vmatprep.subr.bf16.mxu0 0
      %444 = vmatpush1.bf16.xpose.msra.mxu0 0
      %445 = vmatprep.subr.bf16.mxu0 0
      %446 = vmatpush1.bf16.xpose.msra.mxu0 0
      %447 = vmatprep.subr.bf16.mxu0 0
      %448 = vmatpush1.bf16.xpose.msra.mxu0 0
      %449 = vmatprep.subr.bf16.mxu0 0
      %450 = vmatpush1.bf16.xpose.msra.mxu0 0
      %451 = vmatprep.subr.bf16.mxu0 0
      %452 = vmatpush1.bf16.xpose.msra.mxu0 0
      %453 = vmatprep.subr.bf16.mxu0 0
      %454 = vmatpush1.bf16.xpose.msra.mxu0 0
      %455 = vmatprep.subr.bf16.mxu0 0
      %456 = vmatpush1.bf16.xpose.msra.mxu0 0
      %457 = vmatprep.subr.bf16.mxu0 0
      %458 = vmatpush1.bf16.xpose.msra.mxu0 0
      %459 = vmatprep.subr.bf16.mxu0 0
      %460 = vmatpush1.bf16.xpose.msra.mxu0 0
      %461 = vmatprep.mubr.bf16.mxu0 0
      %462 = vmatmul.mubr.bf16.gmra.mrb[0].mxu0 %v424
      %v463 = vpop.f32.mrb[0].mxu0
      %v464 = vadd.f32 0.0, %v463
      %v465 = vpop.f32.mrb[0].mxu0
      %v466 = vpop.f32.mrb[0].mxu0
      %v467 = vpop.f32.mrb[0].mxu0
      %468 = vdwg.mxu0
      %s469 = scalar_lea.vmem [#allocation2], 8
      %v470 = vld [vmem:[%s469] sm:$0xff]
      %v471 = vsel %vm284, %v464, -inf
      %472 = vmax.xlane.f32.xlu0 %v471
      %v473 = vpop.xlane.xlu0 %472
      %v474 = vmax.f32 %v470, %v473
      %v475 = vsub.f32 %v470, %v474
      %v476 = vmul.f32 %v475, 1.442695
      %v477 = vpow.pop %v476
      %479 = vset.pattern.permute.xlu0 0
      %480 = vperm.xlu0 %479, %v474
      %v481 = vpop.permute.xlu0 %480
      %v483 = vsub.f32 %v464, %v481
      %v484 = vmul.f32 %v483, 1.442695
      %v485 = vpow.pop %v484
      %s486 = scalar_lea.vmem [#allocation3], 8
      %v487 = vld [vmem:[%s486] sm:$0xff]
      %v488 = vmul.f32 %v477, %v487
      %v489 = vsel %vm284, %v485, 0.0
      %490 = vadd.xlane.f32.xlu0 %v489
      %v491 = vpop.xlane.xlu0 %490
      %v492 = vadd.f32 %v488, %v491
      %493 = vst.msk [vmem:[%s486] sm:$0xff] %vm353, %v492
      %s494 = scalar_lea.vmem [#allocation4], 8
      %v495 = vld [vmem:[%s494] sm:$0xff]
      %497 = vset.pattern.permute.xlu0 0
      %498 = vperm.xlu0 %497, %v477
      %v499 = vpop.permute.xlu0 %498
      %v501 = vmul.f32 %v499, %v495
      %v502 = vpack.c.bf16 %v485, %v485
      %v504 = vunpack.c.l.b16 %v283
      %v505 = vpack.c.b16 %v504, %v504
      %506 = vrot.lane.b32.xlu0 %v505, 120
      %v507 = vpop.permute.xlu0 %506
      %v509 = vsel %vm284, %v502, 0
      %v512 = vsel %vm366, %v507, 0
      %514 = vmatprep.subr.bf16.mxu0 0
      %515 = vmatpush1.bf16.msra.mxu0 %v512
      %516 = vmatprep.subr.bf16.mxu0 0
      %517 = vmatpush1.bf16.msra.mxu0 0
      %518 = vmatprep.subr.bf16.mxu0 0
      %519 = vmatpush1.bf16.msra.mxu0 0
      %520 = vmatprep.subr.bf16.mxu0 0
      %521 = vmatpush1.bf16.msra.mxu0 0
      %522 = vmatprep.subr.bf16.mxu0 0
      %523 = vmatpush1.bf16.msra.mxu0 0
      %524 = vmatprep.subr.bf16.mxu0 0
      %525 = vmatpush1.bf16.msra.mxu0 0
      %526 = vmatprep.subr.bf16.mxu0 0
      %527 = vmatpush1.bf16.msra.mxu0 0
      %528 = vmatprep.subr.bf16.mxu0 0
      %529 = vmatpush1.bf16.msra.mxu0 0
      %530 = vmatprep.subr.bf16.mxu0 0
      %531 = vmatpush1.bf16.msra.mxu0 0
      %532 = vmatprep.subr.bf16.mxu0 0
      %533 = vmatpush1.bf16.msra.mxu0 0
      %534 = vmatprep.subr.bf16.mxu0 0
      %535 = vmatpush1.bf16.msra.mxu0 0
      %536 = vmatprep.subr.bf16.mxu0 0
      %537 = vmatpush1.bf16.msra.mxu0 0
      %538 = vmatprep.subr.bf16.mxu0 0
      %539 = vmatpush1.bf16.msra.mxu0 0
      %540 = vmatprep.subr.bf16.mxu0 0
      %541 = vmatpush1.bf16.msra.mxu0 0
      %542 = vmatprep.subr.bf16.mxu0 0
      %543 = vmatpush1.bf16.msra.mxu0 0
      %544 = vmatprep.subr.bf16.mxu0 0
      %545 = vmatpush1.bf16.msra.mxu0 0
      %546 = vmatprep.mubr.bf16.mxu0 0
      %547 = vmatmul.mubr.bf16.gmra.mrb[0].mxu0 %v509
      %v548 = vpop.f32.mrb[0].mxu0
      %v549 = vadd.f32 0.0, %v548
      %v550 = vpop.f32.mrb[0].mxu0
      %v551 = vpop.f32.mrb[0].mxu0
      %v552 = vpop.f32.mrb[0].mxu0
      %553 = vdwg.mxu0
      %v554 = vadd.f32 %v501, %v549
      %555 = vst.msk [vmem:[%s494] sm:$0xff] %vm284, %v554
      %556 = vst.msk [vmem:[%s469] sm:$0xff] %vm353, %v474
      %557 = vrot.lane.b32.xlu0 %v415, 112
      %v558 = vpop.permute.xlu0 %557
      %559 = vrot.lane.b32.xlu0 %v420, 112
      %v560 = vpop.permute.xlu0 %559
      %v562 = vsel %vm284, %v558, 0
      %v565 = vsel %vm284, %v560, 0
      %567 = vmatprep.subr.bf16.mxu0 0
      %568 = vmatpush1.bf16.xpose.msra.mxu0 %v565
      %569 = vmatprep.subr.bf16.mxu0 0
      %570 = vmatpush1.bf16.xpose.msra.mxu0 0
      %571 = vmatprep.subr.bf16.mxu0 0
      %572 = vmatpush1.bf16.xpose.msra.mxu0 0
      %573 = vmatprep.subr.bf16.mxu0 0
      %574 = vmatpush1.bf16.xpose.msra.mxu0 0
      %575 = vmatprep.subr.bf16.mxu0 0
      %576 = vmatpush1.bf16.xpose.msra.mxu0 0
      %577 = vmatprep.subr.bf16.mxu0 0
      %578 = vmatpush1.bf16.xpose.msra.mxu0 0
      %579 = vmatprep.subr.bf16.mxu0 0
      %580 = vmatpush1.bf16.xpose.msra.mxu0 0
      %581 = vmatprep.subr.bf16.mxu0 0
      %582 = vmatpush1.bf16.xpose.msra.mxu0 0
      %583 = vmatprep.subr.bf16.mxu0 0
      %584 = vmatpush1.bf16.xpose.msra.mxu0 0
      %585 = vmatprep.subr.bf16.mxu0 0
      %586 = vmatpush1.bf16.xpose.msra.mxu0 0
      %587 = vmatprep.subr.bf16.mxu0 0
      %588 = vmatpush1.bf16.xpose.msra.mxu0 0
      %589 = vmatprep.subr.bf16.mxu0 0
      %590 = vmatpush1.bf16.xpose.msra.mxu0 0
      %591 = vmatprep.subr.bf16.mxu0 0
      %592 = vmatpush1.bf16.xpose.msra.mxu0 0
      %593 = vmatprep.subr.bf16.mxu0 0
      %594 = vmatpush1.bf16.xpose.msra.mxu0 0
      %595 = vmatprep.subr.bf16.mxu0 0
      %596 = vmatpush1.bf16.xpose.msra.mxu0 0
      %597 = vmatprep.subr.bf16.mxu0 0
      %598 = vmatpush1.bf16.xpose.msra.mxu0 0
      %599 = vmatprep.mubr.bf16.mxu0 0
      %600 = vmatmul.mubr.bf16.gmra.mrb[0].mxu0 %v562
      %v601 = vpop.f32.mrb[0].mxu0
      %v602 = vadd.f32 0.0, %v601
      %v603 = vpop.f32.mrb[0].mxu0
      %v604 = vpop.f32.mrb[0].mxu0
      %v605 = vpop.f32.mrb[0].mxu0
      %606 = vdwg.mxu0
      %s607 = scalar_lea.vmem [#allocation2], 16
      %v608 = vld [vmem:[%s607] sm:$0xff]
      %v609 = vsel %vm284, %v602, -inf
      %610 = vmax.xlane.f32.xlu0 %v609
      %v611 = vpop.xlane.xlu0 %610
      %v612 = vmax.f32 %v608, %v611
      %v613 = vsub.f32 %v608, %v612
      %v614 = vmul.f32 %v613, 1.442695
      %v615 = vpow.pop %v614
      %617 = vset.pattern.permute.xlu0 0
      %618 = vperm.xlu0 %617, %v612
      %v619 = vpop.permute.xlu0 %618
      %v621 = vsub.f32 %v602, %v619
      %v622 = vmul.f32 %v621, 1.442695
      %v623 = vpow.pop %v622
      %s624 = scalar_lea.vmem [#allocation3], 16
      %v625 = vld [vmem:[%s624] sm:$0xff]
      %v626 = vmul.f32 %v615, %v625
      %v627 = vsel %vm284, %v623, 0.0
      %628 = vadd.xlane.f32.xlu0 %v627
      %v629 = vpop.xlane.xlu0 %628
      %v630 = vadd.f32 %v626, %v629
      %631 = vst.msk [vmem:[%s624] sm:$0xff] %vm353, %v630
      %s632 = scalar_lea.vmem [#allocation4], 16
      %v633 = vld [vmem:[%s632] sm:$0xff]
      %635 = vset.pattern.permute.xlu0 0
      %636 = vperm.xlu0 %635, %v615
      %v637 = vpop.permute.xlu0 %636
      %v639 = vmul.f32 %v637, %v633
      %v640 = vpack.c.bf16 %v623, %v623
      %641 = vrot.lane.b32.xlu0 %v505, 112
      %v642 = vpop.permute.xlu0 %641
      %v644 = vsel %vm284, %v640, 0
      %v647 = vsel %vm366, %v642, 0
      %649 = vmatprep.subr.bf16.mxu0 0
      %650 = vmatpush1.bf16.msra.mxu0 %v647
      %651 = vmatprep.subr.bf16.mxu0 0
      %652 = vmatpush1.bf16.msra.mxu0 0
      %653 = vmatprep.subr.bf16.mxu0 0
      %654 = vmatpush1.bf16.msra.mxu0 0
      %655 = vmatprep.subr.bf16.mxu0 0
      %656 = vmatpush1.bf16.msra.mxu0 0
      %657 = vmatprep.subr.bf16.mxu0 0
      %658 = vmatpush1.bf16.msra.mxu0 0
      %659 = vmatprep.subr.bf16.mxu0 0
      %660 = vmatpush1.bf16.msra.mxu0 0
      %661 = vmatprep.subr.bf16.mxu0 0
      %662 = vmatpush1.bf16.msra.mxu0 0
      %663 = vmatprep.subr.bf16.mxu0 0
      %664 = vmatpush1.bf16.msra.mxu0 0
      %665 = vmatprep.subr.bf16.mxu0 0
      %666 = vmatpush1.bf16.msra.mxu0 0
      %667 = vmatprep.subr.bf16.mxu0 0
      %668 = vmatpush1.bf16.msra.mxu0 0
      %669 = vmatprep.subr.bf16.mxu0 0
      %670 = vmatpush1.bf16.msra.mxu0 0
      %671 = vmatprep.subr.bf16.mxu0 0
      %672 = vmatpush1.bf16.msra.mxu0 0
      %673 = vmatprep.subr.bf16.mxu0 0
      %674 = vmatpush1.bf16.msra.mxu0 0
      %675 = vmatprep.subr.bf16.mxu0 0
      %676 = vmatpush1.bf16.msra.mxu0 0
      %677 = vmatprep.subr.bf16.mxu0 0
      %678 = vmatpush1.bf16.msra.mxu0 0
      %679 = vmatprep.subr.bf16.mxu0 0
      %680 = vmatpush1.bf16.msra.mxu0 0
      %681 = vmatprep.mubr.bf16.mxu0 0
      %682 = vmatmul.mubr.bf16.gmra.mrb[0].mxu0 %v644
      %v683 = vpop.f32.mrb[0].mxu0
      %v684 = vadd.f32 0.0, %v683
      %v685 = vpop.f32.mrb[0].mxu0
      %v686 = vpop.f32.mrb[0].mxu0
      %v687 = vpop.f32.mrb[0].mxu0
      %688 = vdwg.mxu0
      %v689 = vadd.f32 %v639, %v684
      %690 = vst.msk [vmem:[%s632] sm:$0xff] %vm284, %v689
      %691 = vst.msk [vmem:[%s607] sm:$0xff] %vm353, %v612
      %692 = vrot.lane.b32.xlu0 %v415, 104
      %v693 = vpop.permute.xlu0 %692
      %694 = vrot.lane.b32.xlu0 %v420, 104
      %v695 = vpop.permute.xlu0 %694
      %v697 = vsel %vm284, %v693, 0
      %v700 = vsel %vm284, %v695, 0
      %702 = vmatprep.subr.bf16.mxu0 0
      %703 = vmatpush1.bf16.xpose.msra.mxu0 %v700
      %704 = vmatprep.subr.bf16.mxu0 0
      %705 = vmatpush1.bf16.xpose.msra.mxu0 0
      %706 = vmatprep.subr.bf16.mxu0 0
      %707 = vmatpush1.bf16.xpose.msra.mxu0 0
      %708 = vmatprep.subr.bf16.mxu0 0
      %709 = vmatpush1.bf16.xpose.msra.mxu0 0
      %710 = vmatprep.subr.bf16.mxu0 0
      %711 = vmatpush1.bf16.xpose.msra.mxu0 0
      %712 = vmatprep.subr.bf16.mxu0 0
      %713 = vmatpush1.bf16.xpose.msra.mxu0 0
      %714 = vmatprep.subr.bf16.mxu0 0
      %715 = vmatpush1.bf16.xpose.msra.mxu0 0
      %716 = vmatprep.subr.bf16.mxu0 0
      %717 = vmatpush1.bf16.xpose.msra.mxu0 0
      %718 = vmatprep.subr.bf16.mxu0 0
      %719 = vmatpush1.bf16.xpose.msra.mxu0 0
      %720 = vmatprep.subr.bf16.mxu0 0
      %721 = vmatpush1.bf16.xpose.msra.mxu0 0
      %722 = vmatprep.subr.bf16.mxu0 0
      %723 = vmatpush1.bf16.xpose.msra.mxu0 0
      %724 = vmatprep.subr.bf16.mxu0 0
      %725 = vmatpush1.bf16.xpose.msra.mxu0 0
      %726 = vmatprep.subr.bf16.mxu0 0
      %727 = vmatpush1.bf16.xpose.msra.mxu0 0
      %728 = vmatprep.subr.bf16.mxu0 0
      %729 = vmatpush1.bf16.xpose.msra.mxu0 0
      %730 = vmatprep.subr.bf16.mxu0 0
      %731 = vmatpush1.bf16.xpose.msra.mxu0 0
      %732 = vmatprep.subr.bf16.mxu0 0
      %733 = vmatpush1.bf16.xpose.msra.mxu0 0
      %734 = vmatprep.mubr.bf16.mxu0 0
      %735 = vmatmul.mubr.bf16.gmra.mrb[0].mxu0 %v697
      %v736 = vpop.f32.mrb[0].mxu0
      %v737 = vadd.f32 0.0, %v736
      %v738 = vpop.f32.mrb[0].mxu0
      %v739 = vpop.f32.mrb[0].mxu0
      %v740 = vpop.f32.mrb[0].mxu0
      %741 = vdwg.mxu0
      %s742 = scalar_lea.vmem [#allocation2], 24
      %v743 = vld [vmem:[%s742] sm:$0xff]
      %v744 = vsel %vm284, %v737, -inf
      %745 = vmax.xlane.f32.xlu0 %v744
      %v746 = vpop.xlane.xlu0 %745
      %v747 = vmax.f32 %v743, %v746
      %v748 = vsub.f32 %v743, %v747
      %v749 = vmul.f32 %v748, 1.442695
      %v750 = vpow.pop %v749
      %752 = vset.pattern.permute.xlu0 0
      %753 = vperm.xlu0 %752, %v747
      %v754 = vpop.permute.xlu0 %753
      %v756 = vsub.f32 %v737, %v754
      %v757 = vmul.f32 %v756, 1.442695
      %v758 = vpow.pop %v757
      %s759 = scalar_lea.vmem [#allocation3], 24
      %v760 = vld [vmem:[%s759] sm:$0xff]
      %v761 = vmul.f32 %v750, %v760
      %v762 = vsel %vm284, %v758, 0.0
      %763 = vadd.xlane.f32.xlu0 %v762
      %v764 = vpop.xlane.xlu0 %763
      %v765 = vadd.f32 %v761, %v764
      %766 = vst.msk [vmem:[%s759] sm:$0xff] %vm353, %v765
      %s767 = scalar_lea.vmem [#allocation4], 24
      %v768 = vld [vmem:[%s767] sm:$0xff]
      %770 = vset.pattern.permute.xlu0 0
      %771 = vperm.xlu0 %770, %v750
      %v772 = vpop.permute.xlu0 %771
      %v774 = vmul.f32 %v772, %v768
      %v775 = vpack.c.bf16 %v758, %v758
      %776 = vrot.lane.b32.xlu0 %v505, 104
      %v777 = vpop.permute.xlu0 %776
      %v779 = vsel %vm284, %v775, 0
      %v782 = vsel %vm366, %v777, 0
      %784 = vmatprep.subr.bf16.mxu0 0
      %785 = vmatpush1.bf16.msra.mxu0 %v782
      %786 = vmatprep.subr.bf16.mxu0 0
      %787 = vmatpush1.bf16.msra.mxu0 0
      %788 = vmatprep.subr.bf16.mxu0 0
      %789 = vmatpush1.bf16.msra.mxu0 0
      %790 = vmatprep.subr.bf16.mxu0 0
      %791 = vmatpush1.bf16.msra.mxu0 0
      %792 = vmatprep.subr.bf16.mxu0 0
      %793 = vmatpush1.bf16.msra.mxu0 0
      %794 = vmatprep.subr.bf16.mxu0 0
      %795 = vmatpush1.bf16.msra.mxu0 0
      %796 = vmatprep.subr.bf16.mxu0 0
      %797 = vmatpush1.bf16.msra.mxu0 0
      %798 = vmatprep.subr.bf16.mxu0 0
      %799 = vmatpush1.bf16.msra.mxu0 0
      %800 = vmatprep.subr.bf16.mxu0 0
      %801 = vmatpush1.bf16.msra.mxu0 0
      %802 = vmatprep.subr.bf16.mxu0 0
      %803 = vmatpush1.bf16.msra.mxu0 0
      %804 = vmatprep.subr.bf16.mxu0 0
      %805 = vmatpush1.bf16.msra.mxu0 0
      %806 = vmatprep.subr.bf16.mxu0 0
      %807 = vmatpush1.bf16.msra.mxu0 0
      %808 = vmatprep.subr.bf16.mxu0 0
      %809 = vmatpush1.bf16.msra.mxu0 0
      %810 = vmatprep.subr.bf16.mxu0 0
      %811 = vmatpush1.bf16.msra.mxu0 0
      %812 = vmatprep.subr.bf16.mxu0 0
      %813 = vmatpush1.bf16.msra.mxu0 0
      %814 = vmatprep.subr.bf16.mxu0 0
      %815 = vmatpush1.bf16.msra.mxu0 0
      %816 = vmatprep.mubr.bf16.mxu0 0
      %817 = vmatmul.mubr.bf16.gmra.mrb[0].mxu0 %v779
      %v818 = vpop.f32.mrb[0].mxu0
      %v819 = vadd.f32 0.0, %v818
      %v820 = vpop.f32.mrb[0].mxu0
      %v821 = vpop.f32.mrb[0].mxu0
      %v822 = vpop.f32.mrb[0].mxu0
      %823 = vdwg.mxu0
      %v824 = vadd.f32 %v774, %v819
      %825 = vst.msk [vmem:[%s767] sm:$0xff] %vm284, %v824
      %826 = vst.msk [vmem:[%s742] sm:$0xff] %vm353, %v747
      // Predicated region
      $region37: #{transformer_forward.26} parent=31 // pred_check
        %p827 = pneg %p262
      $region38: #{transformer_forward.26} parent=31 // pred_check_branch
        %829 = sbr.rel (%p827) target = $region40
      $region39: #{transformer_forward.26} parent=31 // pred_region
        %v830 = vld [vmem:[#allocation4] sm:$0xff]
        %v831 = vld [vmem:[#allocation3] sm:$0xff]
        %v832 = vrcp.pop %v831
        %834 = vset.pattern.permute.xlu0 0
        %835 = vperm.xlu0 %834, %v832
        %v836 = vpop.permute.xlu0 %835
        %v838 = vmul.f32 %v830, %v836
        %v839 = vld [vmem:[%s494] sm:$0xff]
        %v840 = vld [vmem:[%s486] sm:$0xff]
        %v841 = vrcp.pop %v840
        %843 = vset.pattern.permute.xlu0 0
        %844 = vperm.xlu0 %843, %v841
        %v845 = vpop.permute.xlu0 %844
        %v847 = vmul.f32 %v839, %v845
        %v848 = vld [vmem:[%s632] sm:$0xff]
        %v849 = vld [vmem:[%s624] sm:$0xff]
        %v850 = vrcp.pop %v849
        %852 = vset.pattern.permute.xlu0 0
        %853 = vperm.xlu0 %852, %v850
        %v854 = vpop.permute.xlu0 %853
        %v856 = vmul.f32 %v848, %v854
        %v857 = vld [vmem:[%s767] sm:$0xff]
        %v858 = vld [vmem:[%s759] sm:$0xff]
        %v859 = vrcp.pop %v858
        %861 = vset.pattern.permute.xlu0 0
        %862 = vperm.xlu0 %861, %v859
        %v863 = vpop.permute.xlu0 %862
        %v865 = vmul.f32 %v857, %v863
        %867 = vrot.lane.b32.xlu0 %v847, 8
        %v868 = vpop.permute.xlu0 %867
        %871 = vrot.lane.b32.xlu0 %v856, 16
        %v872 = vpop.permute.xlu0 %871
        %875 = vrot.lane.b32.xlu0 %v865, 24
        %v876 = vpop.permute.xlu0 %875
        %v878 = vsel %vm284, %v838, %v868
        %vm879 = vcmask 130048
        %v880 = vsel %vm879, %v878, %v872
        %vm881 = vcmask 195584
        %v882 = vsel %vm881, %v880, %v876
        %v883 = vpack.c.bf16 %v882, %v882
        %vm884 = vcmask 257024
        %885 = vst.msk [vmem:[%s259] sm:$0xf] %vm884, %v883
      $region40: #{transformer_forward.26} parent=31 // pred_fallthru
        _
      %p886 = scmp.lt.s32.totalorder %s19, 1
      %s887 = scalar_select %p886, %s19, 1
      %p888 = scmp.lt.s32.totalorder %s20, 0
      %s889 = scalar_select %p888, %s20, 0
      %s890 = sadd.s32 %s889, %s887
      %s891 = smul.addr %s890, 4
      %s892 = scalar_lea.vmem %s3, %s891
      // Predicated region
      $region41: #{transformer_forward.26} parent=31 // pred_check
        %p893 = pneg %p137
      $region42: #{transformer_forward.26} parent=31 // pred_check_branch
        %895 = sbr.rel (%p893) target = $region44
      $region43: #{transformer_forward.26} parent=31 // pred_region
        _
      $region44: #{transformer_forward.26} parent=31 // pred_fallthru
        _
    $region32: #{transformer_forward.26} parent=5 // pred_fallthru
      _
    %p896 = scmp.le.s32.totalorder 2, %s9
    // Predicated region
    $region45: #{transformer_forward.26} parent=5 // pred_check
      %p897 = pneg %p896
    $region46: #{transformer_forward.26} parent=5 // pred_check_branch
      %899 = sbr.rel (%p897) target = $region48
    $region47: #{transformer_forward.26} parent=5 // pred_region
      %s900 = ssub.s32 %s9, 2
      // Predicated region
      $region49: #{transformer_forward.26} parent=47 // pred_check
        %p901 = pneg %p143
      $region50: #{transformer_forward.26} parent=47 // pred_check_branch
        %903 = sbr.rel (%p901) target = $region52
      $region51: #{transformer_forward.26} parent=47 // pred_region
        %p904 = scmp.lt.s32.totalorder %s22, 1
        %s905 = scalar_select %p904, %s22, 1
        %p906 = scmp.lt.s32.totalorder %s23, 0
        %s907 = scalar_select %p906, %s23, 0
        %s908 = sadd.s32 %s907, %s905
        %s909 = smul.addr %s908, 4
        %s910 = scalar_lea.vmem %s3, %s909
      $region52: #{transformer_forward.26} parent=47 // pred_fallthru
        _
    $region48: #{transformer_forward.26} parent=5 // pred_fallthru
      _
  $region6: #{transformer_forward.26} parent=0 // loop_footer
    %s13 = sadd.s32 1, %s9
  $region7: #{transformer_forward.26} parent=0 // loop_footer_branch
    %8 = sbr.rel target = $region3
  $region8: #{transformer_forward.26} parent=0 // loop_exit
    _

// kernel: transformer_forward.36
$region0: #{transformer_forward.36}
  #allocation0 [shape = 'u32[]', space=smem, size = 0x4, offset = 0x4, fixed_abs, tag = 'smem constant byte address 0x4 - core index']
  #allocation1 [shape = 'u32[144,128]{1,0:T(1,128)}', space=vmem, size = 0x12000, scoped, tag = 'internal scratch']
  #allocation2 [shape = 'f32[16,32]{1,0:T(8,128)}', space=vmem, size = 0x2000, scoped, tag = 'scratch operand']
  %s0 = inlined_call_operand.vmem [shape: bf16[16,32], index: 0, kind: input, shape index: {}]
  %s1 = inlined_call_operand.vmem [shape: bf16[32,32], index: 1, kind: input, shape index: {}]
  %s2 = inlined_call_operand.vmem [shape: f32[1,32], index: 2, kind: input, shape index: {}]
  %s3 = inlined_call_operand.vmem [shape: bf16[16,32], index: 3, kind: output, shape index: {}]
  %s4 = sld [smem:[#allocation0]]
  $region30: #{transformer_forward.36} parent=0
    _
  %s6 = ssub.s32 1, %s4
  %s7 = scalar_select 0, %s6, %s4
  // Predicated region
  $region2: #{transformer_forward.36} parent=0 // pred_check
    _
  $region3: #{transformer_forward.36} parent=0 // pred_check_branch
    %9 = sbr.rel (0) target = $region5
  $region4: #{transformer_forward.36} parent=0 // pred_region
    _
  $region5: #{transformer_forward.36} parent=0 // pred_fallthru
    _
  // Predicated region
  $region6: #{transformer_forward.36} parent=0 // pred_check
    _
  $region7: #{transformer_forward.36} parent=0 // pred_check_branch
    %11 = sbr.rel (0) target = $region9
  $region8: #{transformer_forward.36} parent=0 // pred_region
    _
  $region9: #{transformer_forward.36} parent=0 // pred_fallthru
    _
  // Predicated region
  $region10: #{transformer_forward.36} parent=0 // pred_check
    _
  $region11: #{transformer_forward.36} parent=0 // pred_check_branch
    %13 = sbr.rel (0) target = $region13
  $region12: #{transformer_forward.36} parent=0 // pred_region
    _
  $region13: #{transformer_forward.36} parent=0 // pred_fallthru
    _
  %p15 = scmp.eq.s32.totalorder 0, 0
  // Predicated region
  $region14: #{transformer_forward.36} parent=0 // pred_check
    %p16 = pneg %p15
  $region15: #{transformer_forward.36} parent=0 // pred_check_branch
    %18 = sbr.rel (%p16) target = $region17
  $region16: #{transformer_forward.36} parent=0 // pred_region
    %vm19 = vcmask 261120
    %20 = vst.msk [vmem:[#allocation2] sm:$0xff] %vm19, 0.0
    %21 = vst.msk [vmem:[#allocation2 + $0x8] sm:$0xff] %vm19, 0.0
  $region17: #{transformer_forward.36} parent=0 // pred_fallthru
    _
  %v22 = vld [vmem:[#allocation2] sm:$0xff]
  %v23 = vld [vmem:[#allocation2 + $0x8] sm:$0xff]
  %v24 = vld [vmem:[%s0] sm:$0xf]
  %v25 = vld [vmem:[%s0 + $0x4] sm:$0xf]
  %v26 = vld [vmem:[%s1] sm:$0xf]
  %v27 = vld [vmem:[%s1 + $0x4] sm:$0xf]
  %v28 = vld [vmem:[%s1 + $0x8] sm:$0xf]
  %v29 = vld [vmem:[%s1 + $0xc] sm:$0xf]
  %v32 = vunpack.c.l.b16 %v24
  %v33 = vunpack.c.l.b16 %v25
  %v34 = vpack.c.b16 %v33, %v32
  %v39 = vunpack.c.l.b16 %v26
  %v40 = vunpack.c.l.b16 %v27
  %v41 = vunpack.c.l.b16 %v28
  %v42 = vunpack.c.l.b16 %v29
  %v43 = vpack.c.b16 %v40, %v39
  %v44 = vpack.c.b16 %v42, %v41
  %vm47 = vcmask 261120
  %v49 = vsel %vm47, %v34, 0
  %51 = vmatprep.subr.bf16.mxu0 0
  %52 = vmatpush1.bf16.msra.mxu0 %v43
  %53 = vmatprep.subr.bf16.mxu0 0
  %54 = vmatpush1.bf16.msra.mxu0 %v44
  %55 = vmatprep.subr.bf16.mxu0 0
  %56 = vmatpush1.bf16.msra.mxu0 0
  %57 = vmatprep.subr.bf16.mxu0 0
  %58 = vmatpush1.bf16.msra.mxu0 0
  %59 = vmatprep.subr.bf16.mxu0 0
  %60 = vmatpush1.bf16.msra.mxu0 0
  %61 = vmatprep.subr.bf16.mxu0 0
  %62 = vmatpush1.bf16.msra.mxu0 0
  %63 = vmatprep.subr.bf16.mxu0 0
  %64 = vmatpush1.bf16.msra.mxu0 0
  %65 = vmatprep.subr.bf16.mxu0 0
  %66 = vmatpush1.bf16.msra.mxu0 0
  %67 = vmatprep.subr.bf16.mxu0 0
  %68 = vmatpush1.bf16.msra.mxu0 0
  %69 = vmatprep.subr.bf16.mxu0 0
  %70 = vmatpush1.bf16.msra.mxu0 0
  %71 = vmatprep.subr.bf16.mxu0 0
  %72 = vmatpush1.bf16.msra.mxu0 0
  %73 = vmatprep.subr.bf16.mxu0 0
  %74 = vmatpush1.bf16.msra.mxu0 0
  %75 = vmatprep.subr.bf16.mxu0 0
  %76 = vmatpush1.bf16.msra.mxu0 0
  %77 = vmatprep.subr.bf16.mxu0 0
  %78 = vmatpush1.bf16.msra.mxu0 0
  %79 = vmatprep.subr.bf16.mxu0 0
  %80 = vmatpush1.bf16.msra.mxu0 0
  %81 = vmatprep.subr.bf16.mxu0 0
  %82 = vmatpush1.bf16.msra.mxu0 0
  %83 = vmatprep.mubr.bf16.mxu0 0
  %84 = vmatmul.mubr.bf16.gmra.mrb[0].mxu0 %v49
  %v85 = vpop.f32.mrb[0].mxu0
  %v86 = vadd.f32 0.0, %v85
  %v87 = vpop.f32.mrb[0].mxu0
  %v88 = vpop.f32.mrb[0].mxu0
  %v89 = vadd.f32 0.0, %v88
  %v90 = vpop.f32.mrb[0].mxu0
  %91 = vdwg.mxu0
  %v92 = vadd.f32 %v22, %v86
  %v93 = vadd.f32 %v23, %v89
  %94 = vst.msk [vmem:[#allocation2] sm:$0xff] %vm47, %v92
  %95 = vst.msk [vmem:[#allocation2 + $0x8] sm:$0xff] %vm47, %v93
  // Predicated region
  $region18: #{transformer_forward.36} parent=0 // pred_check
    %p96 = pneg %p15
  $region19: #{transformer_forward.36} parent=0 // pred_check_branch
    %98 = sbr.rel (%p96) target = $region21
  $region20: #{transformer_forward.36} parent=0 // pred_region
    %v99 = vld [vmem:[#allocation2] sm:$0xff]
    %v100 = vld [vmem:[#allocation2 + $0x8] sm:$0xff]
    %v101 = vld [vmem:[%s2] sm:$0x1]
    %v103 = vlaneseq
    %v104 = vshrl.u32 %v103, 7
    %v105 = vsub.s32 0, %v104
    %v106 = vrot.slane %v101, %v105
    %v108 = vadd.f32 %v99, %v106
    %v109 = vadd.f32 %v100, %v106
    %v110 = vpack.c.bf16 %v109, %v108
    %v112 = vunpack.c.l.b16 %v110
    %v113 = vunpack.c.h.b16 %v110
    %v114 = vpack.c.b16 %v112, %v112
    %v115 = vpack.c.b16 %v113, %v113
    %vm118 = vcmask 257024
    %119 = vst.msk [vmem:[%s3] sm:$0xf] %vm118, %v114
    %120 = vst.msk [vmem:[%s3 + $0x4] sm:$0xf] %vm118, %v115
  $region21: #{transformer_forward.36} parent=0 // pred_fallthru
    _
  // Predicated region
  $region22: #{transformer_forward.36} parent=0 // pred_check
    _
  $region23: #{transformer_forward.36} parent=0 // pred_check_branch
    %122 = sbr.rel (0) target = $region25
  $region24: #{transformer_forward.36} parent=0 // pred_region
    _
  $region25: #{transformer_forward.36} parent=0 // pred_fallthru
    _
  // Predicated region
  $region26: #{transformer_forward.36} parent=0 // pred_check
    _
  $region27: #{transformer_forward.36} parent=0 // pred_check_branch
    %124 = sbr.rel (0) target = $region29
  $region28: #{transformer_forward.36} parent=0 // pred_region
    _
  $region29: #{transformer_forward.36} parent=0 // pred_fallthru
    _

// kernel: transformer_forward.37
$region0: #{transformer_forward.37}
  #allocation0 [shape = 'u32[]', space=smem, size = 0x4, offset = 0x4, fixed_abs, tag = 'smem constant byte address 0x4 - core index']
  #allocation1 [shape = 'u32[144,128]{1,0:T(1,128)}', space=vmem, size = 0x12000, scoped, tag = 'internal scratch']
  #allocation2 [shape = 'f32[16,64]{1,0:T(8,128)}', space=vmem, size = 0x2000, scoped, tag = 'scratch operand']
  %s0 = inlined_call_operand.vmem [shape: bf16[16,32], index: 0, kind: input, shape index: {}]
  %s1 = inlined_call_operand.vmem [shape: bf16[32,64], index: 1, kind: input, shape index: {}]
  %s2 = inlined_call_operand.vmem [shape: f32[1,64], index: 2, kind: input, shape index: {}]
  %s3 = inlined_call_operand.vmem [shape: bf16[16,64], index: 3, kind: output, shape index: {}]
  %s4 = sld [smem:[#allocation0]]
  $region30: #{transformer_forward.37} parent=0
    _
  %s6 = ssub.s32 1, %s4
  %s7 = scalar_select 0, %s6, %s4
  // Predicated region
  $region2: #{transformer_forward.37} parent=0 // pred_check
    _
  $region3: #{transformer_forward.37} parent=0 // pred_check_branch
    %9 = sbr.rel (0) target = $region5
  $region4: #{transformer_forward.37} parent=0 // pred_region
    _
  $region5: #{transformer_forward.37} parent=0 // pred_fallthru
    _
  // Predicated region
  $region6: #{transformer_forward.37} parent=0 // pred_check
    _
  $region7: #{transformer_forward.37} parent=0 // pred_check_branch
    %11 = sbr.rel (0) target = $region9
  $region8: #{transformer_forward.37} parent=0 // pred_region
    _
  $region9: #{transformer_forward.37} parent=0 // pred_fallthru
    _
  // Predicated region
  $region10: #{transformer_forward.37} parent=0 // pred_check
    _
  $region11: #{transformer_forward.37} parent=0 // pred_check_branch
    %13 = sbr.rel (0) target = $region13
  $region12: #{transformer_forward.37} parent=0 // pred_region
    _
  $region13: #{transformer_forward.37} parent=0 // pred_fallthru
    _
  %p15 = scmp.eq.s32.totalorder 0, 0
  // Predicated region
  $region14: #{transformer_forward.37} parent=0 // pred_check
    %p16 = pneg %p15
  $region15: #{transformer_forward.37} parent=0 // pred_check_branch
    %18 = sbr.rel (%p16) target = $region17
  $region16: #{transformer_forward.37} parent=0 // pred_region
    %vm19 = vcmask 523264
    %20 = vst.msk [vmem:[#allocation2] sm:$0xff] %vm19, 0.0
    %21 = vst.msk [vmem:[#allocation2 + $0x8] sm:$0xff] %vm19, 0.0
  $region17: #{transformer_forward.37} parent=0 // pred_fallthru
    _
  %v22 = vld [vmem:[#allocation2] sm:$0xff]
  %v23 = vld [vmem:[#allocation2 + $0x8] sm:$0xff]
  %v24 = vld [vmem:[%s0] sm:$0xf]
  %v25 = vld [vmem:[%s0 + $0x4] sm:$0xf]
  %v26 = vld [vmem:[%s1] sm:$0xf]
  %v27 = vld [vmem:[%s1 + $0x4] sm:$0xf]
  %v28 = vld [vmem:[%s1 + $0x8] sm:$0xf]
  %v29 = vld [vmem:[%s1 + $0xc] sm:$0xf]
  %v32 = vunpack.c.l.b16 %v24
  %v33 = vunpack.c.l.b16 %v25
  %v34 = vpack.c.b16 %v33, %v32
  %v39 = vunpack.c.l.b16 %v26
  %v40 = vunpack.c.l.b16 %v27
  %v41 = vunpack.c.l.b16 %v28
  %v42 = vunpack.c.l.b16 %v29
  %v43 = vpack.c.b16 %v40, %v39
  %v44 = vpack.c.b16 %v42, %v41
  %vm47 = vcmask 261120
  %v49 = vsel %vm47, %v34, 0
  %51 = vmatprep.subr.bf16.mxu0 0
  %52 = vmatpush1.bf16.msra.mxu0 %v43
  %53 = vmatprep.subr.bf16.mxu0 0
  %54 = vmatpush1.bf16.msra.mxu0 %v44
  %55 = vmatprep.subr.bf16.mxu0 0
  %56 = vmatpush1.bf16.msra.mxu0 0
  %57 = vmatprep.subr.bf16.mxu0 0
  %58 = vmatpush1.bf16.msra.mxu0 0
  %59 = vmatprep.subr.bf16.mxu0 0
  %60 = vmatpush1.bf16.msra.mxu0 0
  %61 = vmatprep.subr.bf16.mxu0 0
  %62 = vmatpush1.bf16.msra.mxu0 0
  %63 = vmatprep.subr.bf16.mxu0 0
  %64 = vmatpush1.bf16.msra.mxu0 0
  %65 = vmatprep.subr.bf16.mxu0 0
  %66 = vmatpush1.bf16.msra.mxu0 0
  %67 = vmatprep.subr.bf16.mxu0 0
  %68 = vmatpush1.bf16.msra.mxu0 0
  %69 = vmatprep.subr.bf16.mxu0 0
  %70 = vmatpush1.bf16.msra.mxu0 0
  %71 = vmatprep.subr.bf16.mxu0 0
  %72 = vmatpush1.bf16.msra.mxu0 0
  %73 = vmatprep.subr.bf16.mxu0 0
  %74 = vmatpush1.bf16.msra.mxu0 0
  %75 = vmatprep.subr.bf16.mxu0 0
  %76 = vmatpush1.bf16.msra.mxu0 0
  %77 = vmatprep.subr.bf16.mxu0 0
  %78 = vmatpush1.bf16.msra.mxu0 0
  %79 = vmatprep.subr.bf16.mxu0 0
  %80 = vmatpush1.bf16.msra.mxu0 0
  %81 = vmatprep.subr.bf16.mxu0 0
  %82 = vmatpush1.bf16.msra.mxu0 0
  %83 = vmatprep.mubr.bf16.mxu0 0
  %84 = vmatmul.mubr.bf16.gmra.mrb[0].mxu0 %v49
  %v85 = vpop.f32.mrb[0].mxu0
  %v86 = vadd.f32 0.0, %v85
  %v87 = vpop.f32.mrb[0].mxu0
  %v88 = vpop.f32.mrb[0].mxu0
  %v89 = vadd.f32 0.0, %v88
  %v90 = vpop.f32.mrb[0].mxu0
  %91 = vdwg.mxu0
  %v92 = vadd.f32 %v22, %v86
  %v93 = vadd.f32 %v23, %v89
  %vm94 = vcmask 523264
  %95 = vst.msk [vmem:[#allocation2] sm:$0xff] %vm94, %v92
  %96 = vst.msk [vmem:[#allocation2 + $0x8] sm:$0xff] %vm94, %v93
  // Predicated region
  $region18: #{transformer_forward.37} parent=0 // pred_check
    %p97 = pneg %p15
  $region19: #{transformer_forward.37} parent=0 // pred_check_branch
    %99 = sbr.rel (%p97) target = $region21
  $region20: #{transformer_forward.37} parent=0 // pred_region
    %v100 = vld [vmem:[#allocation2] sm:$0xff]
    %v101 = vld [vmem:[#allocation2 + $0x8] sm:$0xff]
    %v102 = vld [vmem:[%s2] sm:$0x1]
    %v104 = vlaneseq
    %v105 = vshrl.u32 %v104, 7
    %v106 = vsub.s32 0, %v105
    %v107 = vrot.slane %v102, %v106
    %v109 = vadd.f32 %v100, %v107
    %v110 = vadd.f32 %v101, %v107
    %v111 = vpack.c.bf16 %v110, %v109
    %v113 = vunpack.c.l.b16 %v111
    %v114 = vunpack.c.h.b16 %v111
    %v115 = vpack.c.b16 %v113, %v113
    %v116 = vpack.c.b16 %v114, %v114
    %vm119 = vcmask 519168
    %120 = vst.msk [vmem:[%s3] sm:$0xf] %vm119, %v115
    %121 = vst.msk [vmem:[%s3 + $0x4] sm:$0xf] %vm119, %v116
  $region21: #{transformer_forward.37} parent=0 // pred_fallthru
    _
  // Predicated region
  $region22: #{transformer_forward.37} parent=0 // pred_check
    _
  $region23: #{transformer_forward.37} parent=0 // pred_check_branch
    %123 = sbr.rel (0) target = $region25
  $region24: #{transformer_forward.37} parent=0 // pred_region
    _
  $region25: #{transformer_forward.37} parent=0 // pred_fallthru
    _
  // Predicated region
  $region26: #{transformer_forward.37} parent=0 // pred_check
    _
  $region27: #{transformer_forward.37} parent=0 // pred_check_branch
    %125 = sbr.rel (0) target = $region29
  $region28: #{transformer_forward.37} parent=0 // pred_region
    _
  $region29: #{transformer_forward.37} parent=0 // pred_fallthru
    _

// kernel: transformer_forward.49
$region0: #{transformer_forward.49}
  #allocation0 [shape = 'u32[]', space=smem, size = 0x4, offset = 0x4, fixed_abs, tag = 'smem constant byte address 0x4 - core index']
  #allocation1 [shape = 'u32[144,128]{1,0:T(1,128)}', space=vmem, size = 0x12000, scoped, tag = 'internal scratch']
  #allocation2 [shape = 'f32[16,64]{1,0:T(8,128)}', space=vmem, size = 0x2000, scoped, tag = 'scratch operand']
  %s0 = inlined_call_operand.vmem [shape: bf16[16,32], index: 0, kind: input, shape index: {}]
  %s1 = inlined_call_operand.vmem [shape: bf16[32,64], index: 1, kind: input, shape index: {}]
  %s2 = inlined_call_operand.vmem [shape: f32[1,64], index: 2, kind: input, shape index: {}]
  %s3 = inlined_call_operand.hbm [shape: f32[16,64], index: 3, kind: output, shape index: {}]
  %s4 = sld [smem:[#allocation0]]
  $region30: #{transformer_forward.49} parent=0
    _
  %s6 = ssub.s32 1, %s4
  %s7 = scalar_select 0, %s6, %s4
  $region1: #{transformer_forward.49} parent=0
    #allocation3 [shape = 'u8[8192]{0}', space=vmem, size = 0x2000, scoped, tag = 'output window, operand 0, single buffered']
    #allocation4 [shape = 's32[1]{0}', space=sflag, size = 0x4, scoped, tag = 'scoped memory for transformer_forward.49']
    %8 = vsyncpa [#allocation4], 0
    // Predicated region
    $region2: #{transformer_forward.49} parent=1 // pred_check
      _
    $region3: #{transformer_forward.49} parent=1 // pred_check_branch
      %10 = sbr.rel (0) target = $region5
    $region4: #{transformer_forward.49} parent=1 // pred_region
      _
    $region5: #{transformer_forward.49} parent=1 // pred_fallthru
      _
    // Predicated region
    $region6: #{transformer_forward.49} parent=1 // pred_check
      _
    $region7: #{transformer_forward.49} parent=1 // pred_check_branch
      %12 = sbr.rel (0) target = $region9
    $region8: #{transformer_forward.49} parent=1 // pred_region
      _
    $region9: #{transformer_forward.49} parent=1 // pred_fallthru
      _
    // Predicated region
    $region10: #{transformer_forward.49} parent=1 // pred_check
      _
    $region11: #{transformer_forward.49} parent=1 // pred_check_branch
      %14 = sbr.rel (0) target = $region13
    $region12: #{transformer_forward.49} parent=1 // pred_region
      _
    $region13: #{transformer_forward.49} parent=1 // pred_fallthru
      _
    %p16 = scmp.eq.s32.totalorder 0, 0
    // Predicated region
    $region14: #{transformer_forward.49} parent=1 // pred_check
      %p17 = pneg %p16
    $region15: #{transformer_forward.49} parent=1 // pred_check_branch
      %19 = sbr.rel (%p17) target = $region17
    $region16: #{transformer_forward.49} parent=1 // pred_region
      %vm20 = vcmask 523264
      %21 = vst.msk [vmem:[#allocation2] sm:$0xff] %vm20, 0.0
      %22 = vst.msk [vmem:[#allocation2 + $0x8] sm:$0xff] %vm20, 0.0
    $region17: #{transformer_forward.49} parent=1 // pred_fallthru
      _
    %v23 = vld [vmem:[#allocation2] sm:$0xff]
    %v24 = vld [vmem:[#allocation2 + $0x8] sm:$0xff]
    %v25 = vld [vmem:[%s0] sm:$0xf]
    %v26 = vld [vmem:[%s0 + $0x4] sm:$0xf]
    %v27 = vld [vmem:[%s1] sm:$0xf]
    %v28 = vld [vmem:[%s1 + $0x4] sm:$0xf]
    %v29 = vld [vmem:[%s1 + $0x8] sm:$0xf]
    %v30 = vld [vmem:[%s1 + $0xc] sm:$0xf]
    %v33 = vunpack.c.l.b16 %v25
    %v34 = vunpack.c.l.b16 %v26
    %v35 = vpack.c.b16 %v34, %v33
    %v40 = vunpack.c.l.b16 %v27
    %v41 = vunpack.c.l.b16 %v28
    %v42 = vunpack.c.l.b16 %v29
    %v43 = vunpack.c.l.b16 %v30
    %v44 = vpack.c.b16 %v41, %v40
    %v45 = vpack.c.b16 %v43, %v42
    %vm48 = vcmask 261120
    %v50 = vsel %vm48, %v35, 0
    %52 = vmatprep.subr.bf16.mxu0 0
    %53 = vmatpush1.bf16.msra.mxu0 %v44
    %54 = vmatprep.subr.bf16.mxu0 0
    %55 = vmatpush1.bf16.msra.mxu0 %v45
    %56 = vmatprep.subr.bf16.mxu0 0
    %57 = vmatpush1.bf16.msra.mxu0 0
    %58 = vmatprep.subr.bf16.mxu0 0
    %59 = vmatpush1.bf16.msra.mxu0 0
    %60 = vmatprep.subr.bf16.mxu0 0
    %61 = vmatpush1.bf16.msra.mxu0 0
    %62 = vmatprep.subr.bf16.mxu0 0
    %63 = vmatpush1.bf16.msra.mxu0 0
    %64 = vmatprep.subr.bf16.mxu0 0
    %65 = vmatpush1.bf16.msra.mxu0 0
    %66 = vmatprep.subr.bf16.mxu0 0
    %67 = vmatpush1.bf16.msra.mxu0 0
    %68 = vmatprep.subr.bf16.mxu0 0
    %69 = vmatpush1.bf16.msra.mxu0 0
    %70 = vmatprep.subr.bf16.mxu0 0
    %71 = vmatpush1.bf16.msra.mxu0 0
    %72 = vmatprep.subr.bf16.mxu0 0
    %73 = vmatpush1.bf16.msra.mxu0 0
    %74 = vmatprep.subr.bf16.mxu0 0
    %75 = vmatpush1.bf16.msra.mxu0 0
    %76 = vmatprep.subr.bf16.mxu0 0
    %77 = vmatpush1.bf16.msra.mxu0 0
    %78 = vmatprep.subr.bf16.mxu0 0
    %79 = vmatpush1.bf16.msra.mxu0 0
    %80 = vmatprep.subr.bf16.mxu0 0
    %81 = vmatpush1.bf16.msra.mxu0 0
    %82 = vmatprep.subr.bf16.mxu0 0
    %83 = vmatpush1.bf16.msra.mxu0 0
    %84 = vmatprep.mubr.bf16.mxu0 0
    %85 = vmatmul.mubr.bf16.gmra.mrb[0].mxu0 %v50
    %v86 = vpop.f32.mrb[0].mxu0
    %v87 = vadd.f32 0.0, %v86
    %v88 = vpop.f32.mrb[0].mxu0
    %v89 = vpop.f32.mrb[0].mxu0
    %v90 = vadd.f32 0.0, %v89
    %v91 = vpop.f32.mrb[0].mxu0
    %92 = vdwg.mxu0
    %v93 = vadd.f32 %v23, %v87
    %v94 = vadd.f32 %v24, %v90
    %vm95 = vcmask 523264
    %96 = vst.msk [vmem:[#allocation2] sm:$0xff] %vm95, %v93
    %97 = vst.msk [vmem:[#allocation2 + $0x8] sm:$0xff] %vm95, %v94
    // Predicated region
    $region18: #{transformer_forward.49} parent=1 // pred_check
      %p98 = pneg %p16
    $region19: #{transformer_forward.49} parent=1 // pred_check_branch
      %100 = sbr.rel (%p98) target = $region21
    $region20: #{transformer_forward.49} parent=1 // pred_region
      %v101 = vld [vmem:[#allocation2] sm:$0xff]
      %v102 = vld [vmem:[#allocation2 + $0x8] sm:$0xff]
      %v103 = vld [vmem:[%s2] sm:$0x1]
      %v105 = vlaneseq
      %v106 = vshrl.u32 %v105, 7
      %v107 = vsub.s32 0, %v106
      %v108 = vrot.slane %v103, %v107
      %v110 = vadd.f32 %v101, %v108
      %v111 = vadd.f32 %v102, %v108
      %112 = vst.msk [vmem:[#allocation3] sm:$0xff] %vm95, %v110
      %113 = vst.msk [vmem:[#allocation3 + $0x8] sm:$0xff] %vm95, %v111
    $region21: #{transformer_forward.49} parent=1 // pred_fallthru
      _
    // Predicated region
    $region22: #{transformer_forward.49} parent=1 // pred_check
      _
    $region23: #{transformer_forward.49} parent=1 // pred_check_branch
      %115 = sbr.rel (0) target = $region25
    $region24: #{transformer_forward.49} parent=1 // pred_region
      %s117 = ssub.s32 256, 256
      %118 = vsyncadd [#allocation4], %s117
      %s119 = sshll.u32 [#allocation3], 4
      %s120 = int_to_ptr.vmem [resolvable:$true] %s119
      %125 = dma.vmem_to_hbm [thread:$0]  %s120, 256, %s3, [#allocation4], 128, 128, 8
    $region25: #{transformer_forward.49} parent=1 // pred_fallthru
      _
    // Predicated region
    $region26: #{transformer_forward.49} parent=1 // pred_check
      _
    $region27: #{transformer_forward.49} parent=1 // pred_check_branch
      %127 = sbr.rel (0) target = $region29
    $region28: #{transformer_forward.49} parent=1 // pred_region
      %128 = dma.done [#allocation4], 256
    $region29: #{transformer_forward.49} parent=1 // pred_fallthru
      _
    %129 = vsyncpa [#allocation4], 1

// kernel: transformer_forward.34
$region0: #{transformer_forward.34}
  #allocation0 [shape = 'u32[]', space=smem, size = 0x4, offset = 0x4, fixed_abs, tag = 'smem constant byte address 0x4 - core index']
  #allocation1 [shape = 'u32[144,128]{1,0:T(1,128)}', space=vmem, size = 0x12000, scoped, tag = 'internal scratch']
  #allocation2 [shape = 'f32[4,8,1]{2,1,0:T(8,128)}', space=vmem, size = 0x4000, scoped, tag = 'scratch operand']
  #allocation3 [shape = 'f32[4,8,1]{2,1,0:T(8,128)}', space=vmem, size = 0x4000, scoped, tag = 'scratch operand']
  #allocation4 [shape = 'f32[4,8,8]{2,1,0:T(8,128)}', space=vmem, size = 0x4000, scoped, tag = 'scratch operand']
  %s0 = inlined_call_operand.vmem [shape: bf16[2,8,32], index: 0, kind: input, shape index: {}]
  %s1 = inlined_call_operand.vmem [shape: bf16[2,8,32], index: 1, kind: input, shape index: {}]
  %s2 = inlined_call_operand.vmem [shape: bf16[2,8,32], index: 2, kind: input, shape index: {}]
  %s3 = inlined_call_operand.vmem [shape: bf16[2,8,32], index: 3, kind: output, shape index: {}]
  %s4 = sld [smem:[#allocation0]]
  $region53: #{transformer_forward.34} parent=0
    _
  %s6 = ssub.s32 1, %s4
  %s7 = scalar_select 0, %s6, %s4
  loop: start=0, step=1, limit=4
  $region2: #{transformer_forward.34} parent=0 // loop_pre_header
    _
  $region3: #{transformer_forward.34} parent=0 // loop_header
    %s9 = sphi 0, %s13
    %p10 = scmp.ge.s32.totalorder %s9, 4
    %s16 = sphi 0, %s35
    %s17 = sphi 0, %s31
    %s18 = sphi 0, %s27
    %s19 = sphi 0, %s16
    %s20 = sphi 0, %s17
    %s21 = sphi 0, %s18
    %s22 = sphi 0, %s19
    %s23 = sphi 0, %s20
    %s24 = sphi 0, %s21
    %s40 = sphi 0, %s42
    %s43 = sphi 0, %s40
    %s44 = sphi 0, %s43
    %s60 = sphi 0, %s44
    %s68 = sphi 0, %s70
    %s71 = sphi 0, %s68
    %s72 = sphi 0, %s71
    %s88 = sphi 0, %s72
    %s96 = sphi 0, %s98
    %s99 = sphi 0, %s96
    %s100 = sphi 0, %s99
    %s116 = sphi 0, %s100
    %s124 = sphi 0, %s126
    %s127 = sphi 0, %s124
    %s128 = sphi 0, %s127
    %s144 = sphi 0, %s128
  $region4: #{transformer_forward.34} parent=0 // loop_header_branch
    %12 = sbr.rel (%p10) target = $region8
  $region5: #{transformer_forward.34} parent=0 // loop_body
    %s14 = ssub.s32 %s9, 1
    %s15 = ssub.s32 %s9, 2
    %s25 = sadd.s32 1, %s18
    %p26 = scmp.ge.s32.totalorder %s25, 1
    %s27 = scalar_select %p26, 0, %s25
    %s28 = sadd.s32 1, %s17
    %s29 = scalar_select %p26, %s28, %s17
    %p30 = scmp.ge.s32.totalorder %s29, 1
    %s31 = scalar_select %p30, 0, %s29
    %s32 = sadd.s32 1, %s16
    %s33 = scalar_select %p30, %s32, %s16
    %p34 = scmp.ge.s32.totalorder %s33, 2
    %s35 = scalar_select %p34, 0, %s33
    %s36 = ssub.s32 %s16, %s35
    %s37 = ssub.s32 %s17, %s31
    %s38 = sor.u32 %s36, %s37
    %p39 = scmp.eq.s32.totalorder %s38, 0
    %s41 = sadd.s32 %s40, 1
    %s42 = scalar_select %p39, %s40, %s41
    %p45 = pneg %p39
    %p46 = scmp.eq.s32.totalorder %s9, 1
    %p47 = por %p45, %p46
    %p48 = scmp.ne.s32.totalorder %s40, %s43
    %p49 = scmp.eq.s32.totalorder %s9, 0
    %p50 = por %p48, %p49
    %p51 = scmp.ne.s32.totalorder %s40, %s43
    %p52 = scmp.eq.s32.totalorder %s14, 1
    %p53 = por %p51, %p52
    %p54 = scmp.ne.s32.totalorder %s43, %s44
    %p55 = scmp.eq.s32.totalorder %s14, 0
    %p56 = por %p54, %p55
    %p57 = scmp.ne.s32.totalorder %s43, %s44
    %p58 = scmp.eq.s32.totalorder %s15, 1
    %p59 = por %p57, %p58
    %p61 = scmp.ne.s32.totalorder %s44, %s60
    %p62 = scmp.eq.s32.totalorder %s15, 0
    %p63 = por %p61, %p62
    %s64 = ssub.s32 %s16, %s35
    %s65 = ssub.s32 %s18, %s27
    %s66 = sor.u32 %s64, %s65
    %p67 = scmp.eq.s32.totalorder %s66, 0
    %s69 = sadd.s32 %s68, 1
    %s70 = scalar_select %p67, %s68, %s69
    %p73 = pneg %p67
    %p74 = scmp.eq.s32.totalorder %s9, 1
    %p75 = por %p73, %p74
    %p76 = scmp.ne.s32.totalorder %s68, %s71
    %p77 = scmp.eq.s32.totalorder %s9, 0
    %p78 = por %p76, %p77
    %p79 = scmp.ne.s32.totalorder %s68, %s71
    %p80 = scmp.eq.s32.totalorder %s14, 1
    %p81 = por %p79, %p80
    %p82 = scmp.ne.s32.totalorder %s71, %s72
    %p83 = scmp.eq.s32.totalorder %s14, 0
    %p84 = por %p82, %p83
    %p85 = scmp.ne.s32.totalorder %s71, %s72
    %p86 = scmp.eq.s32.totalorder %s15, 1
    %p87 = por %p85, %p86
    %p89 = scmp.ne.s32.totalorder %s72, %s88
    %p90 = scmp.eq.s32.totalorder %s15, 0
    %p91 = por %p89, %p90
    %s92 = ssub.s32 %s16, %s35
    %s93 = ssub.s32 %s18, %s27
    %s94 = sor.u32 %s92, %s93
    %p95 = scmp.eq.s32.totalorder %s94, 0
    %s97 = sadd.s32 %s96, 1
    %s98 = scalar_select %p95, %s96, %s97
    %p101 = pneg %p95
    %p102 = scmp.eq.s32.totalorder %s9, 1
    %p103 = por %p101, %p102
    %p104 = scmp.ne.s32.totalorder %s96, %s99
    %p105 = scmp.eq.s32.totalorder %s9, 0
    %p106 = por %p104, %p105
    %p107 = scmp.ne.s32.totalorder %s96, %s99
    %p108 = scmp.eq.s32.totalorder %s14, 1
    %p109 = por %p107, %p108
    %p110 = scmp.ne.s32.totalorder %s99, %s100
    %p111 = scmp.eq.s32.totalorder %s14, 0
    %p112 = por %p110, %p111
    %p113 = scmp.ne.s32.totalorder %s99, %s100
    %p114 = scmp.eq.s32.totalorder %s15, 1
    %p115 = por %p113, %p114
    %p117 = scmp.ne.s32.totalorder %s100, %s116
    %p118 = scmp.eq.s32.totalorder %s15, 0
    %p119 = por %p117, %p118
    %s120 = ssub.s32 %s16, %s35
    %s121 = ssub.s32 %s17, %s31
    %s122 = sor.u32 %s120, %s121
    %p123 = scmp.eq.s32.totalorder %s122, 0
    %s125 = sadd.s32 %s124, 1
    %s126 = scalar_select %p123, %s124, %s125
    %p129 = pneg %p123
    %p130 = scmp.eq.s32.totalorder %s9, 1
    %p131 = por %p129, %p130
    %p132 = scmp.ne.s32.totalorder %s124, %s127
    %p133 = scmp.eq.s32.totalorder %s9, 0
    %p134 = por %p132, %p133
    %p135 = scmp.ne.s32.totalorder %s124, %s127
    %p136 = scmp.eq.s32.totalorder %s14, 1
    %p137 = por %p135, %p136
    %p138 = scmp.ne.s32.totalorder %s127, %s128
    %p139 = scmp.eq.s32.totalorder %s14, 0
    %p140 = por %p138, %p139
    %p141 = scmp.ne.s32.totalorder %s127, %s128
    %p142 = scmp.eq.s32.totalorder %s15, 1
    %p143 = por %p141, %p142
    %p145 = scmp.ne.s32.totalorder %s128, %s144
    %p146 = scmp.eq.s32.totalorder %s15, 0
    %p147 = por %p145, %p146
    %p148 = scmp.le.s32.totalorder 1, %s9
    %p149 = scmp.lt.s32.totalorder %s9, 3
    %p150 = pnand %p148, %p149
    %p151 = pneg %p150
    // Predicated region
    $region9: #{transformer_forward.34} parent=5 // pred_check
      _
    $region10: #{transformer_forward.34} parent=5 // pred_check_branch
      %153 = sbr.rel (%p150) target = $region12
    $region11: #{transformer_forward.34} parent=5 // pred_region
      %s154 = ssub.s32 %s9, 1
    $region12: #{transformer_forward.34} parent=5 // pred_fallthru
      _
    %p155 = scmp.lt.s32.totalorder %s9, 2
    // Predicated region
    $region13: #{transformer_forward.34} parent=5 // pred_check
      %p156 = pneg %p155
    $region14: #{transformer_forward.34} parent=5 // pred_check_branch
      %158 = sbr.rel (%p156) target = $region16
    $region15: #{transformer_forward.34} parent=5 // pred_region
      // Predicated region
      $region17: #{transformer_forward.34} parent=15 // pred_check
        %p159 = pneg %p50
      $region18: #{transformer_forward.34} parent=15 // pred_check_branch
        %161 = sbr.rel (%p159) target = $region20
      $region19: #{transformer_forward.34} parent=15 // pred_region
        %p162 = scmp.lt.s32.totalorder %s16, 1
        %s163 = scalar_select %p162, %s16, 1
        %p164 = scmp.lt.s32.totalorder %s17, 0
        %s165 = scalar_select %p164, %s17, 0
        %s166 = sadd.s32 %s165, %s163
        %s167 = smul.addr %s166, 4
        %s168 = scalar_lea.vmem %s0, %s167
      $region20: #{transformer_forward.34} parent=15 // pred_fallthru
        _
      // Predicated region
      $region21: #{transformer_forward.34} parent=15 // pred_check
        %p169 = pneg %p78
      $region22: #{transformer_forward.34} parent=15 // pred_check_branch
        %171 = sbr.rel (%p169) target = $region24
      $region23: #{transformer_forward.34} parent=15 // pred_region
        %p172 = scmp.lt.s32.totalorder %s16, 1
        %s173 = scalar_select %p172, %s16, 1
        %p174 = scmp.lt.s32.totalorder %s18, 0
        %s175 = scalar_select %p174, %s18, 0
        %s176 = sadd.s32 %s175, %s173
        %s177 = smul.addr %s176, 4
        %s178 = scalar_lea.vmem %s1, %s177
      $region24: #{transformer_forward.34} parent=15 // pred_fallthru
        _
      // Predicated region
      $region25: #{transformer_forward.34} parent=15 // pred_check
        %p179 = pneg %p106
      $region26: #{transformer_forward.34} parent=15 // pred_check_branch
        %181 = sbr.rel (%p179) target = $region28
      $region27: #{transformer_forward.34} parent=15 // pred_region
        %p182 = scmp.lt.s32.totalorder %s16, 1
        %s183 = scalar_select %p182, %s16, 1
        %p184 = scmp.lt.s32.totalorder %s18, 0
        %s185 = scalar_select %p184, %s18, 0
        %s186 = sadd.s32 %s185, %s183
        %s187 = smul.addr %s186, 4
        %s188 = scalar_lea.vmem %s2, %s187
      $region28: #{transformer_forward.34} parent=15 // pred_fallthru
        _
    $region16: #{transformer_forward.34} parent=5 // pred_fallthru
      _
    %p189 = scmp.le.s32.totalorder 1, %s9
    %p190 = scmp.lt.s32.totalorder %s9, 3
    %p191 = pnand %p189, %p190
    %p192 = pneg %p191
    // Predicated region
    $region29: #{transformer_forward.34} parent=5 // pred_check
      _
    $region30: #{transformer_forward.34} parent=5 // pred_check_branch
      %194 = sbr.rel (%p191) target = $region32
    $region31: #{transformer_forward.34} parent=5 // pred_region
      %s195 = ssub.s32 %s9, 1
      %p196 = scmp.lt.s32.totalorder %s19, 1
      %s197 = scalar_select %p196, %s19, 1
      %p198 = scmp.lt.s32.totalorder %s20, 0
      %s199 = scalar_select %p198, %s20, 0
      %s200 = sadd.s32 %s199, %s197
      %s201 = smul.addr %s200, 4
      %s202 = scalar_lea.vmem %s0, %s201
      %p203 = pneg %p56
      %p204 = pneg %p53
      %p205 = scmp.lt.s32.totalorder %s19, 1
      %s206 = scalar_select %p205, %s19, 1
      %p207 = scmp.lt.s32.totalorder %s21, 0
      %s208 = scalar_select %p207, %s21, 0
      %s209 = sadd.s32 %s208, %s206
      %s210 = smul.addr %s209, 4
      %s211 = scalar_lea.vmem %s1, %s210
      %p212 = pneg %p84
      %p213 = pneg %p81
      %p214 = scmp.lt.s32.totalorder %s19, 1
      %s215 = scalar_select %p214, %s19, 1
      %p216 = scmp.lt.s32.totalorder %s21, 0
      %s217 = scalar_select %p216, %s21, 0
      %s218 = sadd.s32 %s217, %s215
      %s219 = smul.addr %s218, 4
      %s220 = scalar_lea.vmem %s2, %s219
      %p221 = pneg %p112
      %p222 = pneg %p109
      %p223 = pneg %p140
      %p224 = pneg %p137
      %p225 = scmp.lt.s32.totalorder %s19, 1
      %s226 = scalar_select %p225, %s19, 1
      %p227 = scmp.lt.s32.totalorder %s20, 0
      %s228 = scalar_select %p227, %s20, 0
      %s229 = sadd.s32 %s228, %s226
      %s230 = smul.addr %s229, 4
      %s231 = scalar_lea.vmem %s3, %s230
      %p232 = scmp.lt.s32.totalorder %s19, 1
      %s233 = scalar_select %p232, %s19, 1
      %p234 = scmp.lt.s32.totalorder %s20, 0
      %s235 = scalar_select %p234, %s20, 0
      %s236 = sadd.s32 %s235, %s233
      %s237 = smul.addr %s236, 4
      %s238 = scalar_lea.vmem %s0, %s237
      %p239 = scmp.lt.s32.totalorder %s19, 1
      %s240 = scalar_select %p239, %s19, 1
      %p241 = scmp.lt.s32.totalorder %s21, 0
      %s242 = scalar_select %p241, %s21, 0
      %s243 = sadd.s32 %s242, %s240
      %s244 = smul.addr %s243, 4
      %s245 = scalar_lea.vmem %s1, %s244
      %p246 = scmp.lt.s32.totalorder %s19, 1
      %s247 = scalar_select %p246, %s19, 1
      %p248 = scmp.lt.s32.totalorder %s21, 0
      %s249 = scalar_select %p248, %s21, 0
      %s250 = sadd.s32 %s249, %s247
      %s251 = smul.addr %s250, 4
      %s252 = scalar_lea.vmem %s2, %s251
      %p253 = scmp.lt.s32.totalorder %s19, 1
      %s254 = scalar_select %p253, %s19, 1
      %p255 = scmp.lt.s32.totalorder %s20, 0
      %s256 = scalar_select %p255, %s20, 0
      %s257 = sadd.s32 %s256, %s254
      %s258 = smul.addr %s257, 4
      %s259 = scalar_lea.vmem %s3, %s258
      %p262 = scmp.eq.s32.totalorder %s21, 0
      // Predicated region
      $region33: #{transformer_forward.34} parent=31 // pred_check
        %p263 = pneg %p262
      $region34: #{transformer_forward.34} parent=31 // pred_check_branch
        %265 = sbr.rel (%p263) target = $region36
      $region35: #{transformer_forward.34} parent=31 // pred_region
        %vm266 = vcmask 7168
        %267 = vst.msk [vmem:[#allocation2] sm:$0xff] %vm266, -1e+30
        %268 = vst.msk [vmem:[#allocation2 + $0x8] sm:$0xff] %vm266, -1e+30
        %269 = vst.msk [vmem:[#allocation2 + $0x10] sm:$0xff] %vm266, -1e+30
        %270 = vst.msk [vmem:[#allocation2 + $0x18] sm:$0xff] %vm266, -1e+30
        %271 = vst.msk [vmem:[#allocation3] sm:$0xff] %vm266, 0.0
        %272 = vst.msk [vmem:[#allocation3 + $0x8] sm:$0xff] %vm266, 0.0
        %273 = vst.msk [vmem:[#allocation3 + $0x10] sm:$0xff] %vm266, 0.0
        %274 = vst.msk [vmem:[#allocation3 + $0x18] sm:$0xff] %vm266, 0.0
        %vm275 = vcmask 64512
        %276 = vst.msk [vmem:[#allocation4] sm:$0xff] %vm275, 0.0
        %277 = vst.msk [vmem:[#allocation4 + $0x8] sm:$0xff] %vm275, 0.0
        %278 = vst.msk [vmem:[#allocation4 + $0x10] sm:$0xff] %vm275, 0.0
        %279 = vst.msk [vmem:[#allocation4 + $0x18] sm:$0xff] %vm275, 0.0
      $region36: #{transformer_forward.34} parent=31 // pred_fallthru
        _
      %v280 = vld [vmem:[%s238] sm:$0xf]
      %v281 = vmul.bf16 %v280, 1052065461
      %v282 = vld [vmem:[%s245] sm:$0xf]
      %v283 = vld [vmem:[%s252] sm:$0xf]
      %s284 = smul.u32 %s20, 8
      %v285 = vlaneseq
      %v286 = vshrl.u32 %v285, 7
      %v287 = vstv %s284
      %v288 = vadd.s32 %v287, %v286
      %s289 = smul.u32 %s21, 8
      %v290 = vlaneseq
      %v291 = vand.u32 %v290, 127
      %v292 = vstv %s289
      %v293 = vadd.s32 %v292, %v291
      %vm294 = vcmp.le.s32.totalorder %v293, %v288
      %vm295 = vcmask 64512
      %v297 = vsel %vm295, %v281, 0
      %v300 = vsel %vm295, %v282, 0
      %302 = vmatprep.subr.bf16.mxu0 0
      %303 = vmatpush1.bf16.xpose.msra.mxu0 %v300
      %304 = vmatprep.subr.bf16.mxu0 0
      %305 = vmatpush1.bf16.xpose.msra.mxu0 0
      %306 = vmatprep.subr.bf16.mxu0 0
      %307 = vmatpush1.bf16.xpose.msra.mxu0 0
      %308 = vmatprep.subr.bf16.mxu0 0
      %309 = vmatpush1.bf16.xpose.msra.mxu0 0
      %310 = vmatprep.subr.bf16.mxu0 0
      %311 = vmatpush1.bf16.xpose.msra.mxu0 0
      %312 = vmatprep.subr.bf16.mxu0 0
      %313 = vmatpush1.bf16.xpose.msra.mxu0 0
      %314 = vmatprep.subr.bf16.mxu0 0
      %315 = vmatpush1.bf16.xpose.msra.mxu0 0
      %316 = vmatprep.subr.bf16.mxu0 0
      %317 = vmatpush1.bf16.xpose.msra.mxu0 0
      %318 = vmatprep.subr.bf16.mxu0 0
      %319 = vmatpush1.bf16.xpose.msra.mxu0 0
      %320 = vmatprep.subr.bf16.mxu0 0
      %321 = vmatpush1.bf16.xpose.msra.mxu0 0
      %322 = vmatprep.subr.bf16.mxu0 0
      %323 = vmatpush1.bf16.xpose.msra.mxu0 0
      %324 = vmatprep.subr.bf16.mxu0 0
      %325 = vmatpush1.bf16.xpose.msra.mxu0 0
      %326 = vmatprep.subr.bf16.mxu0 0
      %327 = vmatpush1.bf16.xpose.msra.mxu0 0
      %328 = vmatprep.subr.bf16.mxu0 0
      %329 = vmatpush1.bf16.xpose.msra.mxu0 0
      %330 = vmatprep.subr.bf16.mxu0 0
      %331 = vmatpush1.bf16.xpose.msra.mxu0 0
      %332 = vmatprep.subr.bf16.mxu0 0
      %333 = vmatpush1.bf16.xpose.msra.mxu0 0
      %334 = vmatprep.mubr.bf16.mxu0 0
      %335 = vmatmul.mubr.bf16.gmra.mrb[0].mxu0 %v297
      %v336 = vpop.f32.mrb[0].mxu0
      %v337 = vadd.f32 0.0, %v336
      %v338 = vpop.f32.mrb[0].mxu0
      %v339 = vpop.f32.mrb[0].mxu0
      %v340 = vpop.f32.mrb[0].mxu0
      %341 = vdwg.mxu0
      %v342 = vsel %vm294, %v337, -1e+30
      %v343 = vld [vmem:[#allocation2] sm:$0xff]
      %v344 = vsel %vm295, %v342, -inf
      %345 = vmax.xlane.f32.xlu0 %v344
      %v346 = vpop.xlane.xlu0 %345
      %v347 = vmax.f32 %v343, %v346
      %v348 = vsub.f32 %v343, %v347
      %v349 = vmul.f32 %v348, 1.442695
      %v350 = vpow.pop %v349
      %352 = vset.pattern.permute.xlu0 0
      %353 = vperm.xlu0 %352, %v347
      %v354 = vpop.permute.xlu0 %353
      %v356 = vsub.f32 %v342, %v354
      %v357 = vmul.f32 %v356, 1.442695
      %v358 = vpow.pop %v357
      %v359 = vld [vmem:[#allocation3] sm:$0xff]
      %v360 = vmul.f32 %v350, %v359
      %v361 = vsel %vm295, %v358, 0.0
      %362 = vadd.xlane.f32.xlu0 %v361
      %v363 = vpop.xlane.xlu0 %362
      %v364 = vadd.f32 %v360, %v363
      %vm365 = vcmask 7168
      %366 = vst.msk [vmem:[#allocation3] sm:$0xff] %vm365, %v364
      %v367 = vld [vmem:[#allocation4] sm:$0xff]
      %369 = vset.pattern.permute.xlu0 0
      %370 = vperm.xlu0 %369, %v350
      %v371 = vpop.permute.xlu0 %370
      %v373 = vmul.f32 %v371, %v367
      %v374 = vpack.c.bf16 %v358, %v358
      %v376 = vsel %vm295, %v374, 0
      %vm378 = vcmask 1043456
      %v380 = vsel %vm378, %v283, 0
      %382 = vmatprep.subr.bf16.mxu0 0
      %383 = vmatpush1.bf16.msra.mxu0 %v380
      %384 = vmatprep.subr.bf16.mxu0 0
      %385 = vmatpush1.bf16.msra.mxu0 0
      %386 = vmatprep.subr.bf16.mxu0 0
      %387 = vmatpush1.bf16.msra.mxu0 0
      %388 = vmatprep.subr.bf16.mxu0 0
      %389 = vmatpush1.bf16.msra.mxu0 0
      %390 = vmatprep.subr.bf16.mxu0 0
      %391 = vmatpush1.bf16.msra.mxu0 0
      %392 = vmatprep.subr.bf16.mxu0 0
      %393 = vmatpush1.bf16.msra.mxu0 0
      %394 = vmatprep.subr.bf16.mxu0 0
      %395 = vmatpush1.bf16.msra.mxu0 0
      %396 = vmatprep.subr.bf16.mxu0 0
      %397 = vmatpush1.bf16.msra.mxu0 0
      %398 = vmatprep.subr.bf16.mxu0 0
      %399 = vmatpush1.bf16.msra.mxu0 0
      %400 = vmatprep.subr.bf16.mxu0 0
      %401 = vmatpush1.bf16.msra.mxu0 0
      %402 = vmatprep.subr.bf16.mxu0 0
      %403 = vmatpush1.bf16.msra.mxu0 0
      %404 = vmatprep.subr.bf16.mxu0 0
      %405 = vmatpush1.bf16.msra.mxu0 0
      %406 = vmatprep.subr.bf16.mxu0 0
      %407 = vmatpush1.bf16.msra.mxu0 0
      %408 = vmatprep.subr.bf16.mxu0 0
      %409 = vmatpush1.bf16.msra.mxu0 0
      %410 = vmatprep.subr.bf16.mxu0 0
      %411 = vmatpush1.bf16.msra.mxu0 0
      %412 = vmatprep.subr.bf16.mxu0 0
      %413 = vmatpush1.bf16.msra.mxu0 0
      %414 = vmatprep.mubr.bf16.mxu0 0
      %415 = vmatmul.mubr.bf16.gmra.mrb[0].mxu0 %v376
      %v416 = vpop.f32.mrb[0].mxu0
      %v417 = vadd.f32 0.0, %v416
      %v418 = vpop.f32.mrb[0].mxu0
      %v419 = vpop.f32.mrb[0].mxu0
      %v420 = vpop.f32.mrb[0].mxu0
      %421 = vdwg.mxu0
      %v422 = vadd.f32 %v373, %v417
      %423 = vst.msk [vmem:[#allocation4] sm:$0xff] %vm295, %v422
      %424 = vst.msk [vmem:[#allocation2] sm:$0xff] %vm365, %v347
      %v426 = vunpack.c.l.b16 %v281
      %v427 = vpack.c.b16 %v426, %v426
      %428 = vrot.lane.b32.xlu0 %v427, 120
      %v429 = vpop.permute.xlu0 %428
      %v431 = vunpack.c.l.b16 %v282
      %v432 = vpack.c.b16 %v431, %v431
      %433 = vrot.lane.b32.xlu0 %v432, 120
      %v434 = vpop.permute.xlu0 %433
      %v436 = vsel %vm295, %v429, 0
      %v439 = vsel %vm295, %v434, 0
      %441 = vmatprep.subr.bf16.mxu0 0
      %442 = vmatpush1.bf16.xpose.msra.mxu0 %v439
      %443 = vmatprep.subr.bf16.mxu0 0
      %444 = vmatpush1.bf16.xpose.msra.mxu0 0
      %445 = vmatprep.subr.bf16.mxu0 0
      %446 = vmatpush1.bf16.xpose.msra.mxu0 0
      %447 = vmatprep.subr.bf16.mxu0 0
      %448 = vmatpush1.bf16.xpose.msra.mxu0 0
      %449 = vmatprep.subr.bf16.mxu0 0
      %450 = vmatpush1.bf16.xpose.msra.mxu0 0
      %451 = vmatprep.subr.bf16.mxu0 0
      %452 = vmatpush1.bf16.xpose.msra.mxu0 0
      %453 = vmatprep.subr.bf16.mxu0 0
      %454 = vmatpush1.bf16.xpose.msra.mxu0 0
      %455 = vmatprep.subr.bf16.mxu0 0
      %456 = vmatpush1.bf16.xpose.msra.mxu0 0
      %457 = vmatprep.subr.bf16.mxu0 0
      %458 = vmatpush1.bf16.xpose.msra.mxu0 0
      %459 = vmatprep.subr.bf16.mxu0 0
      %460 = vmatpush1.bf16.xpose.msra.mxu0 0
      %461 = vmatprep.subr.bf16.mxu0 0
      %462 = vmatpush1.bf16.xpose.msra.mxu0 0
      %463 = vmatprep.subr.bf16.mxu0 0
      %464 = vmatpush1.bf16.xpose.msra.mxu0 0
      %465 = vmatprep.subr.bf16.mxu0 0
      %466 = vmatpush1.bf16.xpose.msra.mxu0 0
      %467 = vmatprep.subr.bf16.mxu0 0
      %468 = vmatpush1.bf16.xpose.msra.mxu0 0
      %469 = vmatprep.subr.bf16.mxu0 0
      %470 = vmatpush1.bf16.xpose.msra.mxu0 0
      %471 = vmatprep.subr.bf16.mxu0 0
      %472 = vmatpush1.bf16.xpose.msra.mxu0 0
      %473 = vmatprep.mubr.bf16.mxu0 0
      %474 = vmatmul.mubr.bf16.gmra.mrb[0].mxu0 %v436
      %v475 = vpop.f32.mrb[0].mxu0
      %v476 = vadd.f32 0.0, %v475
      %v477 = vpop.f32.mrb[0].mxu0
      %v478 = vpop.f32.mrb[0].mxu0
      %v479 = vpop.f32.mrb[0].mxu0
      %480 = vdwg.mxu0
      %v481 = vsel %vm294, %v476, -1e+30
      %s482 = scalar_lea.vmem [#allocation2], 8
      %v483 = vld [vmem:[%s482] sm:$0xff]
      %v484 = vsel %vm295, %v481, -inf
      %485 = vmax.xlane.f32.xlu0 %v484
      %v486 = vpop.xlane.xlu0 %485
      %v487 = vmax.f32 %v483, %v486
      %v488 = vsub.f32 %v483, %v487
      %v489 = vmul.f32 %v488, 1.442695
      %v490 = vpow.pop %v489
      %492 = vset.pattern.permute.xlu0 0
      %493 = vperm.xlu0 %492, %v487
      %v494 = vpop.permute.xlu0 %493
      %v496 = vsub.f32 %v481, %v494
      %v497 = vmul.f32 %v496, 1.442695
      %v498 = vpow.pop %v497
      %s499 = scalar_lea.vmem [#allocation3], 8
      %v500 = vld [vmem:[%s499] sm:$0xff]
      %v501 = vmul.f32 %v490, %v500
      %v502 = vsel %vm295, %v498, 0.0
      %503 = vadd.xlane.f32.xlu0 %v502
      %v504 = vpop.xlane.xlu0 %503
      %v505 = vadd.f32 %v501, %v504
      %506 = vst.msk [vmem:[%s499] sm:$0xff] %vm365, %v505
      %s507 = scalar_lea.vmem [#allocation4], 8
      %v508 = vld [vmem:[%s507] sm:$0xff]
      %510 = vset.pattern.permute.xlu0 0
      %511 = vperm.xlu0 %510, %v490
      %v512 = vpop.permute.xlu0 %511
      %v514 = vmul.f32 %v512, %v508
      %v515 = vpack.c.bf16 %v498, %v498
      %v517 = vunpack.c.l.b16 %v283
      %v518 = vpack.c.b16 %v517, %v517
      %519 = vrot.lane.b32.xlu0 %v518, 120
      %v520 = vpop.permute.xlu0 %519
      %v522 = vsel %vm295, %v515, 0
      %v525 = vsel %vm378, %v520, 0
      %527 = vmatprep.subr.bf16.mxu0 0
      %528 = vmatpush1.bf16.msra.mxu0 %v525
      %529 = vmatprep.subr.bf16.mxu0 0
      %530 = vmatpush1.bf16.msra.mxu0 0
      %531 = vmatprep.subr.bf16.mxu0 0
      %532 = vmatpush1.bf16.msra.mxu0 0
      %533 = vmatprep.subr.bf16.mxu0 0
      %534 = vmatpush1.bf16.msra.mxu0 0
      %535 = vmatprep.subr.bf16.mxu0 0
      %536 = vmatpush1.bf16.msra.mxu0 0
      %537 = vmatprep.subr.bf16.mxu0 0
      %538 = vmatpush1.bf16.msra.mxu0 0
      %539 = vmatprep.subr.bf16.mxu0 0
      %540 = vmatpush1.bf16.msra.mxu0 0
      %541 = vmatprep.subr.bf16.mxu0 0
      %542 = vmatpush1.bf16.msra.mxu0 0
      %543 = vmatprep.subr.bf16.mxu0 0
      %544 = vmatpush1.bf16.msra.mxu0 0
      %545 = vmatprep.subr.bf16.mxu0 0
      %546 = vmatpush1.bf16.msra.mxu0 0
      %547 = vmatprep.subr.bf16.mxu0 0
      %548 = vmatpush1.bf16.msra.mxu0 0
      %549 = vmatprep.subr.bf16.mxu0 0
      %550 = vmatpush1.bf16.msra.mxu0 0
      %551 = vmatprep.subr.bf16.mxu0 0
      %552 = vmatpush1.bf16.msra.mxu0 0
      %553 = vmatprep.subr.bf16.mxu0 0
      %554 = vmatpush1.bf16.msra.mxu0 0
      %555 = vmatprep.subr.bf16.mxu0 0
      %556 = vmatpush1.bf16.msra.mxu0 0
      %557 = vmatprep.subr.bf16.mxu0 0
      %558 = vmatpush1.bf16.msra.mxu0 0
      %559 = vmatprep.mubr.bf16.mxu0 0
      %560 = vmatmul.mubr.bf16.gmra.mrb[0].mxu0 %v522
      %v561 = vpop.f32.mrb[0].mxu0
      %v562 = vadd.f32 0.0, %v561
      %v563 = vpop.f32.mrb[0].mxu0
      %v564 = vpop.f32.mrb[0].mxu0
      %v565 = vpop.f32.mrb[0].mxu0
      %566 = vdwg.mxu0
      %v567 = vadd.f32 %v514, %v562
      %568 = vst.msk [vmem:[%s507] sm:$0xff] %vm295, %v567
      %569 = vst.msk [vmem:[%s482] sm:$0xff] %vm365, %v487
      %570 = vrot.lane.b32.xlu0 %v427, 112
      %v571 = vpop.permute.xlu0 %570
      %572 = vrot.lane.b32.xlu0 %v432, 112
      %v573 = vpop.permute.xlu0 %572
      %v575 = vsel %vm295, %v571, 0
      %v578 = vsel %vm295, %v573, 0
      %580 = vmatprep.subr.bf16.mxu0 0
      %581 = vmatpush1.bf16.xpose.msra.mxu0 %v578
      %582 = vmatprep.subr.bf16.mxu0 0
      %583 = vmatpush1.bf16.xpose.msra.mxu0 0
      %584 = vmatprep.subr.bf16.mxu0 0
      %585 = vmatpush1.bf16.xpose.msra.mxu0 0
      %586 = vmatprep.subr.bf16.mxu0 0
      %587 = vmatpush1.bf16.xpose.msra.mxu0 0
      %588 = vmatprep.subr.bf16.mxu0 0
      %589 = vmatpush1.bf16.xpose.msra.mxu0 0
      %590 = vmatprep.subr.bf16.mxu0 0
      %591 = vmatpush1.bf16.xpose.msra.mxu0 0
      %592 = vmatprep.subr.bf16.mxu0 0
      %593 = vmatpush1.bf16.xpose.msra.mxu0 0
      %594 = vmatprep.subr.bf16.mxu0 0
      %595 = vmatpush1.bf16.xpose.msra.mxu0 0
      %596 = vmatprep.subr.bf16.mxu0 0
      %597 = vmatpush1.bf16.xpose.msra.mxu0 0
      %598 = vmatprep.subr.bf16.mxu0 0
      %599 = vmatpush1.bf16.xpose.msra.mxu0 0
      %600 = vmatprep.subr.bf16.mxu0 0
      %601 = vmatpush1.bf16.xpose.msra.mxu0 0
      %602 = vmatprep.subr.bf16.mxu0 0
      %603 = vmatpush1.bf16.xpose.msra.mxu0 0
      %604 = vmatprep.subr.bf16.mxu0 0
      %605 = vmatpush1.bf16.xpose.msra.mxu0 0
      %606 = vmatprep.subr.bf16.mxu0 0
      %607 = vmatpush1.bf16.xpose.msra.mxu0 0
      %608 = vmatprep.subr.bf16.mxu0 0
      %609 = vmatpush1.bf16.xpose.msra.mxu0 0
      %610 = vmatprep.subr.bf16.mxu0 0
      %611 = vmatpush1.bf16.xpose.msra.mxu0 0
      %612 = vmatprep.mubr.bf16.mxu0 0
      %613 = vmatmul.mubr.bf16.gmra.mrb[0].mxu0 %v575
      %v614 = vpop.f32.mrb[0].mxu0
      %v615 = vadd.f32 0.0, %v614
      %v616 = vpop.f32.mrb[0].mxu0
      %v617 = vpop.f32.mrb[0].mxu0
      %v618 = vpop.f32.mrb[0].mxu0
      %619 = vdwg.mxu0
      %v620 = vsel %vm294, %v615, -1e+30
      %s621 = scalar_lea.vmem [#allocation2], 16
      %v622 = vld [vmem:[%s621] sm:$0xff]
      %v623 = vsel %vm295, %v620, -inf
      %624 = vmax.xlane.f32.xlu0 %v623
      %v625 = vpop.xlane.xlu0 %624
      %v626 = vmax.f32 %v622, %v625
      %v627 = vsub.f32 %v622, %v626
      %v628 = vmul.f32 %v627, 1.442695
      %v629 = vpow.pop %v628
      %631 = vset.pattern.permute.xlu0 0
      %632 = vperm.xlu0 %631, %v626
      %v633 = vpop.permute.xlu0 %632
      %v635 = vsub.f32 %v620, %v633
      %v636 = vmul.f32 %v635, 1.442695
      %v637 = vpow.pop %v636
      %s638 = scalar_lea.vmem [#allocation3], 16
      %v639 = vld [vmem:[%s638] sm:$0xff]
      %v640 = vmul.f32 %v629, %v639
      %v641 = vsel %vm295, %v637, 0.0
      %642 = vadd.xlane.f32.xlu0 %v641
      %v643 = vpop.xlane.xlu0 %642
      %v644 = vadd.f32 %v640, %v643
      %645 = vst.msk [vmem:[%s638] sm:$0xff] %vm365, %v644
      %s646 = scalar_lea.vmem [#allocation4], 16
      %v647 = vld [vmem:[%s646] sm:$0xff]
      %649 = vset.pattern.permute.xlu0 0
      %650 = vperm.xlu0 %649, %v629
      %v651 = vpop.permute.xlu0 %650
      %v653 = vmul.f32 %v651, %v647
      %v654 = vpack.c.bf16 %v637, %v637
      %655 = vrot.lane.b32.xlu0 %v518, 112
      %v656 = vpop.permute.xlu0 %655
      %v658 = vsel %vm295, %v654, 0
      %v661 = vsel %vm378, %v656, 0
      %663 = vmatprep.subr.bf16.mxu0 0
      %664 = vmatpush1.bf16.msra.mxu0 %v661
      %665 = vmatprep.subr.bf16.mxu0 0
      %666 = vmatpush1.bf16.msra.mxu0 0
      %667 = vmatprep.subr.bf16.mxu0 0
      %668 = vmatpush1.bf16.msra.mxu0 0
      %669 = vmatprep.subr.bf16.mxu0 0
      %670 = vmatpush1.bf16.msra.mxu0 0
      %671 = vmatprep.subr.bf16.mxu0 0
      %672 = vmatpush1.bf16.msra.mxu0 0
      %673 = vmatprep.subr.bf16.mxu0 0
      %674 = vmatpush1.bf16.msra.mxu0 0
      %675 = vmatprep.subr.bf16.mxu0 0
      %676 = vmatpush1.bf16.msra.mxu0 0
      %677 = vmatprep.subr.bf16.mxu0 0
      %678 = vmatpush1.bf16.msra.mxu0 0
      %679 = vmatprep.subr.bf16.mxu0 0
      %680 = vmatpush1.bf16.msra.mxu0 0
      %681 = vmatprep.subr.bf16.mxu0 0
      %682 = vmatpush1.bf16.msra.mxu0 0
      %683 = vmatprep.subr.bf16.mxu0 0
      %684 = vmatpush1.bf16.msra.mxu0 0
      %685 = vmatprep.subr.bf16.mxu0 0
      %686 = vmatpush1.bf16.msra.mxu0 0
      %687 = vmatprep.subr.bf16.mxu0 0
      %688 = vmatpush1.bf16.msra.mxu0 0
      %689 = vmatprep.subr.bf16.mxu0 0
      %690 = vmatpush1.bf16.msra.mxu0 0
      %691 = vmatprep.subr.bf16.mxu0 0
      %692 = vmatpush1.bf16.msra.mxu0 0
      %693 = vmatprep.subr.bf16.mxu0 0
      %694 = vmatpush1.bf16.msra.mxu0 0
      %695 = vmatprep.mubr.bf16.mxu0 0
      %696 = vmatmul.mubr.bf16.gmra.mrb[0].mxu0 %v658
      %v697 = vpop.f32.mrb[0].mxu0
      %v698 = vadd.f32 0.0, %v697
      %v699 = vpop.f32.mrb[0].mxu0
      %v700 = vpop.f32.mrb[0].mxu0
      %v701 = vpop.f32.mrb[0].mxu0
      %702 = vdwg.mxu0
      %v703 = vadd.f32 %v653, %v698
      %704 = vst.msk [vmem:[%s646] sm:$0xff] %vm295, %v703
      %705 = vst.msk [vmem:[%s621] sm:$0xff] %vm365, %v626
      %706 = vrot.lane.b32.xlu0 %v427, 104
      %v707 = vpop.permute.xlu0 %706
      %708 = vrot.lane.b32.xlu0 %v432, 104
      %v709 = vpop.permute.xlu0 %708
      %v711 = vsel %vm295, %v707, 0
      %v714 = vsel %vm295, %v709, 0
      %716 = vmatprep.subr.bf16.mxu0 0
      %717 = vmatpush1.bf16.xpose.msra.mxu0 %v714
      %718 = vmatprep.subr.bf16.mxu0 0
      %719 = vmatpush1.bf16.xpose.msra.mxu0 0
      %720 = vmatprep.subr.bf16.mxu0 0
      %721 = vmatpush1.bf16.xpose.msra.mxu0 0
      %722 = vmatprep.subr.bf16.mxu0 0
      %723 = vmatpush1.bf16.xpose.msra.mxu0 0
      %724 = vmatprep.subr.bf16.mxu0 0
      %725 = vmatpush1.bf16.xpose.msra.mxu0 0
      %726 = vmatprep.subr.bf16.mxu0 0
      %727 = vmatpush1.bf16.xpose.msra.mxu0 0
      %728 = vmatprep.subr.bf16.mxu0 0
      %729 = vmatpush1.bf16.xpose.msra.mxu0 0
      %730 = vmatprep.subr.bf16.mxu0 0
      %731 = vmatpush1.bf16.xpose.msra.mxu0 0
      %732 = vmatprep.subr.bf16.mxu0 0
      %733 = vmatpush1.bf16.xpose.msra.mxu0 0
      %734 = vmatprep.subr.bf16.mxu0 0
      %735 = vmatpush1.bf16.xpose.msra.mxu0 0
      %736 = vmatprep.subr.bf16.mxu0 0
      %737 = vmatpush1.bf16.xpose.msra.mxu0 0
      %738 = vmatprep.subr.bf16.mxu0 0
      %739 = vmatpush1.bf16.xpose.msra.mxu0 0
      %740 = vmatprep.subr.bf16.mxu0 0
      %741 = vmatpush1.bf16.xpose.msra.mxu0 0
      %742 = vmatprep.subr.bf16.mxu0 0
      %743 = vmatpush1.bf16.xpose.msra.mxu0 0
      %744 = vmatprep.subr.bf16.mxu0 0
      %745 = vmatpush1.bf16.xpose.msra.mxu0 0
      %746 = vmatprep.subr.bf16.mxu0 0
      %747 = vmatpush1.bf16.xpose.msra.mxu0 0
      %748 = vmatprep.mubr.bf16.mxu0 0
      %749 = vmatmul.mubr.bf16.gmra.mrb[0].mxu0 %v711
      %v750 = vpop.f32.mrb[0].mxu0
      %v751 = vadd.f32 0.0, %v750
      %v752 = vpop.f32.mrb[0].mxu0
      %v753 = vpop.f32.mrb[0].mxu0
      %v754 = vpop.f32.mrb[0].mxu0
      %755 = vdwg.mxu0
      %v756 = vsel %vm294, %v751, -1e+30
      %s757 = scalar_lea.vmem [#allocation2], 24
      %v758 = vld [vmem:[%s757] sm:$0xff]
      %v759 = vsel %vm295, %v756, -inf
      %760 = vmax.xlane.f32.xlu0 %v759
      %v761 = vpop.xlane.xlu0 %760
      %v762 = vmax.f32 %v758, %v761
      %v763 = vsub.f32 %v758, %v762
      %v764 = vmul.f32 %v763, 1.442695
      %v765 = vpow.pop %v764
      %767 = vset.pattern.permute.xlu0 0
      %768 = vperm.xlu0 %767, %v762
      %v769 = vpop.permute.xlu0 %768
      %v771 = vsub.f32 %v756, %v769
      %v772 = vmul.f32 %v771, 1.442695
      %v773 = vpow.pop %v772
      %s774 = scalar_lea.vmem [#allocation3], 24
      %v775 = vld [vmem:[%s774] sm:$0xff]
      %v776 = vmul.f32 %v765, %v775
      %v777 = vsel %vm295, %v773, 0.0
      %778 = vadd.xlane.f32.xlu0 %v777
      %v779 = vpop.xlane.xlu0 %778
      %v780 = vadd.f32 %v776, %v779
      %781 = vst.msk [vmem:[%s774] sm:$0xff] %vm365, %v780
      %s782 = scalar_lea.vmem [#allocation4], 24
      %v783 = vld [vmem:[%s782] sm:$0xff]
      %785 = vset.pattern.permute.xlu0 0
      %786 = vperm.xlu0 %785, %v765
      %v787 = vpop.permute.xlu0 %786
      %v789 = vmul.f32 %v787, %v783
      %v790 = vpack.c.bf16 %v773, %v773
      %791 = vrot.lane.b32.xlu0 %v518, 104
      %v792 = vpop.permute.xlu0 %791
      %v794 = vsel %vm295, %v790, 0
      %v797 = vsel %vm378, %v792, 0
      %799 = vmatprep.subr.bf16.mxu0 0
      %800 = vmatpush1.bf16.msra.mxu0 %v797
      %801 = vmatprep.subr.bf16.mxu0 0
      %802 = vmatpush1.bf16.msra.mxu0 0
      %803 = vmatprep.subr.bf16.mxu0 0
      %804 = vmatpush1.bf16.msra.mxu0 0
      %805 = vmatprep.subr.bf16.mxu0 0
      %806 = vmatpush1.bf16.msra.mxu0 0
      %807 = vmatprep.subr.bf16.mxu0 0
      %808 = vmatpush1.bf16.msra.mxu0 0
      %809 = vmatprep.subr.bf16.mxu0 0
      %810 = vmatpush1.bf16.msra.mxu0 0
      %811 = vmatprep.subr.bf16.mxu0 0
      %812 = vmatpush1.bf16.msra.mxu0 0
      %813 = vmatprep.subr.bf16.mxu0 0
      %814 = vmatpush1.bf16.msra.mxu0 0
      %815 = vmatprep.subr.bf16.mxu0 0
      %816 = vmatpush1.bf16.msra.mxu0 0
      %817 = vmatprep.subr.bf16.mxu0 0
      %818 = vmatpush1.bf16.msra.mxu0 0
      %819 = vmatprep.subr.bf16.mxu0 0
      %820 = vmatpush1.bf16.msra.mxu0 0
      %821 = vmatprep.subr.bf16.mxu0 0
      %822 = vmatpush1.bf16.msra.mxu0 0
      %823 = vmatprep.subr.bf16.mxu0 0
      %824 = vmatpush1.bf16.msra.mxu0 0
      %825 = vmatprep.subr.bf16.mxu0 0
      %826 = vmatpush1.bf16.msra.mxu0 0
      %827 = vmatprep.subr.bf16.mxu0 0
      %828 = vmatpush1.bf16.msra.mxu0 0
      %829 = vmatprep.subr.bf16.mxu0 0
      %830 = vmatpush1.bf16.msra.mxu0 0
      %831 = vmatprep.mubr.bf16.mxu0 0
      %832 = vmatmul.mubr.bf16.gmra.mrb[0].mxu0 %v794
      %v833 = vpop.f32.mrb[0].mxu0
      %v834 = vadd.f32 0.0, %v833
      %v835 = vpop.f32.mrb[0].mxu0
      %v836 = vpop.f32.mrb[0].mxu0
      %v837 = vpop.f32.mrb[0].mxu0
      %838 = vdwg.mxu0
      %v839 = vadd.f32 %v789, %v834
      %840 = vst.msk [vmem:[%s782] sm:$0xff] %vm295, %v839
      %841 = vst.msk [vmem:[%s757] sm:$0xff] %vm365, %v762
      // Predicated region
      $region37: #{transformer_forward.34} parent=31 // pred_check
        %p842 = pneg %p262
      $region38: #{transformer_forward.34} parent=31 // pred_check_branch
        %844 = sbr.rel (%p842) target = $region40
      $region39: #{transformer_forward.34} parent=31 // pred_region
        %v845 = vld [vmem:[#allocation4] sm:$0xff]
        %v846 = vld [vmem:[#allocation3] sm:$0xff]
        %v847 = vrcp.pop %v846
        %849 = vset.pattern.permute.xlu0 0
        %850 = vperm.xlu0 %849, %v847
        %v851 = vpop.permute.xlu0 %850
        %v853 = vmul.f32 %v845, %v851
        %v854 = vld [vmem:[%s507] sm:$0xff]
        %v855 = vld [vmem:[%s499] sm:$0xff]
        %v856 = vrcp.pop %v855
        %858 = vset.pattern.permute.xlu0 0
        %859 = vperm.xlu0 %858, %v856
        %v860 = vpop.permute.xlu0 %859
        %v862 = vmul.f32 %v854, %v860
        %v863 = vld [vmem:[%s646] sm:$0xff]
        %v864 = vld [vmem:[%s638] sm:$0xff]
        %v865 = vrcp.pop %v864
        %867 = vset.pattern.permute.xlu0 0
        %868 = vperm.xlu0 %867, %v865
        %v869 = vpop.permute.xlu0 %868
        %v871 = vmul.f32 %v863, %v869
        %v872 = vld [vmem:[%s782] sm:$0xff]
        %v873 = vld [vmem:[%s774] sm:$0xff]
        %v874 = vrcp.pop %v873
        %876 = vset.pattern.permute.xlu0 0
        %877 = vperm.xlu0 %876, %v874
        %v878 = vpop.permute.xlu0 %877
        %v880 = vmul.f32 %v872, %v878
        %882 = vrot.lane.b32.xlu0 %v862, 8
        %v883 = vpop.permute.xlu0 %882
        %886 = vrot.lane.b32.xlu0 %v871, 16
        %v887 = vpop.permute.xlu0 %886
        %890 = vrot.lane.b32.xlu0 %v880, 24
        %v891 = vpop.permute.xlu0 %890
        %v893 = vsel %vm295, %v853, %v883
        %vm894 = vcmask 130048
        %v895 = vsel %vm894, %v893, %v887
        %vm896 = vcmask 195584
        %v897 = vsel %vm896, %v895, %v891
        %v898 = vpack.c.bf16 %v897, %v897
        %vm899 = vcmask 257024
        %900 = vst.msk [vmem:[%s259] sm:$0xf] %vm899, %v898
      $region40: #{transformer_forward.34} parent=31 // pred_fallthru
        _
      %p901 = scmp.lt.s32.totalorder %s19, 1
      %s902 = scalar_select %p901, %s19, 1
      %p903 = scmp.lt.s32.totalorder %s20, 0
      %s904 = scalar_select %p903, %s20, 0
      %s905 = sadd.s32 %s904, %s902
      %s906 = smul.addr %s905, 4
      %s907 = scalar_lea.vmem %s3, %s906
      // Predicated region
      $region41: #{transformer_forward.34} parent=31 // pred_check
        %p908 = pneg %p137
      $region42: #{transformer_forward.34} parent=31 // pred_check_branch
        %910 = sbr.rel (%p908) target = $region44
      $region43: #{transformer_forward.34} parent=31 // pred_region
        _
      $region44: #{transformer_forward.34} parent=31 // pred_fallthru
        _
    $region32: #{transformer_forward.34} parent=5 // pred_fallthru
      _
    %p911 = scmp.le.s32.totalorder 2, %s9
    // Predicated region
    $region45: #{transformer_forward.34} parent=5 // pred_check
      %p912 = pneg %p911
    $region46: #{transformer_forward.34} parent=5 // pred_check_branch
      %914 = sbr.rel (%p912) target = $region48
    $region47: #{transformer_forward.34} parent=5 // pred_region
      %s915 = ssub.s32 %s9, 2
      // Predicated region
      $region49: #{transformer_forward.34} parent=47 // pred_check
        %p916 = pneg %p143
      $region50: #{transformer_forward.34} parent=47 // pred_check_branch
        %918 = sbr.rel (%p916) target = $region52
      $region51: #{transformer_forward.34} parent=47 // pred_region
        %p919 = scmp.lt.s32.totalorder %s22, 1
        %s920 = scalar_select %p919, %s22, 1
        %p921 = scmp.lt.s32.totalorder %s23, 0
        %s922 = scalar_select %p921, %s23, 0
        %s923 = sadd.s32 %s922, %s920
        %s924 = smul.addr %s923, 4
        %s925 = scalar_lea.vmem %s3, %s924
      $region52: #{transformer_forward.34} parent=47 // pred_fallthru
        _
    $region48: #{transformer_forward.34} parent=5 // pred_fallthru
      _
  $region6: #{transformer_forward.34} parent=0 // loop_footer
    %s13 = sadd.s32 1, %s9
  $region7: #{transformer_forward.34} parent=0 // loop_footer_branch
    %8 = sbr.rel target = $region3
  $region8: #{transformer_forward.34} parent=0 // loop_exit
    _

</llo_original>
